<compile_context>
chip_gen: v7x
topology: tpu7x:2x2x1
jax: 0.10.0
libtpu: 0.0.40
codegen_flags: <defaults>
</compile_context>

<pallas_src>
import functools

import jax
import jax.numpy as jnp
from jax import lax
from jax.experimental import pallas as pl
from jax.experimental.pallas import tpu as pltpu

_EPS = 1e-5          # PyTorch BatchNorm2d default
_SLOPE = 0.2         # leaky_relu negative slope
_VMEM_LIMIT = 32 * 1024 * 1024   # safe scoped limit on v5e/v6e/v7x


# -----------------------------------------------------------------------------
# Kernel helpers
# -----------------------------------------------------------------------------
def _gather_patches_batch(xc_ref, n, ho, wo):
    """Assemble the (N*Ho*Wo, 16*Cin) patch matrix for the whole batch from the
    compact kw-unrolled / row-parity-split input.  Per kernel-row offset the
    samples are stacked along the sublane axis (Ho*Wo is a multiple of 8, so
    this concat is alignment-free); the 4 kh parts are joined on the lane axis
    to form the contraction dim."""
    parts = []
    for i in range(4):                       # kernel row offset
        ri, qi = i % 2, i // 2
        rows = jnp.concatenate(
            [xc_ref[s, ri, pl.ds(qi * wo, ho * wo), :] for s in range(n)],
            axis=0)                          # (N*Ho*Wo, 4*Cin)
        parts.append(rows)
    return jnp.concatenate(parts, axis=1)    # K = 16*Cin on the lane axis


def _conv_mm(w_ref, patches):
    # (Cout, K) x (M, K) -> (Cout, M): M lands on the lane axis (lane-dense).
    return lax.dot_general(
        w_ref[...], patches, (((1,), (1,)), ((), ())),
        preferred_element_type=jnp.float32)


def _bn_lrelu(y, g_ref, b_ref):
    # Training-mode batch norm over the full N*Ho*Wo lane axis -> exact stats.
    mean = jnp.mean(y, axis=1, keepdims=True)
    var = jnp.mean(jnp.square(y - mean), axis=1, keepdims=True)
    y = (y - mean) * lax.rsqrt(var + _EPS) * g_ref[...] + b_ref[...]
    return jnp.where(y >= 0.0, y, _SLOPE * y)


# -----------------------------------------------------------------------------
# Kernels
# -----------------------------------------------------------------------------
def _conv1_kernel(xc_ref, w_ref, o_ref, *, th, wo):
    """Layer 1: conv4x4/s2 + leaky-relu, tiled over (sample, output-row band)."""
    band = th * wo
    base = pl.multiple_of(pl.program_id(1) * band, band)
    parts = []
    for i in range(4):
        ri, qi = i % 2, i // 2
        parts.append(xc_ref[0, ri, pl.ds(base + qi * wo, band), :])
    patches = jnp.concatenate(parts, axis=1)            # (band, 128) bf16
    y = _conv_mm(w_ref, patches)                        # (Cout, band) f32
    o_ref[...] = jnp.where(y >= 0.0, y, _SLOPE * y)


def _conv_bn_kernel(xc_ref, w_ref, g_ref, b_ref, o_ref, *, n, ho, wo):
    """conv4x4/s2 + batch-norm(train) + leaky-relu over the full batch, one
    MXU matmul with M = N*Ho*Wo on the lane axis."""
    patches = _gather_patches_batch(xc_ref, n, ho, wo)  # (N*Ho*Wo, 16*Cin)
    y = _conv_mm(w_ref, patches)                        # (Cout, N*Ho*Wo)
    o_ref[...] = _bn_lrelu(y, g_ref, b_ref)


def _conv45_kernel(xc_ref, w4_ref, g_ref, b_ref, w5_ref, sel_ref, o_ref,
                   *, n, ho, wo, sigmoid):
    """Fused conv4 + bn4 + leaky-relu + conv5 (+ sigmoid): conv5 of a 4x4 map
    with a 4x4 kernel is a plain per-sample dot, so layers 4/5 stay VMEM
    resident and never round-trip HBM."""
    patches = _gather_patches_batch(xc_ref, n, ho, wo)  # (N*16, 16*Cin)
    y = _conv_mm(w4_ref, patches)                       # (C4, N*16)
    y = _bn_lrelu(y, g_ref, b_ref)
    z = w5_ref[...] * y                                 # conv5 weights tiled over N
    col = jnp.sum(z, axis=0, keepdims=True)             # (1, N*16)
    logits = jnp.dot(col, sel_ref[...],
                     preferred_element_type=jnp.float32)   # (1, N)
    if sigmoid:
        logits = pl.reciprocal(1.0 + jnp.exp(-logits), approx=True)
    o_ref[...] = logits


# -----------------------------------------------------------------------------
# pallas_call wrappers
# -----------------------------------------------------------------------------
def _mosaic(sem):
    return pltpu.CompilerParams(dimension_semantics=sem,
                                vmem_limit_bytes=_VMEM_LIMIT)


def _call_conv1(xc, w, *, n, ho, wo, cout):
    th = 16 if ho % 16 == 0 else ho          # 512-lane output bands
    nband = ho // th
    kernel = functools.partial(_conv1_kernel, th=th, wo=wo)
    return pl.pallas_call(
        kernel,
        out_shape=jax.ShapeDtypeStruct((cout, n * ho * wo), jnp.float32),
        grid=(n, nband),
        in_specs=[
            pl.BlockSpec((1,) + xc.shape[1:], lambda s, t: (s, 0, 0, 0)),
            pl.BlockSpec(w.shape, lambda s, t: (0, 0)),
        ],
        out_specs=pl.BlockSpec((cout, th * wo),
                               lambda s, t: (0, s * nband + t)),
        compiler_params=_mosaic(("parallel", "parallel")),
    )(xc, w)


def _call_conv_bn(xc, w, g, b, *, n, ho, wo, cout):
    kernel = functools.partial(_conv_bn_kernel, n=n, ho=ho, wo=wo)
    m = n * ho * wo
    return pl.pallas_call(
        kernel,
        out_shape=jax.ShapeDtypeStruct((cout, m), jnp.float32),
        grid=(1,),
        in_specs=[pl.BlockSpec(xc.shape, lambda i: (0, 0, 0, 0)),
                  pl.BlockSpec(w.shape, lambda i: (0, 0)),
                  pl.BlockSpec(g.shape, lambda i: (0, 0)),
                  pl.BlockSpec(b.shape, lambda i: (0, 0))],
        out_specs=pl.BlockSpec((cout, m), lambda i: (0, 0)),
        compiler_params=_mosaic(("arbitrary",)),
    )(xc, w, g, b)


def _call_conv45(xc, w4, g, b, w5t, sel, *, n, ho, wo, sigmoid):
    kernel = functools.partial(_conv45_kernel, n=n, ho=ho, wo=wo, sigmoid=sigmoid)
    return pl.pallas_call(
        kernel,
        out_shape=jax.ShapeDtypeStruct((1, n), jnp.float32),
        grid=(1,),
        in_specs=[pl.BlockSpec(xc.shape, lambda i: (0, 0, 0, 0)),
                  pl.BlockSpec(w4.shape, lambda i: (0, 0)),
                  pl.BlockSpec(g.shape, lambda i: (0, 0)),
                  pl.BlockSpec(b.shape, lambda i: (0, 0)),
                  pl.BlockSpec(w5t.shape, lambda i: (0, 0)),
                  pl.BlockSpec(sel.shape, lambda i: (0, 0))],
        out_specs=pl.BlockSpec((1, n), lambda i: (0, 0)),
        compiler_params=_mosaic(("arbitrary",)),
    )(xc, w4, g, b, w5t, sel)


# -----------------------------------------------------------------------------
# Wrapper-side layout prep (pure data movement, ~1-2x bytes, not 16x im2col)
# -----------------------------------------------------------------------------
def _xcols(x_nhwc, pad=1):
    """NHWC -> (N, 2, Hq*Wo, 4*C) bf16 for a 4x4/stride-2 conv: columns are
    kw-unrolled (2x), rows are split by padded-input-row parity so the kernel
    can assemble all 16 patch offsets with contiguous slices only."""
    x = jnp.pad(x_nhwc, ((0, 0), (pad, pad), (pad, pad), (0, 0)))
    n, hp, wp, c = x.shape
    wo, hq = (wp - 4) // 2 + 1, hp // 2
    cols = [x[:, :, j:j + 2 * wo:2, :] for j in range(4)]
    xc = jnp.stack(cols, axis=3).reshape(n, hp, wo, 4 * c)
    xc = xc.reshape(n, hq, 2, wo, 4 * c).transpose(0, 2, 1, 3, 4)
    return xc.reshape(n, 2, hq * wo, 4 * c).astype(jnp.bfloat16)


def _cm_to_nhwc(y_cm, n, h, w):
    c = y_cm.shape[0]
    return jnp.transpose(y_cm.reshape(c, n, h, w), (1, 2, 3, 0))


def _wmat(w, cin_pad=None):
    """(Cout, Cin, 4, 4) -> bf16 (Cout, 16*Cin) ordered [kh, kw, Cin] to match
    the in-kernel patch assembly (lane-concat over kh of kw*Cin blocks)."""
    if cin_pad is not None and cin_pad > w.shape[1]:
        w = jnp.pad(w, ((0, 0), (0, cin_pad - w.shape[1]), (0, 0), (0, 0)))
    co, ci = w.shape[0], w.shape[1]
    return jnp.transpose(w, (0, 2, 3, 1)).reshape(co, 16 * ci).astype(jnp.bfloat16)


# -----------------------------------------------------------------------------
# Discriminator forward
# -----------------------------------------------------------------------------
def init_params(key, num_c=3, dim=8):
    ks = jax.random.split(key, 11)
    p = {}
    p["w1"] = 0.02 * jax.random.normal(ks[0], (dim, num_c, 4, 4), jnp.float32)
    p["w2"] = 0.02 * jax.random.normal(ks[1], (dim * 2, dim, 4, 4), jnp.float32)
    p["w3"] = 0.02 * jax.random.normal(ks[2], (dim * 4, dim * 2, 4, 4), jnp.float32)
    p["w4"] = 0.02 * jax.random.normal(ks[3], (dim * 8, dim * 4, 4, 4), jnp.float32)
    p["w5"] = 0.02 * jax.random.normal(ks[4], (1, dim * 8, 4, 4), jnp.float32)
    p["g2"] = 1.0 + 0.1 * jax.random.normal(ks[5], (dim * 2,), jnp.float32)
    p["b2"] = 0.1 * jax.random.normal(ks[6], (dim * 2,), jnp.float32)
    p["g3"] = 1.0 + 0.1 * jax.random.normal(ks[7], (dim * 4,), jnp.float32)
    p["b3"] = 0.1 * jax.random.normal(ks[8], (dim * 4,), jnp.float32)
    p["g4"] = 1.0 + 0.1 * jax.random.normal(ks[9], (dim * 8,), jnp.float32)
    p["b4"] = 0.1 * jax.random.normal(ks[10], (dim * 8,), jnp.float32)
    return p


def discriminator_forward(x_nchw, params, model="DCGAN"):
    n, _, h, _ = x_nchw.shape
    dim = params["w1"].shape[0]
    c1, c2, c3, c4 = dim, dim * 2, dim * 4, dim * 8
    h1, h2, h3, h4 = h // 2, h // 4, h // 8, h // 16

    x = jnp.transpose(x_nchw, (0, 2, 3, 1)).astype(jnp.float32)
    cin = x.shape[-1]
    if cin < 8:                           # pad K of layer 1 to 4*4*8 = 128 lanes
        x = jnp.pad(x, ((0, 0), (0, 0), (0, 0), (0, 8 - cin)))

    # --- layer 1: tiled, lane-dense, no BN -----------------------------------
    y1 = _call_conv1(_xcols(x), _wmat(params["w1"], cin_pad=max(cin, 8)),
                     n=n, ho=h1, wo=h1, cout=c1)

    # --- layers 2 / 3: conv + BN(train) + lrelu, full batch per call ---------
    y2 = _call_conv_bn(_xcols(_cm_to_nhwc(y1, n, h1, h1)), _wmat(params["w2"]),
                       params["g2"].reshape(c2, 1), params["b2"].reshape(c2, 1),
                       n=n, ho=h2, wo=h2, cout=c2)
    y3 = _call_conv_bn(_xcols(_cm_to_nhwc(y2, n, h2, h2)), _wmat(params["w3"]),
                       params["g3"].reshape(c3, 1), params["b3"].reshape(c3, 1),
                       n=n, ho=h3, wo=h3, cout=c3)

    # --- layer 4 (+ fused layer 5) --------------------------------------------
    xc4 = _xcols(_cm_to_nhwc(y3, n, h3, h3))
    w4 = _wmat(params["w4"])
    g4, b4 = params["g4"].reshape(c4, 1), params["b4"].reshape(c4, 1)

    if model is None:                     # PyTorch: return the layer-4 feature map
        y4 = _call_conv_bn(xc4, w4, g4, b4, n=n, ho=h4, wo=h4, cout=c4)
        return jnp.transpose(y4.reshape(c4, n, h4, h4), (1, 0, 2, 3))

    assert h4 == 4, "conv5 (4x4, stride 1, no pad) expects a 4x4 feature map"
    w5r = params["w5"][0].reshape(c4, 16).astype(jnp.float32)
    w5t = jnp.tile(w5r, (1, n))                                   # (C4, N*16)
    sel = jnp.repeat(jnp.eye(n, dtype=jnp.float32), 16, axis=0)   # (N*16, N)
    logits = _call_conv45(xc4, w4, g4, b4, w5t, sel, n=n, ho=h4, wo=h4,
                          sigmoid=(model == "DCGAN"))
    return jnp.transpose(logits, (1, 0)).reshape(n, 1, 1, 1)


# -----------------------------------------------------------------------------
# Pure-JAX reference (lax.conv, f32) for a sanity check
# -----------------------------------------------------------------------------
def _ref_forward(x_nchw, params, model="DCGAN"):
    def conv(x, w, stride, pad):
        return lax.conv_general_dilated(
            x, w, (stride, stride), [(pad, pad), (pad, pad)],
            dimension_numbers=("NCHW", "OIHW", "NCHW"),
            precision=lax.Precision.HIGHEST)

    def bn(x, g, b):
        mean = jnp.mean(x, axis=(0, 2, 3), keepdims=True)
        var = jnp.mean(jnp.square(x - mean), axis=(0, 2, 3), keepdims=True)
        return (x - mean) * lax.rsqrt(var + _EPS) * g.reshape(1, -1, 1, 1) \
            + b.reshape(1, -1, 1, 1)

    lrelu = lambda v: jnp.where(v >= 0, v, _SLOPE * v)
    x = lrelu(conv(x_nchw, params["w1"], 2, 1))
    x = lrelu(bn(conv(x, params["w2"], 2, 1), params["g2"], params["b2"]))
    x = lrelu(bn(conv(x, params["w3"], 2, 1), params["g3"], params["b3"]))
    x = lrelu(bn(conv(x, params["w4"], 2, 1), params["g4"], params["b4"]))
    if model == "DCGAN":
        x = jax.nn.sigmoid(conv(x, params["w5"], 1, 0))
    elif model == "WGAN":
        x = conv(x, params["w5"], 1, 0)
    return x


if __name__ == "__main__":
    key = jax.random.PRNGKey(0)
    k_x, k_p = jax.random.split(key)

    # DCGAN-style small shapes: batch=2, num_c=3, dim=8, spatial 64x64
    # (64x64 -> 4x4 before conv5, as the architecture implies).
    num_c, dim = 3, 8
    x = jax.random.normal(k_x, (2, num_c, 64, 64), jnp.float32)
    params = init_params(k_p, num_c=num_c, dim=dim)

    fwd = jax.jit(lambda xx, pp: discriminator_forward(xx, pp, model="DCGAN"))
    out = jax.block_until_ready(fwd(x, params))
    assert out.shape == (2, 1, 1, 1), out.shape

    ref = jax.block_until_ready(_ref_forward(x, params, model="DCGAN"))
    err = float(jnp.max(jnp.abs(out - ref)))
    assert jnp.all(jnp.isfinite(out)) and err < 5e-2, f"max abs err {err}"

    print("KERNEL_OK")
</pallas_src>

<mosaic_0001>
module attributes {stable_mosaic.version = 11 : i64} {
  func.func @_conv1_kernel(%arg0: i32, %arg1: i32, %arg2: memref<1x2x1056x32xbf16, #tpu.memory_space<vmem>>, %arg3: memref<8x128xbf16, #tpu.memory_space<vmem>>, %arg4: memref<8x512xf32, #tpu.memory_space<vmem>>) attributes {dimension_semantics = [#tpu.dimension_semantics<parallel>, #tpu.dimension_semantics<parallel>], iteration_bounds = array<i64: 2, 2>, scalar_prefetch = 0 : i64, scratch_operands = 0 : i64, tpu.core_type = #tpu.core_type<tc>, window_params = [{transform_indices = @transform_0, window_bounds = array<i64: 1, 2, 1056, 32>}, {pipeline_mode = #tpu.pipeline_mode<synchronous>, transform_indices = @transform_1, window_bounds = array<i64: 8, 128>}, {transform_indices = @transform_2, window_bounds = array<i64: 8, 512>}]} {
    %c512_i32 = arith.constant 512 : i32
    %0 = arith.muli %arg1, %c512_i32 : i32
    %1 = tpu.assume_multiple %0, 512 : i32
    %c0_i32 = arith.constant 0 : i32
    %2 = arith.addi %1, %c0_i32 : i32
    %c0 = arith.constant 0 : index
    %c0_0 = arith.constant 0 : index
    %3 = arith.index_cast %2 : i32 to index
    %c0_1 = arith.constant 0 : index
    %4 = vector.load %arg2[%c0, %c0_0, %3, %c0_1] : memref<1x2x1056x32xbf16, #tpu.memory_space<vmem>>, vector<1x1x512x32xbf16>
    %5 = vector.shape_cast %4 : vector<1x1x512x32xbf16> to vector<512x32xbf16>
    %c0_i32_2 = arith.constant 0 : i32
    %6 = arith.addi %1, %c0_i32_2 : i32
    %c0_3 = arith.constant 0 : index
    %c1 = arith.constant 1 : index
    %7 = arith.index_cast %6 : i32 to index
    %c0_4 = arith.constant 0 : index
    %8 = vector.load %arg2[%c0_3, %c1, %7, %c0_4] : memref<1x2x1056x32xbf16, #tpu.memory_space<vmem>>, vector<1x1x512x32xbf16>
    %9 = vector.shape_cast %8 : vector<1x1x512x32xbf16> to vector<512x32xbf16>
    %c32_i32 = arith.constant 32 : i32
    %10 = arith.addi %1, %c32_i32 : i32
    %c0_5 = arith.constant 0 : index
    %c0_6 = arith.constant 0 : index
    %11 = arith.index_cast %10 : i32 to index
    %c0_7 = arith.constant 0 : index
    %12 = vector.load %arg2[%c0_5, %c0_6, %11, %c0_7] : memref<1x2x1056x32xbf16, #tpu.memory_space<vmem>>, vector<1x1x512x32xbf16>
    %13 = vector.shape_cast %12 : vector<1x1x512x32xbf16> to vector<512x32xbf16>
    %c32_i32_8 = arith.constant 32 : i32
    %14 = arith.addi %1, %c32_i32_8 : i32
    %c0_9 = arith.constant 0 : index
    %c1_10 = arith.constant 1 : index
    %15 = arith.index_cast %14 : i32 to index
    %c0_11 = arith.constant 0 : index
    %16 = vector.load %arg2[%c0_9, %c1_10, %15, %c0_11] : memref<1x2x1056x32xbf16, #tpu.memory_space<vmem>>, vector<1x1x512x32xbf16>
    %17 = vector.shape_cast %16 : vector<1x1x512x32xbf16> to vector<512x32xbf16>
    %18 = tpu.concatenate %5, %9, %13, %17 in 1 : vector<512x32xbf16>, vector<512x32xbf16>, vector<512x32xbf16>, vector<512x32xbf16> -> vector<512x128xbf16>
    %c0_12 = arith.constant 0 : index
    %c0_13 = arith.constant 0 : index
    %19 = vector.load %arg3[%c0_12, %c0_13] : memref<8x128xbf16, #tpu.memory_space<vmem>>, vector<8x128xbf16>
    %cst = arith.constant dense<0.000000e+00> : vector<8x512xf32>
    %20 = tpu.matmul %19, %18, %cst {dimension_numbers = #tpu.dot_dimension_numbers<[1], [1], [0], [0], [0, 0, 1, 0], [], []>} : vector<8x128xbf16>, vector<512x128xbf16>, vector<8x512xf32> -> vector<8x512xf32>
    %cst_14 = arith.constant 0.000000e+00 : f32
    %21 = vector.broadcast %cst_14 : f32 to vector<8x512xf32>
    %22 = arith.cmpf oge, %20, %21 : vector<8x512xf32>
    %cst_15 = arith.constant 2.000000e-01 : f32
    %23 = vector.broadcast %cst_15 : f32 to vector<8x512xf32>
    %24 = arith.mulf %23, %20 : vector<8x512xf32>
    %25 = arith.select %22, %20, %24 : vector<8x512xi1>, vector<8x512xf32>
    %c0_16 = arith.constant 0 : index
    %c0_17 = arith.constant 0 : index
    %26 = vector.load %arg4[%c0_16, %c0_17] : memref<8x512xf32, #tpu.memory_space<vmem>>, vector<8x512xf32>
    tpu.vector_store %arg4[%c0_16, %c0_17], %25 {strides = array<i32>} : memref<8x512xf32, #tpu.memory_space<vmem>>, vector<8x512xf32>,
    return
  }
  func.func @transform_0(%arg0: i32, %arg1: i32) -> (i32, i32, i32, i32) {
    %c0_i32 = arith.constant 0 : i32
    %c0_i32_0 = arith.constant 0 : i32
    %c0_i32_1 = arith.constant 0 : i32
    %c0_i32_2 = arith.constant 0 : i32
    return %arg0, %c0_i32, %c0_i32_0, %c0_i32_1 : i32, i32, i32, i32
  }
  func.func @transform_1(%arg0: i32, %arg1: i32) -> (i32, i32) {
    %c0_i32 = arith.constant 0 : i32
    %c0_i32_0 = arith.constant 0 : i32
    %c0_i32_1 = arith.constant 0 : i32
    return %c0_i32, %c0_i32_0 : i32, i32
  }
  func.func @transform_2(%arg0: i32, %arg1: i32) -> (i32, i32) {
    %c2_i32 = arith.constant 2 : i32
    %0 = arith.muli %arg0, %c2_i32 : i32
    %1 = arith.addi %0, %arg1 : i32
    %c0_i32 = arith.constant 0 : i32
    %c0_i32_0 = arith.constant 0 : i32
    return %c0_i32, %1 : i32, i32
  }
}

module attributes {stable_mosaic.version = 11 : i64} {
  func.func @_conv_bn_kernel(%arg0: i32, %arg1: memref<2x2x272x32xbf16, #tpu.memory_space<vmem>>, %arg2: memref<16x128xbf16, #tpu.memory_space<vmem>>, %arg3: memref<16x1xf32, #tpu.memory_space<vmem>>, %arg4: memref<16x1xf32, #tpu.memory_space<vmem>>, %arg5: memref<16x512xf32, #tpu.memory_space<vmem>>) attributes {dimension_semantics = [#tpu.dimension_semantics<arbitrary>], iteration_bounds = array<i64: 1>, scalar_prefetch = 0 : i64, scratch_operands = 0 : i64, tpu.core_type = #tpu.core_type<tc>, window_params = [{pipeline_mode = #tpu.pipeline_mode<synchronous>, transform_indices = @transform_0, window_bounds = array<i64: 2, 2, 272, 32>}, {pipeline_mode = #tpu.pipeline_mode<synchronous>, transform_indices = @transform_1, window_bounds = array<i64: 16, 128>}, {pipeline_mode = #tpu.pipeline_mode<synchronous>, transform_indices = @transform_2, window_bounds = array<i64: 16, 1>}, {pipeline_mode = #tpu.pipeline_mode<synchronous>, transform_indices = @transform_3, window_bounds = array<i64: 16, 1>}, {pipeline_mode = #tpu.pipeline_mode<synchronous>, transform_indices = @transform_4, window_bounds = array<i64: 16, 512>}]} {
    %c0 = arith.constant 0 : index
    %c0_0 = arith.constant 0 : index
    %c0_1 = arith.constant 0 : index
    %c0_2 = arith.constant 0 : index
    %0 = vector.load %arg1[%c0, %c0_0, %c0_1, %c0_2] : memref<2x2x272x32xbf16, #tpu.memory_space<vmem>>, vector<1x1x256x32xbf16>
    %1 = vector.shape_cast %0 : vector<1x1x256x32xbf16> to vector<256x32xbf16>
    %c1 = arith.constant 1 : index
    %c0_3 = arith.constant 0 : index
    %c0_4 = arith.constant 0 : index
    %c0_5 = arith.constant 0 : index
    %2 = vector.load %arg1[%c1, %c0_3, %c0_4, %c0_5] : memref<2x2x272x32xbf16, #tpu.memory_space<vmem>>, vector<1x1x256x32xbf16>
    %3 = vector.shape_cast %2 : vector<1x1x256x32xbf16> to vector<256x32xbf16>
    %4 = tpu.concatenate %1, %3 in 0 : vector<256x32xbf16>, vector<256x32xbf16> -> vector<512x32xbf16>
    %c0_6 = arith.constant 0 : index
    %c1_7 = arith.constant 1 : index
    %c0_8 = arith.constant 0 : index
    %c0_9 = arith.constant 0 : index
    %5 = vector.load %arg1[%c0_6, %c1_7, %c0_8, %c0_9] : memref<2x2x272x32xbf16, #tpu.memory_space<vmem>>, vector<1x1x256x32xbf16>
    %6 = vector.shape_cast %5 : vector<1x1x256x32xbf16> to vector<256x32xbf16>
    %c1_10 = arith.constant 1 : index
    %c1_11 = arith.constant 1 : index
    %c0_12 = arith.constant 0 : index
    %c0_13 = arith.constant 0 : index
    %7 = vector.load %arg1[%c1_10, %c1_11, %c0_12, %c0_13] : memref<2x2x272x32xbf16, #tpu.memory_space<vmem>>, vector<1x1x256x32xbf16>
    %8 = vector.shape_cast %7 : vector<1x1x256x32xbf16> to vector<256x32xbf16>
    %9 = tpu.concatenate %6, %8 in 0 : vector<256x32xbf16>, vector<256x32xbf16> -> vector<512x32xbf16>
    %c0_14 = arith.constant 0 : index
    %c0_15 = arith.constant 0 : index
    %c16 = arith.constant 16 : index
    %c0_16 = arith.constant 0 : index
    %10 = vector.load %arg1[%c0_14, %c0_15, %c16, %c0_16] : memref<2x2x272x32xbf16, #tpu.memory_space<vmem>>, vector<1x1x256x32xbf16>
    %11 = vector.shape_cast %10 : vector<1x1x256x32xbf16> to vector<256x32xbf16>
    %c1_17 = arith.constant 1 : index
    %c0_18 = arith.constant 0 : index
    %c16_19 = arith.constant 16 : index
    %c0_20 = arith.constant 0 : index
    %12 = vector.load %arg1[%c1_17, %c0_18, %c16_19, %c0_20] : memref<2x2x272x32xbf16, #tpu.memory_space<vmem>>, vector<1x1x256x32xbf16>
    %13 = vector.shape_cast %12 : vector<1x1x256x32xbf16> to vector<256x32xbf16>
    %14 = tpu.concatenate %11, %13 in 0 : vector<256x32xbf16>, vector<256x32xbf16> -> vector<512x32xbf16>
    %c0_21 = arith.constant 0 : index
    %c1_22 = arith.constant 1 : index
    %c16_23 = arith.constant 16 : index
    %c0_24 = arith.constant 0 : index
    %15 = vector.load %arg1[%c0_21, %c1_22, %c16_23, %c0_24] : memref<2x2x272x32xbf16, #tpu.memory_space<vmem>>, vector<1x1x256x32xbf16>
    %16 = vector.shape_cast %15 : vector<1x1x256x32xbf16> to vector<256x32xbf16>
    %c1_25 = arith.constant 1 : index
    %c1_26 = arith.constant 1 : index
    %c16_27 = arith.constant 16 : index
    %c0_28 = arith.constant 0 : index
    %17 = vector.load %arg1[%c1_25, %c1_26, %c16_27, %c0_28] : memref<2x2x272x32xbf16, #tpu.memory_space<vmem>>, vector<1x1x256x32xbf16>
    %18 = vector.shape_cast %17 : vector<1x1x256x32xbf16> to vector<256x32xbf16>
    %19 = tpu.concatenate %16, %18 in 0 : vector<256x32xbf16>, vector<256x32xbf16> -> vector<512x32xbf16>
    %20 = tpu.concatenate %4, %9, %14, %19 in 1 : vector<512x32xbf16>, vector<512x32xbf16>, vector<512x32xbf16>, vector<512x32xbf16> -> vector<512x128xbf16>
    %c0_29 = arith.constant 0 : index
    %c0_30 = arith.constant 0 : index
    %21 = vector.load %arg2[%c0_29, %c0_30] : memref<16x128xbf16, #tpu.memory_space<vmem>>, vector<16x128xbf16>
    %cst = arith.constant dense<0.000000e+00> : vector<16x512xf32>
    %22 = tpu.matmul %21, %20, %cst {dimension_numbers = #tpu.dot_dimension_numbers<[1], [1], [0], [0], [0, 0, 1, 0], [], []>} : vector<16x128xbf16>, vector<512x128xbf16>, vector<16x512xf32> -> vector<16x512xf32>
    %cst_31 = arith.constant dense<0.000000e+00> : vector<16xf32>
    %23 = vector.multi_reduction <add>, %22, %cst_31 [1] : vector<16x512xf32> to vector<16xf32>
    %24 = vector.shape_cast %23 : vector<16xf32> to vector<16x1xf32>
    %cst_32 = arith.constant 5.120000e+02 : f32
    %25 = vector.broadcast %cst_32 : f32 to vector<16x1xf32>
    %26 = arith.divf %24, %25 : vector<16x1xf32>
    %27 = vector.broadcast %26 : vector<16x1xf32> to vector<16x512xf32>
    %28 = arith.subf %22, %27 : vector<16x512xf32>
    %29 = arith.mulf %28, %28 : vector<16x512xf32>
    %cst_33 = arith.constant dense<0.000000e+00> : vector<16xf32>
    %30 = vector.multi_reduction <add>, %29, %cst_33 [1] : vector<16x512xf32> to vector<16xf32>
    %31 = vector.shape_cast %30 : vector<16xf32> to vector<16x1xf32>
    %cst_34 = arith.constant 5.120000e+02 : f32
    %32 = vector.broadcast %cst_34 : f32 to vector<16x1xf32>
    %33 = arith.divf %31, %32 : vector<16x1xf32>
    %34 = vector.broadcast %26 : vector<16x1xf32> to vector<16x512xf32>
    %35 = arith.subf %22, %34 : vector<16x512xf32>
    %cst_35 = arith.constant 9.99999974E-6 : f32
    %36 = vector.broadcast %cst_35 : f32 to vector<16x1xf32>
    %37 = arith.addf %33, %36 : vector<16x1xf32>
    %38 = math.rsqrt %37 : vector<16x1xf32>
    %39 = vector.broadcast %38 : vector<16x1xf32> to vector<16x512xf32>
    %40 = arith.mulf %35, %39 : vector<16x512xf32>
    %c0_36 = arith.constant 0 : index
    %c0_37 = arith.constant 0 : index
    %41 = vector.load %arg3[%c0_36, %c0_37] : memref<16x1xf32, #tpu.memory_space<vmem>>, vector<16x1xf32>
    %42 = vector.broadcast %41 : vector<16x1xf32> to vector<16x512xf32>
    %43 = arith.mulf %40, %42 : vector<16x512xf32>
    %c0_38 = arith.constant 0 : index
    %c0_39 = arith.constant 0 : index
    %44 = vector.load %arg4[%c0_38, %c0_39] : memref<16x1xf32, #tpu.memory_space<vmem>>, vector<16x1xf32>
    %45 = vector.broadcast %44 : vector<16x1xf32> to vector<16x512xf32>
    %46 = arith.addf %43, %45 : vector<16x512xf32>
    %cst_40 = arith.constant 0.000000e+00 : f32
    %47 = vector.broadcast %cst_40 : f32 to vector<16x512xf32>
    %48 = arith.cmpf oge, %46, %47 : vector<16x512xf32>
    %cst_41 = arith.constant 2.000000e-01 : f32
    %49 = vector.broadcast %cst_41 : f32 to vector<16x512xf32>
    %50 = arith.mulf %49, %46 : vector<16x512xf32>
    %51 = arith.select %48, %46, %50 : vector<16x512xi1>, vector<16x512xf32>
    %c0_42 = arith.constant 0 : index
    %c0_43 = arith.constant 0 : index
    %52 = vector.load %arg5[%c0_42, %c0_43] : memref<16x512xf32, #tpu.memory_space<vmem>>, vector<16x512xf32>
    tpu.vector_store %arg5[%c0_42, %c0_43], %51 {strides = array<i32>} : memref<16x512xf32, #tpu.memory_space<vmem>>, vector<16x512xf32>,
    return
  }
  func.func @transform_0(%arg0: i32) -> (i32, i32, i32, i32) {
    %c0_i32 = arith.constant 0 : i32
    %c0_i32_0 = arith.constant 0 : i32
    %c0_i32_1 = arith.constant 0 : i32
    %c0_i32_2 = arith.constant 0 : i32
    %c0_i32_3 = arith.constant 0 : i32
    return %c0_i32, %c0_i32_0, %c0_i32_1, %c0_i32_2 : i32, i32, i32, i32
  }
  func.func @transform_1(%arg0: i32) -> (i32, i32) {
    %c0_i32 = arith.constant 0 : i32
    %c0_i32_0 = arith.constant 0 : i32
    %c0_i32_1 = arith.constant 0 : i32
    return %c0_i32, %c0_i32_0 : i32, i32
  }
  func.func @transform_2(%arg0: i32) -> (i32, i32) {
    %c0_i32 = arith.constant 0 : i32
    %c0_i32_0 = arith.constant 0 : i32
    %c0_i32_1 = arith.constant 0 : i32
    return %c0_i32, %c0_i32_0 : i32, i32
  }
  func.func @transform_3(%arg0: i32) -> (i32, i32) {
    %c0_i32 = arith.constant 0 : i32
    %c0_i32_0 = arith.constant 0 : i32
    %c0_i32_1 = arith.constant 0 : i32
    return %c0_i32, %c0_i32_0 : i32, i32
  }
  func.func @transform_4(%arg0: i32) -> (i32, i32) {
    %c0_i32 = arith.constant 0 : i32
    %c0_i32_0 = arith.constant 0 : i32
    %c0_i32_1 = arith.constant 0 : i32
    return %c0_i32, %c0_i32_0 : i32, i32
  }
}

module attributes {stable_mosaic.version = 11 : i64} {
  func.func @_conv_bn_kernel(%arg0: i32, %arg1: memref<2x2x72x64xbf16, #tpu.memory_space<vmem>>, %arg2: memref<32x256xbf16, #tpu.memory_space<vmem>>, %arg3: memref<32x1xf32, #tpu.memory_space<vmem>>, %arg4: memref<32x1xf32, #tpu.memory_space<vmem>>, %arg5: memref<32x128xf32, #tpu.memory_space<vmem>>) attributes {dimension_semantics = [#tpu.dimension_semantics<arbitrary>], iteration_bounds = array<i64: 1>, scalar_prefetch = 0 : i64, scratch_operands = 0 : i64, tpu.core_type = #tpu.core_type<tc>, window_params = [{pipeline_mode = #tpu.pipeline_mode<synchronous>, transform_indices = @transform_0, window_bounds = array<i64: 2, 2, 72, 64>}, {pipeline_mode = #tpu.pipeline_mode<synchronous>, transform_indices = @transform_1, window_bounds = array<i64: 32, 256>}, {pipeline_mode = #tpu.pipeline_mode<synchronous>, transform_indices = @transform_2, window_bounds = array<i64: 32, 1>}, {pipeline_mode = #tpu.pipeline_mode<synchronous>, transform_indices = @transform_3, window_bounds = array<i64: 32, 1>}, {pipeline_mode = #tpu.pipeline_mode<synchronous>, transform_indices = @transform_4, window_bounds = array<i64: 32, 128>}]} {
    %c0 = arith.constant 0 : index
    %c0_0 = arith.constant 0 : index
    %c0_1 = arith.constant 0 : index
    %c0_2 = arith.constant 0 : index
    %0 = vector.load %arg1[%c0, %c0_0, %c0_1, %c0_2] : memref<2x2x72x64xbf16, #tpu.memory_space<vmem>>, vector<1x1x64x64xbf16>
    %1 = vector.shape_cast %0 : vector<1x1x64x64xbf16> to vector<64x64xbf16>
    %c1 = arith.constant 1 : index
    %c0_3 = arith.constant 0 : index
    %c0_4 = arith.constant 0 : index
    %c0_5 = arith.constant 0 : index
    %2 = vector.load %arg1[%c1, %c0_3, %c0_4, %c0_5] : memref<2x2x72x64xbf16, #tpu.memory_space<vmem>>, vector<1x1x64x64xbf16>
    %3 = vector.shape_cast %2 : vector<1x1x64x64xbf16> to vector<64x64xbf16>
    %4 = tpu.concatenate %1, %3 in 0 : vector<64x64xbf16>, vector<64x64xbf16> -> vector<128x64xbf16>
    %c0_6 = arith.constant 0 : index
    %c1_7 = arith.constant 1 : index
    %c0_8 = arith.constant 0 : index
    %c0_9 = arith.constant 0 : index
    %5 = vector.load %arg1[%c0_6, %c1_7, %c0_8, %c0_9] : memref<2x2x72x64xbf16, #tpu.memory_space<vmem>>, vector<1x1x64x64xbf16>
    %6 = vector.shape_cast %5 : vector<1x1x64x64xbf16> to vector<64x64xbf16>
    %c1_10 = arith.constant 1 : index
    %c1_11 = arith.constant 1 : index
    %c0_12 = arith.constant 0 : index
    %c0_13 = arith.constant 0 : index
    %7 = vector.load %arg1[%c1_10, %c1_11, %c0_12, %c0_13] : memref<2x2x72x64xbf16, #tpu.memory_space<vmem>>, vector<1x1x64x64xbf16>
    %8 = vector.shape_cast %7 : vector<1x1x64x64xbf16> to vector<64x64xbf16>
    %9 = tpu.concatenate %6, %8 in 0 : vector<64x64xbf16>, vector<64x64xbf16> -> vector<128x64xbf16>
    %c0_14 = arith.constant 0 : index
    %c0_15 = arith.constant 0 : index
    %c8 = arith.constant 8 : index
    %c0_16 = arith.constant 0 : index
    %10 = vector.load %arg1[%c0_14, %c0_15, %c8, %c0_16] : memref<2x2x72x64xbf16, #tpu.memory_space<vmem>>, vector<1x1x64x64xbf16>
    %11 = vector.shape_cast %10 : vector<1x1x64x64xbf16> to vector<64x64xbf16>
    %c1_17 = arith.constant 1 : index
    %c0_18 = arith.constant 0 : index
    %c8_19 = arith.constant 8 : index
    %c0_20 = arith.constant 0 : index
    %12 = vector.load %arg1[%c1_17, %c0_18, %c8_19, %c0_20] : memref<2x2x72x64xbf16, #tpu.memory_space<vmem>>, vector<1x1x64x64xbf16>
    %13 = vector.shape_cast %12 : vector<1x1x64x64xbf16> to vector<64x64xbf16>
    %14 = tpu.concatenate %11, %13 in 0 : vector<64x64xbf16>, vector<64x64xbf16> -> vector<128x64xbf16>
    %c0_21 = arith.constant 0 : index
    %c1_22 = arith.constant 1 : index
    %c8_23 = arith.constant 8 : index
    %c0_24 = arith.constant 0 : index
    %15 = vector.load %arg1[%c0_21, %c1_22, %c8_23, %c0_24] : memref<2x2x72x64xbf16, #tpu.memory_space<vmem>>, vector<1x1x64x64xbf16>
    %16 = vector.shape_cast %15 : vector<1x1x64x64xbf16> to vector<64x64xbf16>
    %c1_25 = arith.constant 1 : index
    %c1_26 = arith.constant 1 : index
    %c8_27 = arith.constant 8 : index
    %c0_28 = arith.constant 0 : index
    %17 = vector.load %arg1[%c1_25, %c1_26, %c8_27, %c0_28] : memref<2x2x72x64xbf16, #tpu.memory_space<vmem>>, vector<1x1x64x64xbf16>
    %18 = vector.shape_cast %17 : vector<1x1x64x64xbf16> to vector<64x64xbf16>
    %19 = tpu.concatenate %16, %18 in 0 : vector<64x64xbf16>, vector<64x64xbf16> -> vector<128x64xbf16>
    %20 = tpu.concatenate %4, %9, %14, %19 in 1 : vector<128x64xbf16>, vector<128x64xbf16>, vector<128x64xbf16>, vector<128x64xbf16> -> vector<128x256xbf16>
    %c0_29 = arith.constant 0 : index
    %c0_30 = arith.constant 0 : index
    %21 = vector.load %arg2[%c0_29, %c0_30] : memref<32x256xbf16, #tpu.memory_space<vmem>>, vector<32x256xbf16>
    %cst = arith.constant dense<0.000000e+00> : vector<32x128xf32>
    %22 = tpu.matmul %21, %20, %cst {dimension_numbers = #tpu.dot_dimension_numbers<[1], [1], [0], [0], [0, 0, 1, 0], [], []>} : vector<32x256xbf16>, vector<128x256xbf16>, vector<32x128xf32> -> vector<32x128xf32>
    %cst_31 = arith.constant dense<0.000000e+00> : vector<32xf32>
    %23 = vector.multi_reduction <add>, %22, %cst_31 [1] : vector<32x128xf32> to vector<32xf32>
    %24 = vector.shape_cast %23 : vector<32xf32> to vector<32x1xf32>
    %cst_32 = arith.constant 1.280000e+02 : f32
    %25 = vector.broadcast %cst_32 : f32 to vector<32x1xf32>
    %26 = arith.divf %24, %25 : vector<32x1xf32>
    %27 = vector.broadcast %26 : vector<32x1xf32> to vector<32x128xf32>
    %28 = arith.subf %22, %27 : vector<32x128xf32>
    %29 = arith.mulf %28, %28 : vector<32x128xf32>
    %cst_33 = arith.constant dense<0.000000e+00> : vector<32xf32>
    %30 = vector.multi_reduction <add>, %29, %cst_33 [1] : vector<32x128xf32> to vector<32xf32>
    %31 = vector.shape_cast %30 : vector<32xf32> to vector<32x1xf32>
    %cst_34 = arith.constant 1.280000e+02 : f32
    %32 = vector.broadcast %cst_34 : f32 to vector<32x1xf32>
    %33 = arith.divf %31, %32 : vector<32x1xf32>
    %34 = vector.broadcast %26 : vector<32x1xf32> to vector<32x128xf32>
    %35 = arith.subf %22, %34 : vector<32x128xf32>
    %cst_35 = arith.constant 9.99999974E-6 : f32
    %36 = vector.broadcast %cst_35 : f32 to vector<32x1xf32>
    %37 = arith.addf %33, %36 : vector<32x1xf32>
    %38 = math.rsqrt %37 : vector<32x1xf32>
    %39 = vector.broadcast %38 : vector<32x1xf32> to vector<32x128xf32>
    %40 = arith.mulf %35, %39 : vector<32x128xf32>
    %c0_36 = arith.constant 0 : index
    %c0_37 = arith.constant 0 : index
    %41 = vector.load %arg3[%c0_36, %c0_37] : memref<32x1xf32, #tpu.memory_space<vmem>>, vector<32x1xf32>
    %42 = vector.broadcast %41 : vector<32x1xf32> to vector<32x128xf32>
    %43 = arith.mulf %40, %42 : vector<32x128xf32>
    %c0_38 = arith.constant 0 : index
    %c0_39 = arith.constant 0 : index
    %44 = vector.load %arg4[%c0_38, %c0_39] : memref<32x1xf32, #tpu.memory_space<vmem>>, vector<32x1xf32>
    %45 = vector.broadcast %44 : vector<32x1xf32> to vector<32x128xf32>
    %46 = arith.addf %43, %45 : vector<32x128xf32>
    %cst_40 = arith.constant 0.000000e+00 : f32
    %47 = vector.broadcast %cst_40 : f32 to vector<32x128xf32>
    %48 = arith.cmpf oge, %46, %47 : vector<32x128xf32>
    %cst_41 = arith.constant 2.000000e-01 : f32
    %49 = vector.broadcast %cst_41 : f32 to vector<32x128xf32>
    %50 = arith.mulf %49, %46 : vector<32x128xf32>
    %51 = arith.select %48, %46, %50 : vector<32x128xi1>, vector<32x128xf32>
    %c0_42 = arith.constant 0 : index
    %c0_43 = arith.constant 0 : index
    %52 = vector.load %arg5[%c0_42, %c0_43] : memref<32x128xf32, #tpu.memory_space<vmem>>, vector<32x128xf32>
    tpu.vector_store %arg5[%c0_42, %c0_43], %51 {strides = array<i32>} : memref<32x128xf32, #tpu.memory_space<vmem>>, vector<32x128xf32>,
    return
  }
  func.func @transform_0(%arg0: i32) -> (i32, i32, i32, i32) {
    %c0_i32 = arith.constant 0 : i32
    %c0_i32_0 = arith.constant 0 : i32
    %c0_i32_1 = arith.constant 0 : i32
    %c0_i32_2 = arith.constant 0 : i32
    %c0_i32_3 = arith.constant 0 : i32
    return %c0_i32, %c0_i32_0, %c0_i32_1, %c0_i32_2 : i32, i32, i32, i32
  }
  func.func @transform_1(%arg0: i32) -> (i32, i32) {
    %c0_i32 = arith.constant 0 : i32
    %c0_i32_0 = arith.constant 0 : i32
    %c0_i32_1 = arith.constant 0 : i32
    return %c0_i32, %c0_i32_0 : i32, i32
  }
  func.func @transform_2(%arg0: i32) -> (i32, i32) {
    %c0_i32 = arith.constant 0 : i32
    %c0_i32_0 = arith.constant 0 : i32
    %c0_i32_1 = arith.constant 0 : i32
    return %c0_i32, %c0_i32_0 : i32, i32
  }
  func.func @transform_3(%arg0: i32) -> (i32, i32) {
    %c0_i32 = arith.constant 0 : i32
    %c0_i32_0 = arith.constant 0 : i32
    %c0_i32_1 = arith.constant 0 : i32
    return %c0_i32, %c0_i32_0 : i32, i32
  }
  func.func @transform_4(%arg0: i32) -> (i32, i32) {
    %c0_i32 = arith.constant 0 : i32
    %c0_i32_0 = arith.constant 0 : i32
    %c0_i32_1 = arith.constant 0 : i32
    return %c0_i32, %c0_i32_0 : i32, i32
  }
}

module attributes {stable_mosaic.version = 11 : i64} {
  func.func @_conv45_kernel(%arg0: i32, %arg1: memref<2x2x20x128xbf16, #tpu.memory_space<vmem>>, %arg2: memref<64x512xbf16, #tpu.memory_space<vmem>>, %arg3: memref<64x1xf32, #tpu.memory_space<vmem>>, %arg4: memref<64x1xf32, #tpu.memory_space<vmem>>, %arg5: memref<64x32xf32, #tpu.memory_space<vmem>>, %arg6: memref<32x2xf32, #tpu.memory_space<vmem>>, %arg7: memref<1x2xf32, #tpu.memory_space<vmem>>) attributes {dimension_semantics = [#tpu.dimension_semantics<arbitrary>], iteration_bounds = array<i64: 1>, scalar_prefetch = 0 : i64, scratch_operands = 0 : i64, tpu.core_type = #tpu.core_type<tc>, window_params = [{pipeline_mode = #tpu.pipeline_mode<synchronous>, transform_indices = @transform_0, window_bounds = array<i64: 2, 2, 20, 128>}, {pipeline_mode = #tpu.pipeline_mode<synchronous>, transform_indices = @transform_1, window_bounds = array<i64: 64, 512>}, {pipeline_mode = #tpu.pipeline_mode<synchronous>, transform_indices = @transform_2, window_bounds = array<i64: 64, 1>}, {pipeline_mode = #tpu.pipeline_mode<synchronous>, transform_indices = @transform_3, window_bounds = array<i64: 64, 1>}, {pipeline_mode = #tpu.pipeline_mode<synchronous>, transform_indices = @transform_4, window_bounds = array<i64: 64, 32>}, {pipeline_mode = #tpu.pipeline_mode<synchronous>, transform_indices = @transform_5, window_bounds = array<i64: 32, 2>}, {pipeline_mode = #tpu.pipeline_mode<synchronous>, transform_indices = @transform_6, window_bounds = array<i64: 1, 2>}]} {
    %c0 = arith.constant 0 : index
    %c0_0 = arith.constant 0 : index
    %c0_1 = arith.constant 0 : index
    %c0_2 = arith.constant 0 : index
    %0 = vector.load %arg1[%c0, %c0_0, %c0_1, %c0_2] : memref<2x2x20x128xbf16, #tpu.memory_space<vmem>>, vector<1x1x16x128xbf16>
    %1 = vector.shape_cast %0 : vector<1x1x16x128xbf16> to vector<16x128xbf16>
    %c1 = arith.constant 1 : index
    %c0_3 = arith.constant 0 : index
    %c0_4 = arith.constant 0 : index
    %c0_5 = arith.constant 0 : index
    %2 = vector.load %arg1[%c1, %c0_3, %c0_4, %c0_5] : memref<2x2x20x128xbf16, #tpu.memory_space<vmem>>, vector<1x1x16x128xbf16>
    %3 = vector.shape_cast %2 : vector<1x1x16x128xbf16> to vector<16x128xbf16>
    %4 = tpu.concatenate %1, %3 in 0 : vector<16x128xbf16>, vector<16x128xbf16> -> vector<32x128xbf16>
    %c0_6 = arith.constant 0 : index
    %c1_7 = arith.constant 1 : index
    %c0_8 = arith.constant 0 : index
    %c0_9 = arith.constant 0 : index
    %5 = vector.load %arg1[%c0_6, %c1_7, %c0_8, %c0_9] : memref<2x2x20x128xbf16, #tpu.memory_space<vmem>>, vector<1x1x16x128xbf16>
    %6 = vector.shape_cast %5 : vector<1x1x16x128xbf16> to vector<16x128xbf16>
    %c1_10 = arith.constant 1 : index
    %c1_11 = arith.constant 1 : index
    %c0_12 = arith.constant 0 : index
    %c0_13 = arith.constant 0 : index
    %7 = vector.load %arg1[%c1_10, %c1_11, %c0_12, %c0_13] : memref<2x2x20x128xbf16, #tpu.memory_space<vmem>>, vector<1x1x16x128xbf16>
    %8 = vector.shape_cast %7 : vector<1x1x16x128xbf16> to vector<16x128xbf16>
    %9 = tpu.concatenate %6, %8 in 0 : vector<16x128xbf16>, vector<16x128xbf16> -> vector<32x128xbf16>
    %c0_14 = arith.constant 0 : index
    %c0_15 = arith.constant 0 : index
    %c4 = arith.constant 4 : index
    %c0_16 = arith.constant 0 : index
    %10 = vector.load %arg1[%c0_14, %c0_15, %c4, %c0_16] : memref<2x2x20x128xbf16, #tpu.memory_space<vmem>>, vector<1x1x16x128xbf16>
    %11 = vector.shape_cast %10 : vector<1x1x16x128xbf16> to vector<16x128xbf16>
    %c1_17 = arith.constant 1 : index
    %c0_18 = arith.constant 0 : index
    %c4_19 = arith.constant 4 : index
    %c0_20 = arith.constant 0 : index
    %12 = vector.load %arg1[%c1_17, %c0_18, %c4_19, %c0_20] : memref<2x2x20x128xbf16, #tpu.memory_space<vmem>>, vector<1x1x16x128xbf16>
    %13 = vector.shape_cast %12 : vector<1x1x16x128xbf16> to vector<16x128xbf16>
    %14 = tpu.concatenate %11, %13 in 0 : vector<16x128xbf16>, vector<16x128xbf16> -> vector<32x128xbf16>
    %c0_21 = arith.constant 0 : index
    %c1_22 = arith.constant 1 : index
    %c4_23 = arith.constant 4 : index
    %c0_24 = arith.constant 0 : index
    %15 = vector.load %arg1[%c0_21, %c1_22, %c4_23, %c0_24] : memref<2x2x20x128xbf16, #tpu.memory_space<vmem>>, vector<1x1x16x128xbf16>
    %16 = vector.shape_cast %15 : vector<1x1x16x128xbf16> to vector<16x128xbf16>
    %c1_25 = arith.constant 1 : index
    %c1_26 = arith.constant 1 : index
    %c4_27 = arith.constant 4 : index
    %c0_28 = arith.constant 0 : index
    %17 = vector.load %arg1[%c1_25, %c1_26, %c4_27, %c0_28] : memref<2x2x20x128xbf16, #tpu.memory_space<vmem>>, vector<1x1x16x128xbf16>
    %18 = vector.shape_cast %17 : vector<1x1x16x128xbf16> to vector<16x128xbf16>
    %19 = tpu.concatenate %16, %18 in 0 : vector<16x128xbf16>, vector<16x128xbf16> -> vector<32x128xbf16>
    %20 = tpu.concatenate %4, %9, %14, %19 in 1 : vector<32x128xbf16>, vector<32x128xbf16>, vector<32x128xbf16>, vector<32x128xbf16> -> vector<32x512xbf16>
    %c0_29 = arith.constant 0 : index
    %c0_30 = arith.constant 0 : index
    %21 = vector.load %arg2[%c0_29, %c0_30] : memref<64x512xbf16, #tpu.memory_space<vmem>>, vector<64x512xbf16>
    %cst = arith.constant dense<0.000000e+00> : vector<64x32xf32>
    %22 = tpu.matmul %21, %20, %cst {dimension_numbers = #tpu.dot_dimension_numbers<[1], [1], [0], [0], [0, 0, 1, 0], [], []>} : vector<64x512xbf16>, vector<32x512xbf16>, vector<64x32xf32> -> vector<64x32xf32>
    %cst_31 = arith.constant dense<0.000000e+00> : vector<64xf32>
    %23 = vector.multi_reduction <add>, %22, %cst_31 [1] : vector<64x32xf32> to vector<64xf32>
    %24 = vector.shape_cast %23 : vector<64xf32> to vector<64x1xf32>
    %cst_32 = arith.constant 3.200000e+01 : f32
    %25 = vector.broadcast %cst_32 : f32 to vector<64x1xf32>
    %26 = arith.divf %24, %25 : vector<64x1xf32>
    %27 = vector.broadcast %26 : vector<64x1xf32> to vector<64x32xf32>
    %28 = arith.subf %22, %27 : vector<64x32xf32>
    %29 = arith.mulf %28, %28 : vector<64x32xf32>
    %cst_33 = arith.constant dense<0.000000e+00> : vector<64xf32>
    %30 = vector.multi_reduction <add>, %29, %cst_33 [1] : vector<64x32xf32> to vector<64xf32>
    %31 = vector.shape_cast %30 : vector<64xf32> to vector<64x1xf32>
    %cst_34 = arith.constant 3.200000e+01 : f32
    %32 = vector.broadcast %cst_34 : f32 to vector<64x1xf32>
    %33 = arith.divf %31, %32 : vector<64x1xf32>
    %34 = vector.broadcast %26 : vector<64x1xf32> to vector<64x32xf32>
    %35 = arith.subf %22, %34 : vector<64x32xf32>
    %cst_35 = arith.constant 9.99999974E-6 : f32
    %36 = vector.broadcast %cst_35 : f32 to vector<64x1xf32>
    %37 = arith.addf %33, %36 : vector<64x1xf32>
    %38 = math.rsqrt %37 : vector<64x1xf32>
    %39 = vector.broadcast %38 : vector<64x1xf32> to vector<64x32xf32>
    %40 = arith.mulf %35, %39 : vector<64x32xf32>
    %c0_36 = arith.constant 0 : index
    %c0_37 = arith.constant 0 : index
    %41 = vector.load %arg3[%c0_36, %c0_37] : memref<64x1xf32, #tpu.memory_space<vmem>>, vector<64x1xf32>
    %42 = vector.broadcast %41 : vector<64x1xf32> to vector<64x32xf32>
    %43 = arith.mulf %40, %42 : vector<64x32xf32>
    %c0_38 = arith.constant 0 : index
    %c0_39 = arith.constant 0 : index
    %44 = vector.load %arg4[%c0_38, %c0_39] : memref<64x1xf32, #tpu.memory_space<vmem>>, vector<64x1xf32>
    %45 = vector.broadcast %44 : vector<64x1xf32> to vector<64x32xf32>
    %46 = arith.addf %43, %45 : vector<64x32xf32>
    %cst_40 = arith.constant 0.000000e+00 : f32
    %47 = vector.broadcast %cst_40 : f32 to vector<64x32xf32>
    %48 = arith.cmpf oge, %46, %47 : vector<64x32xf32>
    %cst_41 = arith.constant 2.000000e-01 : f32
    %49 = vector.broadcast %cst_41 : f32 to vector<64x32xf32>
    %50 = arith.mulf %49, %46 : vector<64x32xf32>
    %51 = arith.select %48, %46, %50 : vector<64x32xi1>, vector<64x32xf32>
    %c0_42 = arith.constant 0 : index
    %c0_43 = arith.constant 0 : index
    %52 = vector.load %arg5[%c0_42, %c0_43] : memref<64x32xf32, #tpu.memory_space<vmem>>, vector<64x32xf32>
    %53 = arith.mulf %52, %51 : vector<64x32xf32>
    %cst_44 = arith.constant dense<0.000000e+00> : vector<32xf32>
    %54 = vector.multi_reduction <add>, %53, %cst_44 [0] : vector<64x32xf32> to vector<32xf32>
    %55 = vector.shape_cast %54 : vector<32xf32> to vector<1x32xf32>
    %c0_45 = arith.constant 0 : index
    %c0_46 = arith.constant 0 : index
    %56 = vector.load %arg6[%c0_45, %c0_46] : memref<32x2xf32, #tpu.memory_space<vmem>>, vector<32x2xf32>
    %cst_47 = arith.constant dense<0.000000e+00> : vector<1x2xf32>
    %57 = tpu.matmul %55, %56, %cst_47 {dimension_numbers = #tpu.dot_dimension_numbers<[1], [0], [0], [1], [0, 0, 1, 1], [], []>} : vector<1x32xf32>, vector<32x2xf32>, vector<1x2xf32> -> vector<1x2xf32>
    %cst_48 = arith.constant 0.000000e+00 : f32
    %58 = vector.broadcast %cst_48 : f32 to vector<1x2xf32>
    %59 = arith.subf %58, %57 : vector<1x2xf32>
    %60 = math.exp %59 : vector<1x2xf32>
    %cst_49 = arith.constant 1.000000e+00 : f32
    %61 = vector.broadcast %cst_49 : f32 to vector<1x2xf32>
    %62 = arith.addf %61, %60 : vector<1x2xf32>
    %63 = tpu.reciprocal %62 {approx = true} : vector<1x2xf32> -> vector<1x2xf32>
    %c0_50 = arith.constant 0 : index
    %c0_51 = arith.constant 0 : index
    %64 = vector.load %arg7[%c0_50, %c0_51] : memref<1x2xf32, #tpu.memory_space<vmem>>, vector<1x2xf32>
    tpu.vector_store %arg7[%c0_50, %c0_51], %63 {strides = array<i32>} : memref<1x2xf32, #tpu.memory_space<vmem>>, vector<1x2xf32>,
    return
  }
  func.func @transform_0(%arg0: i32) -> (i32, i32, i32, i32) {
    %c0_i32 = arith.constant 0 : i32
    %c0_i32_0 = arith.constant 0 : i32
    %c0_i32_1 = arith.constant 0 : i32
    %c0_i32_2 = arith.constant 0 : i32
    %c0_i32_3 = arith.constant 0 : i32
    return %c0_i32, %c0_i32_0, %c0_i32_1, %c0_i32_2 : i32, i32, i32, i32
  }
  func.func @transform_1(%arg0: i32) -> (i32, i32) {
    %c0_i32 = arith.constant 0 : i32
    %c0_i32_0 = arith.constant 0 : i32
    %c0_i32_1 = arith.constant 0 : i32
    return %c0_i32, %c0_i32_0 : i32, i32
  }
  func.func @transform_2(%arg0: i32) -> (i32, i32) {
    %c0_i32 = arith.constant 0 : i32
    %c0_i32_0 = arith.constant 0 : i32
    %c0_i32_1 = arith.constant 0 : i32
    return %c0_i32, %c0_i32_0 : i32, i32
  }
  func.func @transform_3(%arg0: i32) -> (i32, i32) {
    %c0_i32 = arith.constant 0 : i32
    %c0_i32_0 = arith.constant 0 : i32
    %c0_i32_1 = arith.constant 0 : i32
    return %c0_i32, %c0_i32_0 : i32, i32
  }
  func.func @transform_4(%arg0: i32) -> (i32, i32) {
    %c0_i32 = arith.constant 0 : i32
    %c0_i32_0 = arith.constant 0 : i32
    %c0_i32_1 = arith.constant 0 : i32
    return %c0_i32, %c0_i32_0 : i32, i32
  }
  func.func @transform_5(%arg0: i32) -> (i32, i32) {
    %c0_i32 = arith.constant 0 : i32
    %c0_i32_0 = arith.constant 0 : i32
    %c0_i32_1 = arith.constant 0 : i32
    return %c0_i32, %c0_i32_0 : i32, i32
  }
  func.func @transform_6(%arg0: i32) -> (i32, i32) {
    %c0_i32 = arith.constant 0 : i32
    %c0_i32_0 = arith.constant 0 : i32
    %c0_i32_1 = arith.constant 0 : i32
    return %c0_i32, %c0_i32_0 : i32, i32
  }
}

</mosaic_0001>

<llo_original>
// kernel: _lambda_.4
$region0: #{_lambda_.4}
  #allocation0 [shape = 'u32[]', space=smem, size = 0x4, offset = 0x4, fixed_abs, tag = 'smem constant byte address 0x4 - core index']
  #allocation1 [shape = 'u32[144,128]{1,0:T(1,128)}', space=vmem, size = 0x12000, scoped, tag = 'internal scratch']
  %s0 = inlined_call_operand.vmem [shape: bf16[2,2,1056,32], index: 0, kind: input, shape index: {}]
  %s1 = inlined_call_operand.vmem [shape: bf16[8,128], index: 1, kind: input, shape index: {}]
  %s2 = inlined_call_operand.vmem [shape: f32[8,2048], index: 2, kind: output, shape index: {}]
  %s3 = sld [smem:[#allocation0]]
  $region41: #{_lambda_.4} parent=0
    _
  %s5 = ssub.s32 1, %s3
  %s6 = scalar_select 0, %s5, %s3
  loop: start=0, step=1, limit=6
  $region2: #{_lambda_.4} parent=0 // loop_pre_header
    _
  $region3: #{_lambda_.4} parent=0 // loop_header
    %s8 = sphi 0, %s12
    %p9 = scmp.ge.s32.totalorder %s8, 6
    %s15 = sphi 0, %s27
    %s16 = sphi 0, %s23
    %s17 = sphi 0, %s15
    %s18 = sphi 0, %s16
    %s19 = sphi 0, %s17
    %s20 = sphi 0, %s18
    %s30 = sphi 0, %s32
    %s33 = sphi 0, %s30
    %s34 = sphi 0, %s33
    %s50 = sphi 0, %s34
    %s54 = sphi 0, %s54
    %s56 = sphi 0, %s54
    %s57 = sphi 0, %s56
    %s71 = sphi 0, %s57
    %s81 = sphi 0, %s83
    %s84 = sphi 0, %s81
    %s85 = sphi 0, %s84
    %s101 = sphi 0, %s85
  $region4: #{_lambda_.4} parent=0 // loop_header_branch
    %11 = sbr.rel (%p9) target = $region8
  $region5: #{_lambda_.4} parent=0 // loop_body
    %s13 = ssub.s32 %s8, 1
    %s14 = ssub.s32 %s8, 2
    %s21 = sadd.s32 1, %s16
    %p22 = scmp.ge.s32.totalorder %s21, 2
    %s23 = scalar_select %p22, 0, %s21
    %s24 = sadd.s32 1, %s15
    %s25 = scalar_select %p22, %s24, %s15
    %p26 = scmp.ge.s32.totalorder %s25, 2
    %s27 = scalar_select %p26, 0, %s25
    %s28 = ssub.s32 %s15, %s27
    %p29 = scmp.eq.s32.totalorder %s28, 0
    %s31 = sadd.s32 %s30, 1
    %s32 = scalar_select %p29, %s30, %s31
    %p35 = pneg %p29
    %p36 = scmp.eq.s32.totalorder %s8, 3
    %p37 = por %p35, %p36
    %p38 = scmp.ne.s32.totalorder %s30, %s33
    %p39 = scmp.eq.s32.totalorder %s8, 0
    %p40 = por %p38, %p39
    %p41 = scmp.ne.s32.totalorder %s30, %s33
    %p42 = scmp.eq.s32.totalorder %s13, 3
    %p43 = por %p41, %p42
    %p44 = scmp.ne.s32.totalorder %s33, %s34
    %p45 = scmp.eq.s32.totalorder %s13, 0
    %p46 = por %p44, %p45
    %p47 = scmp.ne.s32.totalorder %s33, %s34
    %p48 = scmp.eq.s32.totalorder %s14, 3
    %p49 = por %p47, %p48
    %p51 = scmp.ne.s32.totalorder %s34, %s50
    %p52 = scmp.eq.s32.totalorder %s14, 0
    %p53 = por %p51, %p52
    %s55 = sadd.s32 %s54, 1
    %p58 = scmp.eq.s32.totalorder %s8, 3
    %p59 = scmp.ne.s32.totalorder %s54, %s56
    %p60 = scmp.eq.s32.totalorder %s8, 0
    %p61 = por %p59, %p60
    %p62 = scmp.ne.s32.totalorder %s54, %s56
    %p63 = scmp.eq.s32.totalorder %s13, 3
    %p64 = por %p62, %p63
    %p65 = scmp.ne.s32.totalorder %s56, %s57
    %p66 = scmp.eq.s32.totalorder %s13, 0
    %p67 = por %p65, %p66
    %p68 = scmp.ne.s32.totalorder %s56, %s57
    %p69 = scmp.eq.s32.totalorder %s14, 3
    %p70 = por %p68, %p69
    %p72 = scmp.ne.s32.totalorder %s57, %s71
    %p73 = scmp.eq.s32.totalorder %s14, 0
    %p74 = por %p72, %p73
    %s75 = smul.u32 %s15, 2
    %s76 = sadd.s32 %s75, %s16
    %s77 = smul.u32 %s27, 2
    %s78 = sadd.s32 %s77, %s23
    %s79 = ssub.s32 %s76, %s78
    %p80 = scmp.eq.s32.totalorder %s79, 0
    %s82 = sadd.s32 %s81, 1
    %s83 = scalar_select %p80, %s81, %s82
    %p86 = pneg %p80
    %p87 = scmp.eq.s32.totalorder %s8, 3
    %p88 = por %p86, %p87
    %p89 = scmp.ne.s32.totalorder %s81, %s84
    %p90 = scmp.eq.s32.totalorder %s8, 0
    %p91 = por %p89, %p90
    %p92 = scmp.ne.s32.totalorder %s81, %s84
    %p93 = scmp.eq.s32.totalorder %s13, 3
    %p94 = por %p92, %p93
    %p95 = scmp.ne.s32.totalorder %s84, %s85
    %p96 = scmp.eq.s32.totalorder %s13, 0
    %p97 = por %p95, %p96
    %p98 = scmp.ne.s32.totalorder %s84, %s85
    %p99 = scmp.eq.s32.totalorder %s14, 3
    %p100 = por %p98, %p99
    %p102 = scmp.ne.s32.totalorder %s85, %s101
    %p103 = scmp.eq.s32.totalorder %s14, 0
    %p104 = por %p102, %p103
    %p105 = scmp.le.s32.totalorder 1, %s8
    %p106 = scmp.lt.s32.totalorder %s8, 5
    %p107 = pnand %p105, %p106
    %p108 = pneg %p107
    // Predicated region
    $region9: #{_lambda_.4} parent=5 // pred_check
      _
    $region10: #{_lambda_.4} parent=5 // pred_check_branch
      %110 = sbr.rel (%p107) target = $region12
    $region11: #{_lambda_.4} parent=5 // pred_region
      %s111 = ssub.s32 %s8, 1
      // Predicated region
      $region13: #{_lambda_.4} parent=11 // pred_check
        %p112 = pneg %p67
      $region14: #{_lambda_.4} parent=11 // pred_check_branch
        %114 = sbr.rel (%p112) target = $region16
      $region15: #{_lambda_.4} parent=11 // pred_region
        _
      $region16: #{_lambda_.4} parent=11 // pred_fallthru
        _
    $region12: #{_lambda_.4} parent=5 // pred_fallthru
      _
    %p115 = scmp.lt.s32.totalorder %s8, 4
    // Predicated region
    $region17: #{_lambda_.4} parent=5 // pred_check
      %p116 = pneg %p115
    $region18: #{_lambda_.4} parent=5 // pred_check_branch
      %118 = sbr.rel (%p116) target = $region20
    $region19: #{_lambda_.4} parent=5 // pred_region
      // Predicated region
      $region21: #{_lambda_.4} parent=19 // pred_check
        %p119 = pneg %p40
      $region22: #{_lambda_.4} parent=19 // pred_check_branch
        %121 = sbr.rel (%p119) target = $region24
      $region23: #{_lambda_.4} parent=19 // pred_region
        %p122 = scmp.lt.s32.totalorder %s15, 1
        %s123 = scalar_select %p122, %s15, 1
        %s124 = smul.addr %s123, 264
        %s125 = smul.addr %s124, 4
        %s126 = scalar_lea.vmem %s0, %s125
      $region24: #{_lambda_.4} parent=19 // pred_fallthru
        _
    $region20: #{_lambda_.4} parent=5 // pred_fallthru
      _
    %p127 = scmp.le.s32.totalorder 1, %s8
    %p128 = scmp.lt.s32.totalorder %s8, 5
    %p129 = pnand %p127, %p128
    %p130 = pneg %p129
    // Predicated region
    $region25: #{_lambda_.4} parent=5 // pred_check
      _
    $region26: #{_lambda_.4} parent=5 // pred_check_branch
      %132 = sbr.rel (%p129) target = $region28
    $region27: #{_lambda_.4} parent=5 // pred_region
      %s133 = ssub.s32 %s8, 1
      %p134 = scmp.lt.s32.totalorder %s17, 1
      %s135 = scalar_select %p134, %s17, 1
      %s136 = smul.addr %s135, 264
      %s137 = smul.addr %s136, 4
      %s138 = scalar_lea.vmem %s0, %s137
      %p139 = pneg %p46
      %p140 = pneg %p43
      %p141 = pneg %p67
      %p142 = pneg %p64
      %p143 = pneg %p97
      %p144 = pneg %p94
      %s145 = smul.u32 %s17, 2
      %s146 = sadd.s32 %s145, %s18
      %s147 = smul.u32 4, %s146
      %p148 = scmp.lt.s32.totalorder %s147, 15
      %s149 = scalar_select %p148, %s147, 15
      %s150 = smul.addr %s149, 8
      %s151 = scalar_lea.vmem %s2, %s150
      %p152 = scmp.lt.s32.totalorder %s17, 1
      %s153 = scalar_select %p152, %s17, 1
      %s154 = smul.addr %s153, 264
      %s155 = smul.addr %s154, 4
      %s156 = scalar_lea.vmem %s0, %s155
      %s157 = smul.u32 %s17, 2
      %s158 = sadd.s32 %s157, %s18
      %s159 = smul.u32 4, %s158
      %p160 = scmp.lt.s32.totalorder %s159, 15
      %s161 = scalar_select %p160, %s159, 15
      %s162 = smul.addr %s161, 8
      %s163 = scalar_lea.vmem %s2, %s162
      %s164 = smul.u32 %s17, 2
      %s165 = sadd.s32 %s164, %s18
      %s166 = smul.u32 4, %s165
      %s168 = smul.u32 %s18, 512
      %s169 = sshra.s32 %s168, 3
      %s170 = sand.u32 %s168, 7
      %s171 = smul.addr %s169, 4
      %s172 = scalar_lea.vmem %s156, %s171
      %v173 = vld [vmem:[%s172] sm:$0xf]
      %v174 = vld [vmem:[%s172 + $0x4] sm:$0xf]
      %v175 = vld [vmem:[%s172 + $0x8] sm:$0xf]
      %v176 = vld [vmem:[%s172 + $0xc] sm:$0xf]
      %v177 = vld [vmem:[%s172 + $0x10] sm:$0xf]
      %v178 = vld [vmem:[%s172 + $0x14] sm:$0xf]
      %v179 = vld [vmem:[%s172 + $0x18] sm:$0xf]
      %v180 = vld [vmem:[%s172 + $0x1c] sm:$0xf]
      %v181 = vld [vmem:[%s172 + $0x20] sm:$0xf]
      %v182 = vld [vmem:[%s172 + $0x24] sm:$0xf]
      %v183 = vld [vmem:[%s172 + $0x28] sm:$0xf]
      %v184 = vld [vmem:[%s172 + $0x2c] sm:$0xf]
      %v185 = vld [vmem:[%s172 + $0x30] sm:$0xf]
      %v186 = vld [vmem:[%s172 + $0x34] sm:$0xf]
      %v187 = vld [vmem:[%s172 + $0x38] sm:$0xf]
      %v188 = vld [vmem:[%s172 + $0x3c] sm:$0xf]
      %v189 = vld [vmem:[%s172 + $0x40] sm:$0xf]
      %v190 = vld [vmem:[%s172 + $0x44] sm:$0xf]
      %v191 = vld [vmem:[%s172 + $0x48] sm:$0xf]
      %v192 = vld [vmem:[%s172 + $0x4c] sm:$0xf]
      %v193 = vld [vmem:[%s172 + $0x50] sm:$0xf]
      %v194 = vld [vmem:[%s172 + $0x54] sm:$0xf]
      %v195 = vld [vmem:[%s172 + $0x58] sm:$0xf]
      %v196 = vld [vmem:[%s172 + $0x5c] sm:$0xf]
      %v197 = vld [vmem:[%s172 + $0x60] sm:$0xf]
      %v198 = vld [vmem:[%s172 + $0x64] sm:$0xf]
      %v199 = vld [vmem:[%s172 + $0x68] sm:$0xf]
      %v200 = vld [vmem:[%s172 + $0x6c] sm:$0xf]
      %v201 = vld [vmem:[%s172 + $0x70] sm:$0xf]
      %v202 = vld [vmem:[%s172 + $0x74] sm:$0xf]
      %v203 = vld [vmem:[%s172 + $0x78] sm:$0xf]
      %v204 = vld [vmem:[%s172 + $0x7c] sm:$0xf]
      %v205 = vld [vmem:[%s172 + $0x80] sm:$0xf]
      %v206 = vld [vmem:[%s172 + $0x84] sm:$0xf]
      %v207 = vld [vmem:[%s172 + $0x88] sm:$0xf]
      %v208 = vld [vmem:[%s172 + $0x8c] sm:$0xf]
      %v209 = vld [vmem:[%s172 + $0x90] sm:$0xf]
      %v210 = vld [vmem:[%s172 + $0x94] sm:$0xf]
      %v211 = vld [vmem:[%s172 + $0x98] sm:$0xf]
      %v212 = vld [vmem:[%s172 + $0x9c] sm:$0xf]
      %v213 = vld [vmem:[%s172 + $0xa0] sm:$0xf]
      %v214 = vld [vmem:[%s172 + $0xa4] sm:$0xf]
      %v215 = vld [vmem:[%s172 + $0xa8] sm:$0xf]
      %v216 = vld [vmem:[%s172 + $0xac] sm:$0xf]
      %v217 = vld [vmem:[%s172 + $0xb0] sm:$0xf]
      %v218 = vld [vmem:[%s172 + $0xb4] sm:$0xf]
      %v219 = vld [vmem:[%s172 + $0xb8] sm:$0xf]
      %v220 = vld [vmem:[%s172 + $0xbc] sm:$0xf]
      %v221 = vld [vmem:[%s172 + $0xc0] sm:$0xf]
      %v222 = vld [vmem:[%s172 + $0xc4] sm:$0xf]
      %v223 = vld [vmem:[%s172 + $0xc8] sm:$0xf]
      %v224 = vld [vmem:[%s172 + $0xcc] sm:$0xf]
      %v225 = vld [vmem:[%s172 + $0xd0] sm:$0xf]
      %v226 = vld [vmem:[%s172 + $0xd4] sm:$0xf]
      %v227 = vld [vmem:[%s172 + $0xd8] sm:$0xf]
      %v228 = vld [vmem:[%s172 + $0xdc] sm:$0xf]
      %v229 = vld [vmem:[%s172 + $0xe0] sm:$0xf]
      %v230 = vld [vmem:[%s172 + $0xe4] sm:$0xf]
      %v231 = vld [vmem:[%s172 + $0xe8] sm:$0xf]
      %v232 = vld [vmem:[%s172 + $0xec] sm:$0xf]
      %v233 = vld [vmem:[%s172 + $0xf0] sm:$0xf]
      %v234 = vld [vmem:[%s172 + $0xf4] sm:$0xf]
      %v235 = vld [vmem:[%s172 + $0xf8] sm:$0xf]
      %v236 = vld [vmem:[%s172 + $0xfc] sm:$0xf]
      %s237 = sadd.s32 %s169, 132
      %s238 = smul.addr %s237, 4
      %s239 = scalar_lea.vmem %s156, %s238
      %v240 = vld [vmem:[%s239] sm:$0xf]
      %v241 = vld [vmem:[%s239 + $0x4] sm:$0xf]
      %v242 = vld [vmem:[%s239 + $0x8] sm:$0xf]
      %v243 = vld [vmem:[%s239 + $0xc] sm:$0xf]
      %v244 = vld [vmem:[%s239 + $0x10] sm:$0xf]
      %v245 = vld [vmem:[%s239 + $0x14] sm:$0xf]
      %v246 = vld [vmem:[%s239 + $0x18] sm:$0xf]
      %v247 = vld [vmem:[%s239 + $0x1c] sm:$0xf]
      %v248 = vld [vmem:[%s239 + $0x20] sm:$0xf]
      %v249 = vld [vmem:[%s239 + $0x24] sm:$0xf]
      %v250 = vld [vmem:[%s239 + $0x28] sm:$0xf]
      %v251 = vld [vmem:[%s239 + $0x2c] sm:$0xf]
      %v252 = vld [vmem:[%s239 + $0x30] sm:$0xf]
      %v253 = vld [vmem:[%s239 + $0x34] sm:$0xf]
      %v254 = vld [vmem:[%s239 + $0x38] sm:$0xf]
      %v255 = vld [vmem:[%s239 + $0x3c] sm:$0xf]
      %v256 = vld [vmem:[%s239 + $0x40] sm:$0xf]
      %v257 = vld [vmem:[%s239 + $0x44] sm:$0xf]
      %v258 = vld [vmem:[%s239 + $0x48] sm:$0xf]
      %v259 = vld [vmem:[%s239 + $0x4c] sm:$0xf]
      %v260 = vld [vmem:[%s239 + $0x50] sm:$0xf]
      %v261 = vld [vmem:[%s239 + $0x54] sm:$0xf]
      %v262 = vld [vmem:[%s239 + $0x58] sm:$0xf]
      %v263 = vld [vmem:[%s239 + $0x5c] sm:$0xf]
      %v264 = vld [vmem:[%s239 + $0x60] sm:$0xf]
      %v265 = vld [vmem:[%s239 + $0x64] sm:$0xf]
      %v266 = vld [vmem:[%s239 + $0x68] sm:$0xf]
      %v267 = vld [vmem:[%s239 + $0x6c] sm:$0xf]
      %v268 = vld [vmem:[%s239 + $0x70] sm:$0xf]
      %v269 = vld [vmem:[%s239 + $0x74] sm:$0xf]
      %v270 = vld [vmem:[%s239 + $0x78] sm:$0xf]
      %v271 = vld [vmem:[%s239 + $0x7c] sm:$0xf]
      %v272 = vld [vmem:[%s239 + $0x80] sm:$0xf]
      %v273 = vld [vmem:[%s239 + $0x84] sm:$0xf]
      %v274 = vld [vmem:[%s239 + $0x88] sm:$0xf]
      %v275 = vld [vmem:[%s239 + $0x8c] sm:$0xf]
      %v276 = vld [vmem:[%s239 + $0x90] sm:$0xf]
      %v277 = vld [vmem:[%s239 + $0x94] sm:$0xf]
      %v278 = vld [vmem:[%s239 + $0x98] sm:$0xf]
      %v279 = vld [vmem:[%s239 + $0x9c] sm:$0xf]
      %v280 = vld [vmem:[%s239 + $0xa0] sm:$0xf]
      %v281 = vld [vmem:[%s239 + $0xa4] sm:$0xf]
      %v282 = vld [vmem:[%s239 + $0xa8] sm:$0xf]
      %v283 = vld [vmem:[%s239 + $0xac] sm:$0xf]
      %v284 = vld [vmem:[%s239 + $0xb0] sm:$0xf]
      %v285 = vld [vmem:[%s239 + $0xb4] sm:$0xf]
      %v286 = vld [vmem:[%s239 + $0xb8] sm:$0xf]
      %v287 = vld [vmem:[%s239 + $0xbc] sm:$0xf]
      %v288 = vld [vmem:[%s239 + $0xc0] sm:$0xf]
      %v289 = vld [vmem:[%s239 + $0xc4] sm:$0xf]
      %v290 = vld [vmem:[%s239 + $0xc8] sm:$0xf]
      %v291 = vld [vmem:[%s239 + $0xcc] sm:$0xf]
      %v292 = vld [vmem:[%s239 + $0xd0] sm:$0xf]
      %v293 = vld [vmem:[%s239 + $0xd4] sm:$0xf]
      %v294 = vld [vmem:[%s239 + $0xd8] sm:$0xf]
      %v295 = vld [vmem:[%s239 + $0xdc] sm:$0xf]
      %v296 = vld [vmem:[%s239 + $0xe0] sm:$0xf]
      %v297 = vld [vmem:[%s239 + $0xe4] sm:$0xf]
      %v298 = vld [vmem:[%s239 + $0xe8] sm:$0xf]
      %v299 = vld [vmem:[%s239 + $0xec] sm:$0xf]
      %v300 = vld [vmem:[%s239 + $0xf0] sm:$0xf]
      %v301 = vld [vmem:[%s239 + $0xf4] sm:$0xf]
      %v302 = vld [vmem:[%s239 + $0xf8] sm:$0xf]
      %v303 = vld [vmem:[%s239 + $0xfc] sm:$0xf]
      %s304 = sadd.s32 %s168, 32
      %s305 = sshra.s32 %s304, 3
      %s306 = sand.u32 %s304, 7
      %s307 = smul.addr %s305, 4
      %s308 = scalar_lea.vmem %s156, %s307
      %v309 = vld [vmem:[%s308] sm:$0xf]
      %v310 = vld [vmem:[%s308 + $0x4] sm:$0xf]
      %v311 = vld [vmem:[%s308 + $0x8] sm:$0xf]
      %v312 = vld [vmem:[%s308 + $0xc] sm:$0xf]
      %v313 = vld [vmem:[%s308 + $0x10] sm:$0xf]
      %v314 = vld [vmem:[%s308 + $0x14] sm:$0xf]
      %v315 = vld [vmem:[%s308 + $0x18] sm:$0xf]
      %v316 = vld [vmem:[%s308 + $0x1c] sm:$0xf]
      %v317 = vld [vmem:[%s308 + $0x20] sm:$0xf]
      %v318 = vld [vmem:[%s308 + $0x24] sm:$0xf]
      %v319 = vld [vmem:[%s308 + $0x28] sm:$0xf]
      %v320 = vld [vmem:[%s308 + $0x2c] sm:$0xf]
      %v321 = vld [vmem:[%s308 + $0x30] sm:$0xf]
      %v322 = vld [vmem:[%s308 + $0x34] sm:$0xf]
      %v323 = vld [vmem:[%s308 + $0x38] sm:$0xf]
      %v324 = vld [vmem:[%s308 + $0x3c] sm:$0xf]
      %v325 = vld [vmem:[%s308 + $0x40] sm:$0xf]
      %v326 = vld [vmem:[%s308 + $0x44] sm:$0xf]
      %v327 = vld [vmem:[%s308 + $0x48] sm:$0xf]
      %v328 = vld [vmem:[%s308 + $0x4c] sm:$0xf]
      %v329 = vld [vmem:[%s308 + $0x50] sm:$0xf]
      %v330 = vld [vmem:[%s308 + $0x54] sm:$0xf]
      %v331 = vld [vmem:[%s308 + $0x58] sm:$0xf]
      %v332 = vld [vmem:[%s308 + $0x5c] sm:$0xf]
      %v333 = vld [vmem:[%s308 + $0x60] sm:$0xf]
      %v334 = vld [vmem:[%s308 + $0x64] sm:$0xf]
      %v335 = vld [vmem:[%s308 + $0x68] sm:$0xf]
      %v336 = vld [vmem:[%s308 + $0x6c] sm:$0xf]
      %v337 = vld [vmem:[%s308 + $0x70] sm:$0xf]
      %v338 = vld [vmem:[%s308 + $0x74] sm:$0xf]
      %v339 = vld [vmem:[%s308 + $0x78] sm:$0xf]
      %v340 = vld [vmem:[%s308 + $0x7c] sm:$0xf]
      %v341 = vld [vmem:[%s308 + $0x80] sm:$0xf]
      %v342 = vld [vmem:[%s308 + $0x84] sm:$0xf]
      %v343 = vld [vmem:[%s308 + $0x88] sm:$0xf]
      %v344 = vld [vmem:[%s308 + $0x8c] sm:$0xf]
      %v345 = vld [vmem:[%s308 + $0x90] sm:$0xf]
      %v346 = vld [vmem:[%s308 + $0x94] sm:$0xf]
      %v347 = vld [vmem:[%s308 + $0x98] sm:$0xf]
      %v348 = vld [vmem:[%s308 + $0x9c] sm:$0xf]
      %v349 = vld [vmem:[%s308 + $0xa0] sm:$0xf]
      %v350 = vld [vmem:[%s308 + $0xa4] sm:$0xf]
      %v351 = vld [vmem:[%s308 + $0xa8] sm:$0xf]
      %v352 = vld [vmem:[%s308 + $0xac] sm:$0xf]
      %v353 = vld [vmem:[%s308 + $0xb0] sm:$0xf]
      %v354 = vld [vmem:[%s308 + $0xb4] sm:$0xf]
      %v355 = vld [vmem:[%s308 + $0xb8] sm:$0xf]
      %v356 = vld [vmem:[%s308 + $0xbc] sm:$0xf]
      %v357 = vld [vmem:[%s308 + $0xc0] sm:$0xf]
      %v358 = vld [vmem:[%s308 + $0xc4] sm:$0xf]
      %v359 = vld [vmem:[%s308 + $0xc8] sm:$0xf]
      %v360 = vld [vmem:[%s308 + $0xcc] sm:$0xf]
      %v361 = vld [vmem:[%s308 + $0xd0] sm:$0xf]
      %v362 = vld [vmem:[%s308 + $0xd4] sm:$0xf]
      %v363 = vld [vmem:[%s308 + $0xd8] sm:$0xf]
      %v364 = vld [vmem:[%s308 + $0xdc] sm:$0xf]
      %v365 = vld [vmem:[%s308 + $0xe0] sm:$0xf]
      %v366 = vld [vmem:[%s308 + $0xe4] sm:$0xf]
      %v367 = vld [vmem:[%s308 + $0xe8] sm:$0xf]
      %v368 = vld [vmem:[%s308 + $0xec] sm:$0xf]
      %v369 = vld [vmem:[%s308 + $0xf0] sm:$0xf]
      %v370 = vld [vmem:[%s308 + $0xf4] sm:$0xf]
      %v371 = vld [vmem:[%s308 + $0xf8] sm:$0xf]
      %v372 = vld [vmem:[%s308 + $0xfc] sm:$0xf]
      %s373 = sadd.s32 %s305, 132
      %s374 = smul.addr %s373, 4
      %s375 = scalar_lea.vmem %s156, %s374
      %v376 = vld [vmem:[%s375] sm:$0xf]
      %v377 = vld [vmem:[%s375 + $0x4] sm:$0xf]
      %v378 = vld [vmem:[%s375 + $0x8] sm:$0xf]
      %v379 = vld [vmem:[%s375 + $0xc] sm:$0xf]
      %v380 = vld [vmem:[%s375 + $0x10] sm:$0xf]
      %v381 = vld [vmem:[%s375 + $0x14] sm:$0xf]
      %v382 = vld [vmem:[%s375 + $0x18] sm:$0xf]
      %v383 = vld [vmem:[%s375 + $0x1c] sm:$0xf]
      %v384 = vld [vmem:[%s375 + $0x20] sm:$0xf]
      %v385 = vld [vmem:[%s375 + $0x24] sm:$0xf]
      %v386 = vld [vmem:[%s375 + $0x28] sm:$0xf]
      %v387 = vld [vmem:[%s375 + $0x2c] sm:$0xf]
      %v388 = vld [vmem:[%s375 + $0x30] sm:$0xf]
      %v389 = vld [vmem:[%s375 + $0x34] sm:$0xf]
      %v390 = vld [vmem:[%s375 + $0x38] sm:$0xf]
      %v391 = vld [vmem:[%s375 + $0x3c] sm:$0xf]
      %v392 = vld [vmem:[%s375 + $0x40] sm:$0xf]
      %v393 = vld [vmem:[%s375 + $0x44] sm:$0xf]
      %v394 = vld [vmem:[%s375 + $0x48] sm:$0xf]
      %v395 = vld [vmem:[%s375 + $0x4c] sm:$0xf]
      %v396 = vld [vmem:[%s375 + $0x50] sm:$0xf]
      %v397 = vld [vmem:[%s375 + $0x54] sm:$0xf]
      %v398 = vld [vmem:[%s375 + $0x58] sm:$0xf]
      %v399 = vld [vmem:[%s375 + $0x5c] sm:$0xf]
      %v400 = vld [vmem:[%s375 + $0x60] sm:$0xf]
      %v401 = vld [vmem:[%s375 + $0x64] sm:$0xf]
      %v402 = vld [vmem:[%s375 + $0x68] sm:$0xf]
      %v403 = vld [vmem:[%s375 + $0x6c] sm:$0xf]
      %v404 = vld [vmem:[%s375 + $0x70] sm:$0xf]
      %v405 = vld [vmem:[%s375 + $0x74] sm:$0xf]
      %v406 = vld [vmem:[%s375 + $0x78] sm:$0xf]
      %v407 = vld [vmem:[%s375 + $0x7c] sm:$0xf]
      %v408 = vld [vmem:[%s375 + $0x80] sm:$0xf]
      %v409 = vld [vmem:[%s375 + $0x84] sm:$0xf]
      %v410 = vld [vmem:[%s375 + $0x88] sm:$0xf]
      %v411 = vld [vmem:[%s375 + $0x8c] sm:$0xf]
      %v412 = vld [vmem:[%s375 + $0x90] sm:$0xf]
      %v413 = vld [vmem:[%s375 + $0x94] sm:$0xf]
      %v414 = vld [vmem:[%s375 + $0x98] sm:$0xf]
      %v415 = vld [vmem:[%s375 + $0x9c] sm:$0xf]
      %v416 = vld [vmem:[%s375 + $0xa0] sm:$0xf]
      %v417 = vld [vmem:[%s375 + $0xa4] sm:$0xf]
      %v418 = vld [vmem:[%s375 + $0xa8] sm:$0xf]
      %v419 = vld [vmem:[%s375 + $0xac] sm:$0xf]
      %v420 = vld [vmem:[%s375 + $0xb0] sm:$0xf]
      %v421 = vld [vmem:[%s375 + $0xb4] sm:$0xf]
      %v422 = vld [vmem:[%s375 + $0xb8] sm:$0xf]
      %v423 = vld [vmem:[%s375 + $0xbc] sm:$0xf]
      %v424 = vld [vmem:[%s375 + $0xc0] sm:$0xf]
      %v425 = vld [vmem:[%s375 + $0xc4] sm:$0xf]
      %v426 = vld [vmem:[%s375 + $0xc8] sm:$0xf]
      %v427 = vld [vmem:[%s375 + $0xcc] sm:$0xf]
      %v428 = vld [vmem:[%s375 + $0xd0] sm:$0xf]
      %v429 = vld [vmem:[%s375 + $0xd4] sm:$0xf]
      %v430 = vld [vmem:[%s375 + $0xd8] sm:$0xf]
      %v431 = vld [vmem:[%s375 + $0xdc] sm:$0xf]
      %v432 = vld [vmem:[%s375 + $0xe0] sm:$0xf]
      %v433 = vld [vmem:[%s375 + $0xe4] sm:$0xf]
      %v434 = vld [vmem:[%s375 + $0xe8] sm:$0xf]
      %v435 = vld [vmem:[%s375 + $0xec] sm:$0xf]
      %v436 = vld [vmem:[%s375 + $0xf0] sm:$0xf]
      %v437 = vld [vmem:[%s375 + $0xf4] sm:$0xf]
      %v438 = vld [vmem:[%s375 + $0xf8] sm:$0xf]
      %v439 = vld [vmem:[%s375 + $0xfc] sm:$0xf]
      %v504 = vunpack.c.l.b16 %v173
      %v505 = vunpack.c.l.b16 %v174
      %v506 = vunpack.c.l.b16 %v175
      %v507 = vunpack.c.l.b16 %v176
      %v508 = vunpack.c.l.b16 %v177
      %v509 = vunpack.c.l.b16 %v178
      %v510 = vunpack.c.l.b16 %v179
      %v511 = vunpack.c.l.b16 %v180
      %v512 = vunpack.c.l.b16 %v181
      %v513 = vunpack.c.l.b16 %v182
      %v514 = vunpack.c.l.b16 %v183
      %v515 = vunpack.c.l.b16 %v184
      %v516 = vunpack.c.l.b16 %v185
      %v517 = vunpack.c.l.b16 %v186
      %v518 = vunpack.c.l.b16 %v187
      %v519 = vunpack.c.l.b16 %v188
      %v520 = vunpack.c.l.b16 %v189
      %v521 = vunpack.c.l.b16 %v190
      %v522 = vunpack.c.l.b16 %v191
      %v523 = vunpack.c.l.b16 %v192
      %v524 = vunpack.c.l.b16 %v193
      %v525 = vunpack.c.l.b16 %v194
      %v526 = vunpack.c.l.b16 %v195
      %v527 = vunpack.c.l.b16 %v196
      %v528 = vunpack.c.l.b16 %v197
      %v529 = vunpack.c.l.b16 %v198
      %v530 = vunpack.c.l.b16 %v199
      %v531 = vunpack.c.l.b16 %v200
      %v532 = vunpack.c.l.b16 %v201
      %v533 = vunpack.c.l.b16 %v202
      %v534 = vunpack.c.l.b16 %v203
      %v535 = vunpack.c.l.b16 %v204
      %v536 = vunpack.c.l.b16 %v205
      %v537 = vunpack.c.l.b16 %v206
      %v538 = vunpack.c.l.b16 %v207
      %v539 = vunpack.c.l.b16 %v208
      %v540 = vunpack.c.l.b16 %v209
      %v541 = vunpack.c.l.b16 %v210
      %v542 = vunpack.c.l.b16 %v211
      %v543 = vunpack.c.l.b16 %v212
      %v544 = vunpack.c.l.b16 %v213
      %v545 = vunpack.c.l.b16 %v214
      %v546 = vunpack.c.l.b16 %v215
      %v547 = vunpack.c.l.b16 %v216
      %v548 = vunpack.c.l.b16 %v217
      %v549 = vunpack.c.l.b16 %v218
      %v550 = vunpack.c.l.b16 %v219
      %v551 = vunpack.c.l.b16 %v220
      %v552 = vunpack.c.l.b16 %v221
      %v553 = vunpack.c.l.b16 %v222
      %v554 = vunpack.c.l.b16 %v223
      %v555 = vunpack.c.l.b16 %v224
      %v556 = vunpack.c.l.b16 %v225
      %v557 = vunpack.c.l.b16 %v226
      %v558 = vunpack.c.l.b16 %v227
      %v559 = vunpack.c.l.b16 %v228
      %v560 = vunpack.c.l.b16 %v229
      %v561 = vunpack.c.l.b16 %v230
      %v562 = vunpack.c.l.b16 %v231
      %v563 = vunpack.c.l.b16 %v232
      %v564 = vunpack.c.l.b16 %v233
      %v565 = vunpack.c.l.b16 %v234
      %v566 = vunpack.c.l.b16 %v235
      %v567 = vunpack.c.l.b16 %v236
      %v568 = vpack.c.b16 %v505, %v504
      %v569 = vpack.c.b16 %v507, %v506
      %v570 = vpack.c.b16 %v509, %v508
      %v571 = vpack.c.b16 %v511, %v510
      %v572 = vpack.c.b16 %v513, %v512
      %v573 = vpack.c.b16 %v515, %v514
      %v574 = vpack.c.b16 %v517, %v516
      %v575 = vpack.c.b16 %v519, %v518
      %v576 = vpack.c.b16 %v521, %v520
      %v577 = vpack.c.b16 %v523, %v522
      %v578 = vpack.c.b16 %v525, %v524
      %v579 = vpack.c.b16 %v527, %v526
      %v580 = vpack.c.b16 %v529, %v528
      %v581 = vpack.c.b16 %v531, %v530
      %v582 = vpack.c.b16 %v533, %v532
      %v583 = vpack.c.b16 %v535, %v534
      %v584 = vpack.c.b16 %v537, %v536
      %v585 = vpack.c.b16 %v539, %v538
      %v586 = vpack.c.b16 %v541, %v540
      %v587 = vpack.c.b16 %v543, %v542
      %v588 = vpack.c.b16 %v545, %v544
      %v589 = vpack.c.b16 %v547, %v546
      %v590 = vpack.c.b16 %v549, %v548
      %v591 = vpack.c.b16 %v551, %v550
      %v592 = vpack.c.b16 %v553, %v552
      %v593 = vpack.c.b16 %v555, %v554
      %v594 = vpack.c.b16 %v557, %v556
      %v595 = vpack.c.b16 %v559, %v558
      %v596 = vpack.c.b16 %v561, %v560
      %v597 = vpack.c.b16 %v563, %v562
      %v598 = vpack.c.b16 %v565, %v564
      %v599 = vpack.c.b16 %v567, %v566
      %v664 = vunpack.c.l.b16 %v240
      %v665 = vunpack.c.l.b16 %v241
      %v666 = vunpack.c.l.b16 %v242
      %v667 = vunpack.c.l.b16 %v243
      %v668 = vunpack.c.l.b16 %v244
      %v669 = vunpack.c.l.b16 %v245
      %v670 = vunpack.c.l.b16 %v246
      %v671 = vunpack.c.l.b16 %v247
      %v672 = vunpack.c.l.b16 %v248
      %v673 = vunpack.c.l.b16 %v249
      %v674 = vunpack.c.l.b16 %v250
      %v675 = vunpack.c.l.b16 %v251
      %v676 = vunpack.c.l.b16 %v252
      %v677 = vunpack.c.l.b16 %v253
      %v678 = vunpack.c.l.b16 %v254
      %v679 = vunpack.c.l.b16 %v255
      %v680 = vunpack.c.l.b16 %v256
      %v681 = vunpack.c.l.b16 %v257
      %v682 = vunpack.c.l.b16 %v258
      %v683 = vunpack.c.l.b16 %v259
      %v684 = vunpack.c.l.b16 %v260
      %v685 = vunpack.c.l.b16 %v261
      %v686 = vunpack.c.l.b16 %v262
      %v687 = vunpack.c.l.b16 %v263
      %v688 = vunpack.c.l.b16 %v264
      %v689 = vunpack.c.l.b16 %v265
      %v690 = vunpack.c.l.b16 %v266
      %v691 = vunpack.c.l.b16 %v267
      %v692 = vunpack.c.l.b16 %v268
      %v693 = vunpack.c.l.b16 %v269
      %v694 = vunpack.c.l.b16 %v270
      %v695 = vunpack.c.l.b16 %v271
      %v696 = vunpack.c.l.b16 %v272
      %v697 = vunpack.c.l.b16 %v273
      %v698 = vunpack.c.l.b16 %v274
      %v699 = vunpack.c.l.b16 %v275
      %v700 = vunpack.c.l.b16 %v276
      %v701 = vunpack.c.l.b16 %v277
      %v702 = vunpack.c.l.b16 %v278
      %v703 = vunpack.c.l.b16 %v279
      %v704 = vunpack.c.l.b16 %v280
      %v705 = vunpack.c.l.b16 %v281
      %v706 = vunpack.c.l.b16 %v282
      %v707 = vunpack.c.l.b16 %v283
      %v708 = vunpack.c.l.b16 %v284
      %v709 = vunpack.c.l.b16 %v285
      %v710 = vunpack.c.l.b16 %v286
      %v711 = vunpack.c.l.b16 %v287
      %v712 = vunpack.c.l.b16 %v288
      %v713 = vunpack.c.l.b16 %v289
      %v714 = vunpack.c.l.b16 %v290
      %v715 = vunpack.c.l.b16 %v291
      %v716 = vunpack.c.l.b16 %v292
      %v717 = vunpack.c.l.b16 %v293
      %v718 = vunpack.c.l.b16 %v294
      %v719 = vunpack.c.l.b16 %v295
      %v720 = vunpack.c.l.b16 %v296
      %v721 = vunpack.c.l.b16 %v297
      %v722 = vunpack.c.l.b16 %v298
      %v723 = vunpack.c.l.b16 %v299
      %v724 = vunpack.c.l.b16 %v300
      %v725 = vunpack.c.l.b16 %v301
      %v726 = vunpack.c.l.b16 %v302
      %v727 = vunpack.c.l.b16 %v303
      %v728 = vpack.c.b16 %v665, %v664
      %v729 = vpack.c.b16 %v667, %v666
      %v730 = vpack.c.b16 %v669, %v668
      %v731 = vpack.c.b16 %v671, %v670
      %v732 = vpack.c.b16 %v673, %v672
      %v733 = vpack.c.b16 %v675, %v674
      %v734 = vpack.c.b16 %v677, %v676
      %v735 = vpack.c.b16 %v679, %v678
      %v736 = vpack.c.b16 %v681, %v680
      %v737 = vpack.c.b16 %v683, %v682
      %v738 = vpack.c.b16 %v685, %v684
      %v739 = vpack.c.b16 %v687, %v686
      %v740 = vpack.c.b16 %v689, %v688
      %v741 = vpack.c.b16 %v691, %v690
      %v742 = vpack.c.b16 %v693, %v692
      %v743 = vpack.c.b16 %v695, %v694
      %v744 = vpack.c.b16 %v697, %v696
      %v745 = vpack.c.b16 %v699, %v698
      %v746 = vpack.c.b16 %v701, %v700
      %v747 = vpack.c.b16 %v703, %v702
      %v748 = vpack.c.b16 %v705, %v704
      %v749 = vpack.c.b16 %v707, %v706
      %v750 = vpack.c.b16 %v709, %v708
      %v751 = vpack.c.b16 %v711, %v710
      %v752 = vpack.c.b16 %v713, %v712
      %v753 = vpack.c.b16 %v715, %v714
      %v754 = vpack.c.b16 %v717, %v716
      %v755 = vpack.c.b16 %v719, %v718
      %v756 = vpack.c.b16 %v721, %v720
      %v757 = vpack.c.b16 %v723, %v722
      %v758 = vpack.c.b16 %v725, %v724
      %v759 = vpack.c.b16 %v727, %v726
      %760 = vrot.lane.b32.xlu0 %v728, 32
      %v761 = vpop.permute.xlu0 %760
      %762 = vrot.lane.b32.xlu0 %v729, 32
      %v763 = vpop.permute.xlu0 %762
      %764 = vrot.lane.b32.xlu0 %v730, 32
      %v765 = vpop.permute.xlu0 %764
      %766 = vrot.lane.b32.xlu0 %v731, 32
      %v767 = vpop.permute.xlu0 %766
      %768 = vrot.lane.b32.xlu0 %v732, 32
      %v769 = vpop.permute.xlu0 %768
      %770 = vrot.lane.b32.xlu0 %v733, 32
      %v771 = vpop.permute.xlu0 %770
      %772 = vrot.lane.b32.xlu0 %v734, 32
      %v773 = vpop.permute.xlu0 %772
      %774 = vrot.lane.b32.xlu0 %v735, 32
      %v775 = vpop.permute.xlu0 %774
      %776 = vrot.lane.b32.xlu0 %v736, 32
      %v777 = vpop.permute.xlu0 %776
      %778 = vrot.lane.b32.xlu0 %v737, 32
      %v779 = vpop.permute.xlu0 %778
      %780 = vrot.lane.b32.xlu0 %v738, 32
      %v781 = vpop.permute.xlu0 %780
      %782 = vrot.lane.b32.xlu0 %v739, 32
      %v783 = vpop.permute.xlu0 %782
      %784 = vrot.lane.b32.xlu0 %v740, 32
      %v785 = vpop.permute.xlu0 %784
      %786 = vrot.lane.b32.xlu0 %v741, 32
      %v787 = vpop.permute.xlu0 %786
      %788 = vrot.lane.b32.xlu0 %v742, 32
      %v789 = vpop.permute.xlu0 %788
      %790 = vrot.lane.b32.xlu0 %v743, 32
      %v791 = vpop.permute.xlu0 %790
      %792 = vrot.lane.b32.xlu0 %v744, 32
      %v793 = vpop.permute.xlu0 %792
      %794 = vrot.lane.b32.xlu0 %v745, 32
      %v795 = vpop.permute.xlu0 %794
      %796 = vrot.lane.b32.xlu0 %v746, 32
      %v797 = vpop.permute.xlu0 %796
      %798 = vrot.lane.b32.xlu0 %v747, 32
      %v799 = vpop.permute.xlu0 %798
      %800 = vrot.lane.b32.xlu0 %v748, 32
      %v801 = vpop.permute.xlu0 %800
      %802 = vrot.lane.b32.xlu0 %v749, 32
      %v803 = vpop.permute.xlu0 %802
      %804 = vrot.lane.b32.xlu0 %v750, 32
      %v805 = vpop.permute.xlu0 %804
      %806 = vrot.lane.b32.xlu0 %v751, 32
      %v807 = vpop.permute.xlu0 %806
      %808 = vrot.lane.b32.xlu0 %v752, 32
      %v809 = vpop.permute.xlu0 %808
      %810 = vrot.lane.b32.xlu0 %v753, 32
      %v811 = vpop.permute.xlu0 %810
      %812 = vrot.lane.b32.xlu0 %v754, 32
      %v813 = vpop.permute.xlu0 %812
      %814 = vrot.lane.b32.xlu0 %v755, 32
      %v815 = vpop.permute.xlu0 %814
      %816 = vrot.lane.b32.xlu0 %v756, 32
      %v817 = vpop.permute.xlu0 %816
      %818 = vrot.lane.b32.xlu0 %v757, 32
      %v819 = vpop.permute.xlu0 %818
      %820 = vrot.lane.b32.xlu0 %v758, 32
      %v821 = vpop.permute.xlu0 %820
      %822 = vrot.lane.b32.xlu0 %v759, 32
      %v823 = vpop.permute.xlu0 %822
      %v888 = vunpack.c.l.b16 %v309
      %v889 = vunpack.c.l.b16 %v310
      %v890 = vunpack.c.l.b16 %v311
      %v891 = vunpack.c.l.b16 %v312
      %v892 = vunpack.c.l.b16 %v313
      %v893 = vunpack.c.l.b16 %v314
      %v894 = vunpack.c.l.b16 %v315
      %v895 = vunpack.c.l.b16 %v316
      %v896 = vunpack.c.l.b16 %v317
      %v897 = vunpack.c.l.b16 %v318
      %v898 = vunpack.c.l.b16 %v319
      %v899 = vunpack.c.l.b16 %v320
      %v900 = vunpack.c.l.b16 %v321
      %v901 = vunpack.c.l.b16 %v322
      %v902 = vunpack.c.l.b16 %v323
      %v903 = vunpack.c.l.b16 %v324
      %v904 = vunpack.c.l.b16 %v325
      %v905 = vunpack.c.l.b16 %v326
      %v906 = vunpack.c.l.b16 %v327
      %v907 = vunpack.c.l.b16 %v328
      %v908 = vunpack.c.l.b16 %v329
      %v909 = vunpack.c.l.b16 %v330
      %v910 = vunpack.c.l.b16 %v331
      %v911 = vunpack.c.l.b16 %v332
      %v912 = vunpack.c.l.b16 %v333
      %v913 = vunpack.c.l.b16 %v334
      %v914 = vunpack.c.l.b16 %v335
      %v915 = vunpack.c.l.b16 %v336
      %v916 = vunpack.c.l.b16 %v337
      %v917 = vunpack.c.l.b16 %v338
      %v918 = vunpack.c.l.b16 %v339
      %v919 = vunpack.c.l.b16 %v340
      %v920 = vunpack.c.l.b16 %v341
      %v921 = vunpack.c.l.b16 %v342
      %v922 = vunpack.c.l.b16 %v343
      %v923 = vunpack.c.l.b16 %v344
      %v924 = vunpack.c.l.b16 %v345
      %v925 = vunpack.c.l.b16 %v346
      %v926 = vunpack.c.l.b16 %v347
      %v927 = vunpack.c.l.b16 %v348
      %v928 = vunpack.c.l.b16 %v349
      %v929 = vunpack.c.l.b16 %v350
      %v930 = vunpack.c.l.b16 %v351
      %v931 = vunpack.c.l.b16 %v352
      %v932 = vunpack.c.l.b16 %v353
      %v933 = vunpack.c.l.b16 %v354
      %v934 = vunpack.c.l.b16 %v355
      %v935 = vunpack.c.l.b16 %v356
      %v936 = vunpack.c.l.b16 %v357
      %v937 = vunpack.c.l.b16 %v358
      %v938 = vunpack.c.l.b16 %v359
      %v939 = vunpack.c.l.b16 %v360
      %v940 = vunpack.c.l.b16 %v361
      %v941 = vunpack.c.l.b16 %v362
      %v942 = vunpack.c.l.b16 %v363
      %v943 = vunpack.c.l.b16 %v364
      %v944 = vunpack.c.l.b16 %v365
      %v945 = vunpack.c.l.b16 %v366
      %v946 = vunpack.c.l.b16 %v367
      %v947 = vunpack.c.l.b16 %v368
      %v948 = vunpack.c.l.b16 %v369
      %v949 = vunpack.c.l.b16 %v370
      %v950 = vunpack.c.l.b16 %v371
      %v951 = vunpack.c.l.b16 %v372
      %v952 = vpack.c.b16 %v889, %v888
      %v953 = vpack.c.b16 %v891, %v890
      %v954 = vpack.c.b16 %v893, %v892
      %v955 = vpack.c.b16 %v895, %v894
      %v956 = vpack.c.b16 %v897, %v896
      %v957 = vpack.c.b16 %v899, %v898
      %v958 = vpack.c.b16 %v901, %v900
      %v959 = vpack.c.b16 %v903, %v902
      %v960 = vpack.c.b16 %v905, %v904
      %v961 = vpack.c.b16 %v907, %v906
      %v962 = vpack.c.b16 %v909, %v908
      %v963 = vpack.c.b16 %v911, %v910
      %v964 = vpack.c.b16 %v913, %v912
      %v965 = vpack.c.b16 %v915, %v914
      %v966 = vpack.c.b16 %v917, %v916
      %v967 = vpack.c.b16 %v919, %v918
      %v968 = vpack.c.b16 %v921, %v920
      %v969 = vpack.c.b16 %v923, %v922
      %v970 = vpack.c.b16 %v925, %v924
      %v971 = vpack.c.b16 %v927, %v926
      %v972 = vpack.c.b16 %v929, %v928
      %v973 = vpack.c.b16 %v931, %v930
      %v974 = vpack.c.b16 %v933, %v932
      %v975 = vpack.c.b16 %v935, %v934
      %v976 = vpack.c.b16 %v937, %v936
      %v977 = vpack.c.b16 %v939, %v938
      %v978 = vpack.c.b16 %v941, %v940
      %v979 = vpack.c.b16 %v943, %v942
      %v980 = vpack.c.b16 %v945, %v944
      %v981 = vpack.c.b16 %v947, %v946
      %v982 = vpack.c.b16 %v949, %v948
      %v983 = vpack.c.b16 %v951, %v950
      %984 = vrot.lane.b32.xlu0 %v952, 64
      %v985 = vpop.permute.xlu0 %984
      %986 = vrot.lane.b32.xlu0 %v953, 64
      %v987 = vpop.permute.xlu0 %986
      %988 = vrot.lane.b32.xlu0 %v954, 64
      %v989 = vpop.permute.xlu0 %988
      %990 = vrot.lane.b32.xlu0 %v955, 64
      %v991 = vpop.permute.xlu0 %990
      %992 = vrot.lane.b32.xlu0 %v956, 64
      %v993 = vpop.permute.xlu0 %992
      %994 = vrot.lane.b32.xlu0 %v957, 64
      %v995 = vpop.permute.xlu0 %994
      %996 = vrot.lane.b32.xlu0 %v958, 64
      %v997 = vpop.permute.xlu0 %996
      %998 = vrot.lane.b32.xlu0 %v959, 64
      %v999 = vpop.permute.xlu0 %998
      %1000 = vrot.lane.b32.xlu0 %v960, 64
      %v1001 = vpop.permute.xlu0 %1000
      %1002 = vrot.lane.b32.xlu0 %v961, 64
      %v1003 = vpop.permute.xlu0 %1002
      %1004 = vrot.lane.b32.xlu0 %v962, 64
      %v1005 = vpop.permute.xlu0 %1004
      %1006 = vrot.lane.b32.xlu0 %v963, 64
      %v1007 = vpop.permute.xlu0 %1006
      %1008 = vrot.lane.b32.xlu0 %v964, 64
      %v1009 = vpop.permute.xlu0 %1008
      %1010 = vrot.lane.b32.xlu0 %v965, 64
      %v1011 = vpop.permute.xlu0 %1010
      %1012 = vrot.lane.b32.xlu0 %v966, 64
      %v1013 = vpop.permute.xlu0 %1012
      %1014 = vrot.lane.b32.xlu0 %v967, 64
      %v1015 = vpop.permute.xlu0 %1014
      %1016 = vrot.lane.b32.xlu0 %v968, 64
      %v1017 = vpop.permute.xlu0 %1016
      %1018 = vrot.lane.b32.xlu0 %v969, 64
      %v1019 = vpop.permute.xlu0 %1018
      %1020 = vrot.lane.b32.xlu0 %v970, 64
      %v1021 = vpop.permute.xlu0 %1020
      %1022 = vrot.lane.b32.xlu0 %v971, 64
      %v1023 = vpop.permute.xlu0 %1022
      %1024 = vrot.lane.b32.xlu0 %v972, 64
      %v1025 = vpop.permute.xlu0 %1024
      %1026 = vrot.lane.b32.xlu0 %v973, 64
      %v1027 = vpop.permute.xlu0 %1026
      %1028 = vrot.lane.b32.xlu0 %v974, 64
      %v1029 = vpop.permute.xlu0 %1028
      %1030 = vrot.lane.b32.xlu0 %v975, 64
      %v1031 = vpop.permute.xlu0 %1030
      %1032 = vrot.lane.b32.xlu0 %v976, 64
      %v1033 = vpop.permute.xlu0 %1032
      %1034 = vrot.lane.b32.xlu0 %v977, 64
      %v1035 = vpop.permute.xlu0 %1034
      %1036 = vrot.lane.b32.xlu0 %v978, 64
      %v1037 = vpop.permute.xlu0 %1036
      %1038 = vrot.lane.b32.xlu0 %v979, 64
      %v1039 = vpop.permute.xlu0 %1038
      %1040 = vrot.lane.b32.xlu0 %v980, 64
      %v1041 = vpop.permute.xlu0 %1040
      %1042 = vrot.lane.b32.xlu0 %v981, 64
      %v1043 = vpop.permute.xlu0 %1042
      %1044 = vrot.lane.b32.xlu0 %v982, 64
      %v1045 = vpop.permute.xlu0 %1044
      %1046 = vrot.lane.b32.xlu0 %v983, 64
      %v1047 = vpop.permute.xlu0 %1046
      %v1112 = vunpack.c.l.b16 %v376
      %v1113 = vunpack.c.l.b16 %v377
      %v1114 = vunpack.c.l.b16 %v378
      %v1115 = vunpack.c.l.b16 %v379
      %v1116 = vunpack.c.l.b16 %v380
      %v1117 = vunpack.c.l.b16 %v381
      %v1118 = vunpack.c.l.b16 %v382
      %v1119 = vunpack.c.l.b16 %v383
      %v1120 = vunpack.c.l.b16 %v384
      %v1121 = vunpack.c.l.b16 %v385
      %v1122 = vunpack.c.l.b16 %v386
      %v1123 = vunpack.c.l.b16 %v387
      %v1124 = vunpack.c.l.b16 %v388
      %v1125 = vunpack.c.l.b16 %v389
      %v1126 = vunpack.c.l.b16 %v390
      %v1127 = vunpack.c.l.b16 %v391
      %v1128 = vunpack.c.l.b16 %v392
      %v1129 = vunpack.c.l.b16 %v393
      %v1130 = vunpack.c.l.b16 %v394
      %v1131 = vunpack.c.l.b16 %v395
      %v1132 = vunpack.c.l.b16 %v396
      %v1133 = vunpack.c.l.b16 %v397
      %v1134 = vunpack.c.l.b16 %v398
      %v1135 = vunpack.c.l.b16 %v399
      %v1136 = vunpack.c.l.b16 %v400
      %v1137 = vunpack.c.l.b16 %v401
      %v1138 = vunpack.c.l.b16 %v402
      %v1139 = vunpack.c.l.b16 %v403
      %v1140 = vunpack.c.l.b16 %v404
      %v1141 = vunpack.c.l.b16 %v405
      %v1142 = vunpack.c.l.b16 %v406
      %v1143 = vunpack.c.l.b16 %v407
      %v1144 = vunpack.c.l.b16 %v408
      %v1145 = vunpack.c.l.b16 %v409
      %v1146 = vunpack.c.l.b16 %v410
      %v1147 = vunpack.c.l.b16 %v411
      %v1148 = vunpack.c.l.b16 %v412
      %v1149 = vunpack.c.l.b16 %v413
      %v1150 = vunpack.c.l.b16 %v414
      %v1151 = vunpack.c.l.b16 %v415
      %v1152 = vunpack.c.l.b16 %v416
      %v1153 = vunpack.c.l.b16 %v417
      %v1154 = vunpack.c.l.b16 %v418
      %v1155 = vunpack.c.l.b16 %v419
      %v1156 = vunpack.c.l.b16 %v420
      %v1157 = vunpack.c.l.b16 %v421
      %v1158 = vunpack.c.l.b16 %v422
      %v1159 = vunpack.c.l.b16 %v423
      %v1160 = vunpack.c.l.b16 %v424
      %v1161 = vunpack.c.l.b16 %v425
      %v1162 = vunpack.c.l.b16 %v426
      %v1163 = vunpack.c.l.b16 %v427
      %v1164 = vunpack.c.l.b16 %v428
      %v1165 = vunpack.c.l.b16 %v429
      %v1166 = vunpack.c.l.b16 %v430
      %v1167 = vunpack.c.l.b16 %v431
      %v1168 = vunpack.c.l.b16 %v432
      %v1169 = vunpack.c.l.b16 %v433
      %v1170 = vunpack.c.l.b16 %v434
      %v1171 = vunpack.c.l.b16 %v435
      %v1172 = vunpack.c.l.b16 %v436
      %v1173 = vunpack.c.l.b16 %v437
      %v1174 = vunpack.c.l.b16 %v438
      %v1175 = vunpack.c.l.b16 %v439
      %v1176 = vpack.c.b16 %v1113, %v1112
      %v1177 = vpack.c.b16 %v1115, %v1114
      %v1178 = vpack.c.b16 %v1117, %v1116
      %v1179 = vpack.c.b16 %v1119, %v1118
      %v1180 = vpack.c.b16 %v1121, %v1120
      %v1181 = vpack.c.b16 %v1123, %v1122
      %v1182 = vpack.c.b16 %v1125, %v1124
      %v1183 = vpack.c.b16 %v1127, %v1126
      %v1184 = vpack.c.b16 %v1129, %v1128
      %v1185 = vpack.c.b16 %v1131, %v1130
      %v1186 = vpack.c.b16 %v1133, %v1132
      %v1187 = vpack.c.b16 %v1135, %v1134
      %v1188 = vpack.c.b16 %v1137, %v1136
      %v1189 = vpack.c.b16 %v1139, %v1138
      %v1190 = vpack.c.b16 %v1141, %v1140
      %v1191 = vpack.c.b16 %v1143, %v1142
      %v1192 = vpack.c.b16 %v1145, %v1144
      %v1193 = vpack.c.b16 %v1147, %v1146
      %v1194 = vpack.c.b16 %v1149, %v1148
      %v1195 = vpack.c.b16 %v1151, %v1150
      %v1196 = vpack.c.b16 %v1153, %v1152
      %v1197 = vpack.c.b16 %v1155, %v1154
      %v1198 = vpack.c.b16 %v1157, %v1156
      %v1199 = vpack.c.b16 %v1159, %v1158
      %v1200 = vpack.c.b16 %v1161, %v1160
      %v1201 = vpack.c.b16 %v1163, %v1162
      %v1202 = vpack.c.b16 %v1165, %v1164
      %v1203 = vpack.c.b16 %v1167, %v1166
      %v1204 = vpack.c.b16 %v1169, %v1168
      %v1205 = vpack.c.b16 %v1171, %v1170
      %v1206 = vpack.c.b16 %v1173, %v1172
      %v1207 = vpack.c.b16 %v1175, %v1174
      %1208 = vrot.lane.b32.xlu0 %v1176, 96
      %v1209 = vpop.permute.xlu0 %1208
      %1210 = vrot.lane.b32.xlu0 %v1177, 96
      %v1211 = vpop.permute.xlu0 %1210
      %1212 = vrot.lane.b32.xlu0 %v1178, 96
      %v1213 = vpop.permute.xlu0 %1212
      %1214 = vrot.lane.b32.xlu0 %v1179, 96
      %v1215 = vpop.permute.xlu0 %1214
      %1216 = vrot.lane.b32.xlu0 %v1180, 96
      %v1217 = vpop.permute.xlu0 %1216
      %1218 = vrot.lane.b32.xlu0 %v1181, 96
      %v1219 = vpop.permute.xlu0 %1218
      %1220 = vrot.lane.b32.xlu0 %v1182, 96
      %v1221 = vpop.permute.xlu0 %1220
      %1222 = vrot.lane.b32.xlu0 %v1183, 96
      %v1223 = vpop.permute.xlu0 %1222
      %1224 = vrot.lane.b32.xlu0 %v1184, 96
      %v1225 = vpop.permute.xlu0 %1224
      %1226 = vrot.lane.b32.xlu0 %v1185, 96
      %v1227 = vpop.permute.xlu0 %1226
      %1228 = vrot.lane.b32.xlu0 %v1186, 96
      %v1229 = vpop.permute.xlu0 %1228
      %1230 = vrot.lane.b32.xlu0 %v1187, 96
      %v1231 = vpop.permute.xlu0 %1230
      %1232 = vrot.lane.b32.xlu0 %v1188, 96
      %v1233 = vpop.permute.xlu0 %1232
      %1234 = vrot.lane.b32.xlu0 %v1189, 96
      %v1235 = vpop.permute.xlu0 %1234
      %1236 = vrot.lane.b32.xlu0 %v1190, 96
      %v1237 = vpop.permute.xlu0 %1236
      %1238 = vrot.lane.b32.xlu0 %v1191, 96
      %v1239 = vpop.permute.xlu0 %1238
      %1240 = vrot.lane.b32.xlu0 %v1192, 96
      %v1241 = vpop.permute.xlu0 %1240
      %1242 = vrot.lane.b32.xlu0 %v1193, 96
      %v1243 = vpop.permute.xlu0 %1242
      %1244 = vrot.lane.b32.xlu0 %v1194, 96
      %v1245 = vpop.permute.xlu0 %1244
      %1246 = vrot.lane.b32.xlu0 %v1195, 96
      %v1247 = vpop.permute.xlu0 %1246
      %1248 = vrot.lane.b32.xlu0 %v1196, 96
      %v1249 = vpop.permute.xlu0 %1248
      %1250 = vrot.lane.b32.xlu0 %v1197, 96
      %v1251 = vpop.permute.xlu0 %1250
      %1252 = vrot.lane.b32.xlu0 %v1198, 96
      %v1253 = vpop.permute.xlu0 %1252
      %1254 = vrot.lane.b32.xlu0 %v1199, 96
      %v1255 = vpop.permute.xlu0 %1254
      %1256 = vrot.lane.b32.xlu0 %v1200, 96
      %v1257 = vpop.permute.xlu0 %1256
      %1258 = vrot.lane.b32.xlu0 %v1201, 96
      %v1259 = vpop.permute.xlu0 %1258
      %1260 = vrot.lane.b32.xlu0 %v1202, 96
      %v1261 = vpop.permute.xlu0 %1260
      %1262 = vrot.lane.b32.xlu0 %v1203, 96
      %v1263 = vpop.permute.xlu0 %1262
      %1264 = vrot.lane.b32.xlu0 %v1204, 96
      %v1265 = vpop.permute.xlu0 %1264
      %1266 = vrot.lane.b32.xlu0 %v1205, 96
      %v1267 = vpop.permute.xlu0 %1266
      %1268 = vrot.lane.b32.xlu0 %v1206, 96
      %v1269 = vpop.permute.xlu0 %1268
      %1270 = vrot.lane.b32.xlu0 %v1207, 96
      %v1271 = vpop.permute.xlu0 %1270
      %vm1272 = vcmask 261120
      %v1275 = vsel %vm1272, %v568, %v761
      %v1278 = vsel %vm1272, %v569, %v763
      %v1281 = vsel %vm1272, %v570, %v765
      %v1284 = vsel %vm1272, %v571, %v767
      %v1287 = vsel %vm1272, %v572, %v769
      %v1290 = vsel %vm1272, %v573, %v771
      %v1293 = vsel %vm1272, %v574, %v773
      %v1296 = vsel %vm1272, %v575, %v775
      %v1299 = vsel %vm1272, %v576, %v777
      %v1302 = vsel %vm1272, %v577, %v779
      %v1305 = vsel %vm1272, %v578, %v781
      %v1308 = vsel %vm1272, %v579, %v783
      %v1311 = vsel %vm1272, %v580, %v785
      %v1314 = vsel %vm1272, %v581, %v787
      %v1317 = vsel %vm1272, %v582, %v789
      %v1320 = vsel %vm1272, %v583, %v791
      %v1323 = vsel %vm1272, %v584, %v793
      %v1326 = vsel %vm1272, %v585, %v795
      %v1329 = vsel %vm1272, %v586, %v797
      %v1332 = vsel %vm1272, %v587, %v799
      %v1335 = vsel %vm1272, %v588, %v801
      %v1338 = vsel %vm1272, %v589, %v803
      %v1341 = vsel %vm1272, %v590, %v805
      %v1344 = vsel %vm1272, %v591, %v807
      %v1347 = vsel %vm1272, %v592, %v809
      %v1350 = vsel %vm1272, %v593, %v811
      %v1353 = vsel %vm1272, %v594, %v813
      %v1356 = vsel %vm1272, %v595, %v815
      %v1359 = vsel %vm1272, %v596, %v817
      %v1362 = vsel %vm1272, %v597, %v819
      %v1365 = vsel %vm1272, %v598, %v821
      %v1368 = vsel %vm1272, %v599, %v823
      %vm1369 = vcmask 523264
      %v1371 = vsel %vm1369, %v1275, %v985
      %v1373 = vsel %vm1369, %v1278, %v987
      %v1375 = vsel %vm1369, %v1281, %v989
      %v1377 = vsel %vm1369, %v1284, %v991
      %v1379 = vsel %vm1369, %v1287, %v993
      %v1381 = vsel %vm1369, %v1290, %v995
      %v1383 = vsel %vm1369, %v1293, %v997
      %v1385 = vsel %vm1369, %v1296, %v999
      %v1387 = vsel %vm1369, %v1299, %v1001
      %v1389 = vsel %vm1369, %v1302, %v1003
      %v1391 = vsel %vm1369, %v1305, %v1005
      %v1393 = vsel %vm1369, %v1308, %v1007
      %v1395 = vsel %vm1369, %v1311, %v1009
      %v1397 = vsel %vm1369, %v1314, %v1011
      %v1399 = vsel %vm1369, %v1317, %v1013
      %v1401 = vsel %vm1369, %v1320, %v1015
      %v1403 = vsel %vm1369, %v1323, %v1017
      %v1405 = vsel %vm1369, %v1326, %v1019
      %v1407 = vsel %vm1369, %v1329, %v1021
      %v1409 = vsel %vm1369, %v1332, %v1023
      %v1411 = vsel %vm1369, %v1335, %v1025
      %v1413 = vsel %vm1369, %v1338, %v1027
      %v1415 = vsel %vm1369, %v1341, %v1029
      %v1417 = vsel %vm1369, %v1344, %v1031
      %v1419 = vsel %vm1369, %v1347, %v1033
      %v1421 = vsel %vm1369, %v1350, %v1035
      %v1423 = vsel %vm1369, %v1353, %v1037
      %v1425 = vsel %vm1369, %v1356, %v1039
      %v1427 = vsel %vm1369, %v1359, %v1041
      %v1429 = vsel %vm1369, %v1362, %v1043
      %v1431 = vsel %vm1369, %v1365, %v1045
      %v1433 = vsel %vm1369, %v1368, %v1047
      %vm1434 = vcmask 785408
      %v1436 = vsel %vm1434, %v1371, %v1209
      %v1439 = vsel %vm1434, %v1373, %v1211
      %v1442 = vsel %vm1434, %v1375, %v1213
      %v1445 = vsel %vm1434, %v1377, %v1215
      %v1448 = vsel %vm1434, %v1379, %v1217
      %v1451 = vsel %vm1434, %v1381, %v1219
      %v1454 = vsel %vm1434, %v1383, %v1221
      %v1457 = vsel %vm1434, %v1385, %v1223
      %v1460 = vsel %vm1434, %v1387, %v1225
      %v1463 = vsel %vm1434, %v1389, %v1227
      %v1466 = vsel %vm1434, %v1391, %v1229
      %v1469 = vsel %vm1434, %v1393, %v1231
      %v1472 = vsel %vm1434, %v1395, %v1233
      %v1475 = vsel %vm1434, %v1397, %v1235
      %v1478 = vsel %vm1434, %v1399, %v1237
      %v1481 = vsel %vm1434, %v1401, %v1239
      %v1484 = vsel %vm1434, %v1403, %v1241
      %v1487 = vsel %vm1434, %v1405, %v1243
      %v1490 = vsel %vm1434, %v1407, %v1245
      %v1493 = vsel %vm1434, %v1409, %v1247
      %v1496 = vsel %vm1434, %v1411, %v1249
      %v1499 = vsel %vm1434, %v1413, %v1251
      %v1502 = vsel %vm1434, %v1415, %v1253
      %v1505 = vsel %vm1434, %v1417, %v1255
      %v1508 = vsel %vm1434, %v1419, %v1257
      %v1511 = vsel %vm1434, %v1421, %v1259
      %v1514 = vsel %vm1434, %v1423, %v1261
      %v1517 = vsel %vm1434, %v1425, %v1263
      %v1520 = vsel %vm1434, %v1427, %v1265
      %v1523 = vsel %vm1434, %v1429, %v1267
      %v1526 = vsel %vm1434, %v1431, %v1269
      %v1529 = vsel %vm1434, %v1433, %v1271
      %v1531 = vld [vmem:[%s1] sm:$0xf]
      %1532 = vmatprep.subr.bf16.mxu0 0
      %1533 = vmatpush1.bf16.xpose.msra.mxu0 %v1436
      %1534 = vmatprep.subr.bf16.mxu0 0
      %1535 = vmatpush1.bf16.xpose.msra.mxu0 %v1439
      %1536 = vmatprep.subr.bf16.mxu0 0
      %1537 = vmatpush1.bf16.xpose.msra.mxu0 %v1442
      %1538 = vmatprep.subr.bf16.mxu0 0
      %1539 = vmatpush1.bf16.xpose.msra.mxu0 %v1445
      %1540 = vmatprep.subr.bf16.mxu0 0
      %1541 = vmatpush1.bf16.xpose.msra.mxu0 %v1448
      %1542 = vmatprep.subr.bf16.mxu0 0
      %1543 = vmatpush1.bf16.xpose.msra.mxu0 %v1451
      %1544 = vmatprep.subr.bf16.mxu0 0
      %1545 = vmatpush1.bf16.xpose.msra.mxu0 %v1454
      %1546 = vmatprep.subr.bf16.mxu0 0
      %1547 = vmatpush1.bf16.xpose.msra.mxu0 %v1457
      %1548 = vmatprep.subr.bf16.mxu0 0
      %1549 = vmatpush1.bf16.xpose.msra.mxu0 %v1460
      %1550 = vmatprep.subr.bf16.mxu0 0
      %1551 = vmatpush1.bf16.xpose.msra.mxu0 %v1463
      %1552 = vmatprep.subr.bf16.mxu0 0
      %1553 = vmatpush1.bf16.xpose.msra.mxu0 %v1466
      %1554 = vmatprep.subr.bf16.mxu0 0
      %1555 = vmatpush1.bf16.xpose.msra.mxu0 %v1469
      %1556 = vmatprep.subr.bf16.mxu0 0
      %1557 = vmatpush1.bf16.xpose.msra.mxu0 %v1472
      %1558 = vmatprep.subr.bf16.mxu0 0
      %1559 = vmatpush1.bf16.xpose.msra.mxu0 %v1475
      %1560 = vmatprep.subr.bf16.mxu0 0
      %1561 = vmatpush1.bf16.xpose.msra.mxu0 %v1478
      %1562 = vmatprep.subr.bf16.mxu0 0
      %1563 = vmatpush1.bf16.xpose.msra.mxu0 %v1481
      %1564 = vmatprep.mubr.bf16.mxu0 0
      %1565 = vmatmul.mubr.bf16.gmra.mrb[0].mxu0 %v1531
      %v1566 = vpop.f32.mrb[0].mxu0
      %v1567 = vadd.f32 0.0, %v1566
      %v1568 = vpop.f32.mrb[0].mxu0
      %v1569 = vadd.f32 0.0, %v1568
      %v1570 = vpop.f32.mrb[0].mxu0
      %v1571 = vpop.f32.mrb[0].mxu0
      %1572 = vdwg.mxu0
      %1573 = vmatprep.subr.bf16.mxu0 0
      %1574 = vmatpush1.bf16.xpose.msra.mxu0 %v1484
      %1575 = vmatprep.subr.bf16.mxu0 0
      %1576 = vmatpush1.bf16.xpose.msra.mxu0 %v1487
      %1577 = vmatprep.subr.bf16.mxu0 0
      %1578 = vmatpush1.bf16.xpose.msra.mxu0 %v1490
      %1579 = vmatprep.subr.bf16.mxu0 0
      %1580 = vmatpush1.bf16.xpose.msra.mxu0 %v1493
      %1581 = vmatprep.subr.bf16.mxu0 0
      %1582 = vmatpush1.bf16.xpose.msra.mxu0 %v1496
      %1583 = vmatprep.subr.bf16.mxu0 0
      %1584 = vmatpush1.bf16.xpose.msra.mxu0 %v1499
      %1585 = vmatprep.subr.bf16.mxu0 0
      %1586 = vmatpush1.bf16.xpose.msra.mxu0 %v1502
      %1587 = vmatprep.subr.bf16.mxu0 0
      %1588 = vmatpush1.bf16.xpose.msra.mxu0 %v1505
      %1589 = vmatprep.subr.bf16.mxu0 0
      %1590 = vmatpush1.bf16.xpose.msra.mxu0 %v1508
      %1591 = vmatprep.subr.bf16.mxu0 0
      %1592 = vmatpush1.bf16.xpose.msra.mxu0 %v1511
      %1593 = vmatprep.subr.bf16.mxu0 0
      %1594 = vmatpush1.bf16.xpose.msra.mxu0 %v1514
      %1595 = vmatprep.subr.bf16.mxu0 0
      %1596 = vmatpush1.bf16.xpose.msra.mxu0 %v1517
      %1597 = vmatprep.subr.bf16.mxu0 0
      %1598 = vmatpush1.bf16.xpose.msra.mxu0 %v1520
      %1599 = vmatprep.subr.bf16.mxu0 0
      %1600 = vmatpush1.bf16.xpose.msra.mxu0 %v1523
      %1601 = vmatprep.subr.bf16.mxu0 0
      %1602 = vmatpush1.bf16.xpose.msra.mxu0 %v1526
      %1603 = vmatprep.subr.bf16.mxu0 0
      %1604 = vmatpush1.bf16.xpose.msra.mxu0 %v1529
      %1605 = vmatprep.mubr.bf16.mxu0 0
      %1606 = vmatmul.mubr.bf16.gmra.mrb[0].mxu0 %v1531
      %v1607 = vpop.f32.mrb[0].mxu0
      %v1608 = vadd.f32 0.0, %v1607
      %v1609 = vpop.f32.mrb[0].mxu0
      %v1610 = vadd.f32 0.0, %v1609
      %v1611 = vpop.f32.mrb[0].mxu0
      %v1612 = vpop.f32.mrb[0].mxu0
      %1613 = vdwg.mxu0
      %vm1614 = vcmp.ge.f32.partialorder %v1567, 0.0
      %vm1615 = vcmp.ge.f32.partialorder %v1569, 0.0
      %vm1616 = vcmp.ge.f32.partialorder %v1608, 0.0
      %vm1617 = vcmp.ge.f32.partialorder %v1610, 0.0
      %v1618 = vmul.f32 %v1567, 0.2
      %v1619 = vmul.f32 %v1569, 0.2
      %v1620 = vmul.f32 %v1608, 0.2
      %v1621 = vmul.f32 %v1610, 0.2
      %v1622 = vsel %vm1614, %v1567, %v1618
      %v1623 = vsel %vm1615, %v1569, %v1619
      %v1624 = vsel %vm1616, %v1608, %v1620
      %v1625 = vsel %vm1617, %v1610, %v1621
      %1626 = vst [vmem:[%s163] sm:$0xff] %v1622
      %1627 = vst [vmem:[%s163 + $0x8] sm:$0xff] %v1623
      %1628 = vst [vmem:[%s163 + $0x10] sm:$0xff] %v1624
      %1629 = vst [vmem:[%s163 + $0x18] sm:$0xff] %v1625
      %s1630 = smul.u32 %s17, 2
      %s1631 = sadd.s32 %s1630, %s18
      %s1632 = smul.u32 4, %s1631
      %p1633 = scmp.lt.s32.totalorder %s1632, 15
      %s1634 = scalar_select %p1633, %s1632, 15
      %s1635 = smul.addr %s1634, 8
      %s1636 = scalar_lea.vmem %s2, %s1635
      // Predicated region
      $region29: #{_lambda_.4} parent=27 // pred_check
        %p1637 = pneg %p94
      $region30: #{_lambda_.4} parent=27 // pred_check_branch
        %1639 = sbr.rel (%p1637) target = $region32
      $region31: #{_lambda_.4} parent=27 // pred_region
        %s1640 = smul.u32 %s17, 2
        %s1641 = sadd.s32 %s1640, %s18
        %s1642 = smul.u32 4, %s1641
      $region32: #{_lambda_.4} parent=27 // pred_fallthru
        _
    $region28: #{_lambda_.4} parent=5 // pred_fallthru
      _
    %p1643 = scmp.le.s32.totalorder 2, %s8
    // Predicated region
    $region33: #{_lambda_.4} parent=5 // pred_check
      %p1644 = pneg %p1643
    $region34: #{_lambda_.4} parent=5 // pred_check_branch
      %1646 = sbr.rel (%p1644) target = $region36
    $region35: #{_lambda_.4} parent=5 // pred_region
      %s1647 = ssub.s32 %s8, 2
      // Predicated region
      $region37: #{_lambda_.4} parent=35 // pred_check
        %p1648 = pneg %p100
      $region38: #{_lambda_.4} parent=35 // pred_check_branch
        %1650 = sbr.rel (%p1648) target = $region40
      $region39: #{_lambda_.4} parent=35 // pred_region
        %s1651 = smul.u32 %s19, 2
        %s1652 = sadd.s32 %s1651, %s20
        %s1653 = smul.u32 4, %s1652
        %p1654 = scmp.lt.s32.totalorder %s1653, 15
        %s1655 = scalar_select %p1654, %s1653, 15
        %s1656 = smul.addr %s1655, 8
        %s1657 = scalar_lea.vmem %s2, %s1656
      $region40: #{_lambda_.4} parent=35 // pred_fallthru
        _
    $region36: #{_lambda_.4} parent=5 // pred_fallthru
      _
  $region6: #{_lambda_.4} parent=0 // loop_footer
    %s12 = sadd.s32 1, %s8
  $region7: #{_lambda_.4} parent=0 // loop_footer_branch
    %7 = sbr.rel target = $region3
  $region8: #{_lambda_.4} parent=0 // loop_exit
    _

// kernel: _lambda_.5
$region0: #{_lambda_.5}
  #allocation0 [shape = 'u32[]', space=smem, size = 0x4, offset = 0x4, fixed_abs, tag = 'smem constant byte address 0x4 - core index']
  #allocation1 [shape = 'u32[144,128]{1,0:T(1,128)}', space=vmem, size = 0x12000, scoped, tag = 'internal scratch']
  %s0 = inlined_call_operand.vmem [shape: bf16[2,2,272,32], index: 0, kind: input, shape index: {}]
  %s1 = inlined_call_operand.vmem [shape: bf16[16,128], index: 1, kind: input, shape index: {}]
  %s2 = inlined_call_operand.vmem [shape: f32[16,1], index: 2, kind: input, shape index: {}]
  %s3 = inlined_call_operand.vmem [shape: f32[16,1], index: 3, kind: input, shape index: {}]
  %s4 = inlined_call_operand.vmem [shape: f32[16,512], index: 4, kind: output, shape index: {}]
  %s5 = sld [smem:[#allocation0]]
  $region26: #{_lambda_.5} parent=0
    _
  %s7 = ssub.s32 1, %s5
  %s8 = scalar_select 0, %s7, %s5
  // Predicated region
  $region2: #{_lambda_.5} parent=0 // pred_check
    _
  $region3: #{_lambda_.5} parent=0 // pred_check_branch
    %10 = sbr.rel (0) target = $region5
  $region4: #{_lambda_.5} parent=0 // pred_region
    _
  $region5: #{_lambda_.5} parent=0 // pred_fallthru
    _
  // Predicated region
  $region6: #{_lambda_.5} parent=0 // pred_check
    _
  $region7: #{_lambda_.5} parent=0 // pred_check_branch
    %12 = sbr.rel (0) target = $region9
  $region8: #{_lambda_.5} parent=0 // pred_region
    _
  $region9: #{_lambda_.5} parent=0 // pred_fallthru
    _
  // Predicated region
  $region10: #{_lambda_.5} parent=0 // pred_check
    _
  $region11: #{_lambda_.5} parent=0 // pred_check_branch
    %14 = sbr.rel (0) target = $region13
  $region12: #{_lambda_.5} parent=0 // pred_region
    _
  $region13: #{_lambda_.5} parent=0 // pred_fallthru
    _
  // Predicated region
  $region14: #{_lambda_.5} parent=0 // pred_check
    _
  $region15: #{_lambda_.5} parent=0 // pred_check_branch
    %16 = sbr.rel (0) target = $region17
  $region16: #{_lambda_.5} parent=0 // pred_region
    _
  $region17: #{_lambda_.5} parent=0 // pred_fallthru
    _
  %v18 = vld [vmem:[%s0] sm:$0xf]
  %v19 = vld [vmem:[%s0 + $0x4] sm:$0xf]
  %v20 = vld [vmem:[%s0 + $0x8] sm:$0xf]
  %v21 = vld [vmem:[%s0 + $0xc] sm:$0xf]
  %v22 = vld [vmem:[%s0 + $0x10] sm:$0xf]
  %v23 = vld [vmem:[%s0 + $0x14] sm:$0xf]
  %v24 = vld [vmem:[%s0 + $0x18] sm:$0xf]
  %v25 = vld [vmem:[%s0 + $0x1c] sm:$0xf]
  %v26 = vld [vmem:[%s0 + $0x20] sm:$0xf]
  %v27 = vld [vmem:[%s0 + $0x24] sm:$0xf]
  %v28 = vld [vmem:[%s0 + $0x28] sm:$0xf]
  %v29 = vld [vmem:[%s0 + $0x2c] sm:$0xf]
  %v30 = vld [vmem:[%s0 + $0x30] sm:$0xf]
  %v31 = vld [vmem:[%s0 + $0x34] sm:$0xf]
  %v32 = vld [vmem:[%s0 + $0x38] sm:$0xf]
  %v33 = vld [vmem:[%s0 + $0x3c] sm:$0xf]
  %v34 = vld [vmem:[%s0 + $0x40] sm:$0xf]
  %v35 = vld [vmem:[%s0 + $0x44] sm:$0xf]
  %v36 = vld [vmem:[%s0 + $0x48] sm:$0xf]
  %v37 = vld [vmem:[%s0 + $0x4c] sm:$0xf]
  %v38 = vld [vmem:[%s0 + $0x50] sm:$0xf]
  %v39 = vld [vmem:[%s0 + $0x54] sm:$0xf]
  %v40 = vld [vmem:[%s0 + $0x58] sm:$0xf]
  %v41 = vld [vmem:[%s0 + $0x5c] sm:$0xf]
  %v42 = vld [vmem:[%s0 + $0x60] sm:$0xf]
  %v43 = vld [vmem:[%s0 + $0x64] sm:$0xf]
  %v44 = vld [vmem:[%s0 + $0x68] sm:$0xf]
  %v45 = vld [vmem:[%s0 + $0x6c] sm:$0xf]
  %v46 = vld [vmem:[%s0 + $0x70] sm:$0xf]
  %v47 = vld [vmem:[%s0 + $0x74] sm:$0xf]
  %v48 = vld [vmem:[%s0 + $0x78] sm:$0xf]
  %v49 = vld [vmem:[%s0 + $0x7c] sm:$0xf]
  %s50 = scalar_lea.vmem %s0, 272
  %v51 = vld [vmem:[%s50] sm:$0xf]
  %v52 = vld [vmem:[%s50 + $0x4] sm:$0xf]
  %v53 = vld [vmem:[%s50 + $0x8] sm:$0xf]
  %v54 = vld [vmem:[%s50 + $0xc] sm:$0xf]
  %v55 = vld [vmem:[%s50 + $0x10] sm:$0xf]
  %v56 = vld [vmem:[%s50 + $0x14] sm:$0xf]
  %v57 = vld [vmem:[%s50 + $0x18] sm:$0xf]
  %v58 = vld [vmem:[%s50 + $0x1c] sm:$0xf]
  %v59 = vld [vmem:[%s50 + $0x20] sm:$0xf]
  %v60 = vld [vmem:[%s50 + $0x24] sm:$0xf]
  %v61 = vld [vmem:[%s50 + $0x28] sm:$0xf]
  %v62 = vld [vmem:[%s50 + $0x2c] sm:$0xf]
  %v63 = vld [vmem:[%s50 + $0x30] sm:$0xf]
  %v64 = vld [vmem:[%s50 + $0x34] sm:$0xf]
  %v65 = vld [vmem:[%s50 + $0x38] sm:$0xf]
  %v66 = vld [vmem:[%s50 + $0x3c] sm:$0xf]
  %v67 = vld [vmem:[%s50 + $0x40] sm:$0xf]
  %v68 = vld [vmem:[%s50 + $0x44] sm:$0xf]
  %v69 = vld [vmem:[%s50 + $0x48] sm:$0xf]
  %v70 = vld [vmem:[%s50 + $0x4c] sm:$0xf]
  %v71 = vld [vmem:[%s50 + $0x50] sm:$0xf]
  %v72 = vld [vmem:[%s50 + $0x54] sm:$0xf]
  %v73 = vld [vmem:[%s50 + $0x58] sm:$0xf]
  %v74 = vld [vmem:[%s50 + $0x5c] sm:$0xf]
  %v75 = vld [vmem:[%s50 + $0x60] sm:$0xf]
  %v76 = vld [vmem:[%s50 + $0x64] sm:$0xf]
  %v77 = vld [vmem:[%s50 + $0x68] sm:$0xf]
  %v78 = vld [vmem:[%s50 + $0x6c] sm:$0xf]
  %v79 = vld [vmem:[%s50 + $0x70] sm:$0xf]
  %v80 = vld [vmem:[%s50 + $0x74] sm:$0xf]
  %v81 = vld [vmem:[%s50 + $0x78] sm:$0xf]
  %v82 = vld [vmem:[%s50 + $0x7c] sm:$0xf]
  %v115 = vunpack.c.l.b16 %v18
  %v116 = vunpack.c.l.b16 %v19
  %v117 = vunpack.c.l.b16 %v20
  %v118 = vunpack.c.l.b16 %v21
  %v119 = vunpack.c.l.b16 %v22
  %v120 = vunpack.c.l.b16 %v23
  %v121 = vunpack.c.l.b16 %v24
  %v122 = vunpack.c.l.b16 %v25
  %v123 = vunpack.c.l.b16 %v26
  %v124 = vunpack.c.l.b16 %v27
  %v125 = vunpack.c.l.b16 %v28
  %v126 = vunpack.c.l.b16 %v29
  %v127 = vunpack.c.l.b16 %v30
  %v128 = vunpack.c.l.b16 %v31
  %v129 = vunpack.c.l.b16 %v32
  %v130 = vunpack.c.l.b16 %v33
  %v131 = vunpack.c.l.b16 %v34
  %v132 = vunpack.c.l.b16 %v35
  %v133 = vunpack.c.l.b16 %v36
  %v134 = vunpack.c.l.b16 %v37
  %v135 = vunpack.c.l.b16 %v38
  %v136 = vunpack.c.l.b16 %v39
  %v137 = vunpack.c.l.b16 %v40
  %v138 = vunpack.c.l.b16 %v41
  %v139 = vunpack.c.l.b16 %v42
  %v140 = vunpack.c.l.b16 %v43
  %v141 = vunpack.c.l.b16 %v44
  %v142 = vunpack.c.l.b16 %v45
  %v143 = vunpack.c.l.b16 %v46
  %v144 = vunpack.c.l.b16 %v47
  %v145 = vunpack.c.l.b16 %v48
  %v146 = vunpack.c.l.b16 %v49
  %v147 = vpack.c.b16 %v116, %v115
  %v148 = vpack.c.b16 %v118, %v117
  %v149 = vpack.c.b16 %v120, %v119
  %v150 = vpack.c.b16 %v122, %v121
  %v151 = vpack.c.b16 %v124, %v123
  %v152 = vpack.c.b16 %v126, %v125
  %v153 = vpack.c.b16 %v128, %v127
  %v154 = vpack.c.b16 %v130, %v129
  %v155 = vpack.c.b16 %v132, %v131
  %v156 = vpack.c.b16 %v134, %v133
  %v157 = vpack.c.b16 %v136, %v135
  %v158 = vpack.c.b16 %v138, %v137
  %v159 = vpack.c.b16 %v140, %v139
  %v160 = vpack.c.b16 %v142, %v141
  %v161 = vpack.c.b16 %v144, %v143
  %v162 = vpack.c.b16 %v146, %v145
  %v195 = vunpack.c.l.b16 %v51
  %v196 = vunpack.c.l.b16 %v52
  %v197 = vunpack.c.l.b16 %v53
  %v198 = vunpack.c.l.b16 %v54
  %v199 = vunpack.c.l.b16 %v55
  %v200 = vunpack.c.l.b16 %v56
  %v201 = vunpack.c.l.b16 %v57
  %v202 = vunpack.c.l.b16 %v58
  %v203 = vunpack.c.l.b16 %v59
  %v204 = vunpack.c.l.b16 %v60
  %v205 = vunpack.c.l.b16 %v61
  %v206 = vunpack.c.l.b16 %v62
  %v207 = vunpack.c.l.b16 %v63
  %v208 = vunpack.c.l.b16 %v64
  %v209 = vunpack.c.l.b16 %v65
  %v210 = vunpack.c.l.b16 %v66
  %v211 = vunpack.c.l.b16 %v67
  %v212 = vunpack.c.l.b16 %v68
  %v213 = vunpack.c.l.b16 %v69
  %v214 = vunpack.c.l.b16 %v70
  %v215 = vunpack.c.l.b16 %v71
  %v216 = vunpack.c.l.b16 %v72
  %v217 = vunpack.c.l.b16 %v73
  %v218 = vunpack.c.l.b16 %v74
  %v219 = vunpack.c.l.b16 %v75
  %v220 = vunpack.c.l.b16 %v76
  %v221 = vunpack.c.l.b16 %v77
  %v222 = vunpack.c.l.b16 %v78
  %v223 = vunpack.c.l.b16 %v79
  %v224 = vunpack.c.l.b16 %v80
  %v225 = vunpack.c.l.b16 %v81
  %v226 = vunpack.c.l.b16 %v82
  %v227 = vpack.c.b16 %v196, %v195
  %v228 = vpack.c.b16 %v198, %v197
  %v229 = vpack.c.b16 %v200, %v199
  %v230 = vpack.c.b16 %v202, %v201
  %v231 = vpack.c.b16 %v204, %v203
  %v232 = vpack.c.b16 %v206, %v205
  %v233 = vpack.c.b16 %v208, %v207
  %v234 = vpack.c.b16 %v210, %v209
  %v235 = vpack.c.b16 %v212, %v211
  %v236 = vpack.c.b16 %v214, %v213
  %v237 = vpack.c.b16 %v216, %v215
  %v238 = vpack.c.b16 %v218, %v217
  %v239 = vpack.c.b16 %v220, %v219
  %v240 = vpack.c.b16 %v222, %v221
  %v241 = vpack.c.b16 %v224, %v223
  %v242 = vpack.c.b16 %v226, %v225
  %s243 = scalar_lea.vmem %s0, 136
  %v244 = vld [vmem:[%s243] sm:$0xf]
  %v245 = vld [vmem:[%s243 + $0x4] sm:$0xf]
  %v246 = vld [vmem:[%s243 + $0x8] sm:$0xf]
  %v247 = vld [vmem:[%s243 + $0xc] sm:$0xf]
  %v248 = vld [vmem:[%s243 + $0x10] sm:$0xf]
  %v249 = vld [vmem:[%s243 + $0x14] sm:$0xf]
  %v250 = vld [vmem:[%s243 + $0x18] sm:$0xf]
  %v251 = vld [vmem:[%s243 + $0x1c] sm:$0xf]
  %v252 = vld [vmem:[%s243 + $0x20] sm:$0xf]
  %v253 = vld [vmem:[%s243 + $0x24] sm:$0xf]
  %v254 = vld [vmem:[%s243 + $0x28] sm:$0xf]
  %v255 = vld [vmem:[%s243 + $0x2c] sm:$0xf]
  %v256 = vld [vmem:[%s243 + $0x30] sm:$0xf]
  %v257 = vld [vmem:[%s243 + $0x34] sm:$0xf]
  %v258 = vld [vmem:[%s243 + $0x38] sm:$0xf]
  %v259 = vld [vmem:[%s243 + $0x3c] sm:$0xf]
  %v260 = vld [vmem:[%s243 + $0x40] sm:$0xf]
  %v261 = vld [vmem:[%s243 + $0x44] sm:$0xf]
  %v262 = vld [vmem:[%s243 + $0x48] sm:$0xf]
  %v263 = vld [vmem:[%s243 + $0x4c] sm:$0xf]
  %v264 = vld [vmem:[%s243 + $0x50] sm:$0xf]
  %v265 = vld [vmem:[%s243 + $0x54] sm:$0xf]
  %v266 = vld [vmem:[%s243 + $0x58] sm:$0xf]
  %v267 = vld [vmem:[%s243 + $0x5c] sm:$0xf]
  %v268 = vld [vmem:[%s243 + $0x60] sm:$0xf]
  %v269 = vld [vmem:[%s243 + $0x64] sm:$0xf]
  %v270 = vld [vmem:[%s243 + $0x68] sm:$0xf]
  %v271 = vld [vmem:[%s243 + $0x6c] sm:$0xf]
  %v272 = vld [vmem:[%s243 + $0x70] sm:$0xf]
  %v273 = vld [vmem:[%s243 + $0x74] sm:$0xf]
  %v274 = vld [vmem:[%s243 + $0x78] sm:$0xf]
  %v275 = vld [vmem:[%s243 + $0x7c] sm:$0xf]
  %s276 = scalar_lea.vmem %s0, 408
  %v277 = vld [vmem:[%s276] sm:$0xf]
  %v278 = vld [vmem:[%s276 + $0x4] sm:$0xf]
  %v279 = vld [vmem:[%s276 + $0x8] sm:$0xf]
  %v280 = vld [vmem:[%s276 + $0xc] sm:$0xf]
  %v281 = vld [vmem:[%s276 + $0x10] sm:$0xf]
  %v282 = vld [vmem:[%s276 + $0x14] sm:$0xf]
  %v283 = vld [vmem:[%s276 + $0x18] sm:$0xf]
  %v284 = vld [vmem:[%s276 + $0x1c] sm:$0xf]
  %v285 = vld [vmem:[%s276 + $0x20] sm:$0xf]
  %v286 = vld [vmem:[%s276 + $0x24] sm:$0xf]
  %v287 = vld [vmem:[%s276 + $0x28] sm:$0xf]
  %v288 = vld [vmem:[%s276 + $0x2c] sm:$0xf]
  %v289 = vld [vmem:[%s276 + $0x30] sm:$0xf]
  %v290 = vld [vmem:[%s276 + $0x34] sm:$0xf]
  %v291 = vld [vmem:[%s276 + $0x38] sm:$0xf]
  %v292 = vld [vmem:[%s276 + $0x3c] sm:$0xf]
  %v293 = vld [vmem:[%s276 + $0x40] sm:$0xf]
  %v294 = vld [vmem:[%s276 + $0x44] sm:$0xf]
  %v295 = vld [vmem:[%s276 + $0x48] sm:$0xf]
  %v296 = vld [vmem:[%s276 + $0x4c] sm:$0xf]
  %v297 = vld [vmem:[%s276 + $0x50] sm:$0xf]
  %v298 = vld [vmem:[%s276 + $0x54] sm:$0xf]
  %v299 = vld [vmem:[%s276 + $0x58] sm:$0xf]
  %v300 = vld [vmem:[%s276 + $0x5c] sm:$0xf]
  %v301 = vld [vmem:[%s276 + $0x60] sm:$0xf]
  %v302 = vld [vmem:[%s276 + $0x64] sm:$0xf]
  %v303 = vld [vmem:[%s276 + $0x68] sm:$0xf]
  %v304 = vld [vmem:[%s276 + $0x6c] sm:$0xf]
  %v305 = vld [vmem:[%s276 + $0x70] sm:$0xf]
  %v306 = vld [vmem:[%s276 + $0x74] sm:$0xf]
  %v307 = vld [vmem:[%s276 + $0x78] sm:$0xf]
  %v308 = vld [vmem:[%s276 + $0x7c] sm:$0xf]
  %v341 = vunpack.c.l.b16 %v244
  %v342 = vunpack.c.l.b16 %v245
  %v343 = vunpack.c.l.b16 %v246
  %v344 = vunpack.c.l.b16 %v247
  %v345 = vunpack.c.l.b16 %v248
  %v346 = vunpack.c.l.b16 %v249
  %v347 = vunpack.c.l.b16 %v250
  %v348 = vunpack.c.l.b16 %v251
  %v349 = vunpack.c.l.b16 %v252
  %v350 = vunpack.c.l.b16 %v253
  %v351 = vunpack.c.l.b16 %v254
  %v352 = vunpack.c.l.b16 %v255
  %v353 = vunpack.c.l.b16 %v256
  %v354 = vunpack.c.l.b16 %v257
  %v355 = vunpack.c.l.b16 %v258
  %v356 = vunpack.c.l.b16 %v259
  %v357 = vunpack.c.l.b16 %v260
  %v358 = vunpack.c.l.b16 %v261
  %v359 = vunpack.c.l.b16 %v262
  %v360 = vunpack.c.l.b16 %v263
  %v361 = vunpack.c.l.b16 %v264
  %v362 = vunpack.c.l.b16 %v265
  %v363 = vunpack.c.l.b16 %v266
  %v364 = vunpack.c.l.b16 %v267
  %v365 = vunpack.c.l.b16 %v268
  %v366 = vunpack.c.l.b16 %v269
  %v367 = vunpack.c.l.b16 %v270
  %v368 = vunpack.c.l.b16 %v271
  %v369 = vunpack.c.l.b16 %v272
  %v370 = vunpack.c.l.b16 %v273
  %v371 = vunpack.c.l.b16 %v274
  %v372 = vunpack.c.l.b16 %v275
  %v373 = vpack.c.b16 %v342, %v341
  %v374 = vpack.c.b16 %v344, %v343
  %v375 = vpack.c.b16 %v346, %v345
  %v376 = vpack.c.b16 %v348, %v347
  %v377 = vpack.c.b16 %v350, %v349
  %v378 = vpack.c.b16 %v352, %v351
  %v379 = vpack.c.b16 %v354, %v353
  %v380 = vpack.c.b16 %v356, %v355
  %v381 = vpack.c.b16 %v358, %v357
  %v382 = vpack.c.b16 %v360, %v359
  %v383 = vpack.c.b16 %v362, %v361
  %v384 = vpack.c.b16 %v364, %v363
  %v385 = vpack.c.b16 %v366, %v365
  %v386 = vpack.c.b16 %v368, %v367
  %v387 = vpack.c.b16 %v370, %v369
  %v388 = vpack.c.b16 %v372, %v371
  %v421 = vunpack.c.l.b16 %v277
  %v422 = vunpack.c.l.b16 %v278
  %v423 = vunpack.c.l.b16 %v279
  %v424 = vunpack.c.l.b16 %v280
  %v425 = vunpack.c.l.b16 %v281
  %v426 = vunpack.c.l.b16 %v282
  %v427 = vunpack.c.l.b16 %v283
  %v428 = vunpack.c.l.b16 %v284
  %v429 = vunpack.c.l.b16 %v285
  %v430 = vunpack.c.l.b16 %v286
  %v431 = vunpack.c.l.b16 %v287
  %v432 = vunpack.c.l.b16 %v288
  %v433 = vunpack.c.l.b16 %v289
  %v434 = vunpack.c.l.b16 %v290
  %v435 = vunpack.c.l.b16 %v291
  %v436 = vunpack.c.l.b16 %v292
  %v437 = vunpack.c.l.b16 %v293
  %v438 = vunpack.c.l.b16 %v294
  %v439 = vunpack.c.l.b16 %v295
  %v440 = vunpack.c.l.b16 %v296
  %v441 = vunpack.c.l.b16 %v297
  %v442 = vunpack.c.l.b16 %v298
  %v443 = vunpack.c.l.b16 %v299
  %v444 = vunpack.c.l.b16 %v300
  %v445 = vunpack.c.l.b16 %v301
  %v446 = vunpack.c.l.b16 %v302
  %v447 = vunpack.c.l.b16 %v303
  %v448 = vunpack.c.l.b16 %v304
  %v449 = vunpack.c.l.b16 %v305
  %v450 = vunpack.c.l.b16 %v306
  %v451 = vunpack.c.l.b16 %v307
  %v452 = vunpack.c.l.b16 %v308
  %v453 = vpack.c.b16 %v422, %v421
  %v454 = vpack.c.b16 %v424, %v423
  %v455 = vpack.c.b16 %v426, %v425
  %v456 = vpack.c.b16 %v428, %v427
  %v457 = vpack.c.b16 %v430, %v429
  %v458 = vpack.c.b16 %v432, %v431
  %v459 = vpack.c.b16 %v434, %v433
  %v460 = vpack.c.b16 %v436, %v435
  %v461 = vpack.c.b16 %v438, %v437
  %v462 = vpack.c.b16 %v440, %v439
  %v463 = vpack.c.b16 %v442, %v441
  %v464 = vpack.c.b16 %v444, %v443
  %v465 = vpack.c.b16 %v446, %v445
  %v466 = vpack.c.b16 %v448, %v447
  %v467 = vpack.c.b16 %v450, %v449
  %v468 = vpack.c.b16 %v452, %v451
  %v469 = vld [vmem:[%s0 + $0x80] sm:$0xf]
  %v470 = vld [vmem:[%s0 + $0x84] sm:$0xf]
  %v471 = vld [vmem:[%s50 + $0x80] sm:$0xf]
  %v472 = vld [vmem:[%s50 + $0x84] sm:$0xf]
  %v475 = vunpack.c.l.b16 %v469
  %v476 = vunpack.c.l.b16 %v470
  %v477 = vpack.c.b16 %v476, %v475
  %v480 = vunpack.c.l.b16 %v471
  %v481 = vunpack.c.l.b16 %v472
  %v482 = vpack.c.b16 %v481, %v480
  %v483 = vld [vmem:[%s243 + $0x80] sm:$0xf]
  %v484 = vld [vmem:[%s243 + $0x84] sm:$0xf]
  %v485 = vld [vmem:[%s276 + $0x80] sm:$0xf]
  %v486 = vld [vmem:[%s276 + $0x84] sm:$0xf]
  %v489 = vunpack.c.l.b16 %v483
  %v490 = vunpack.c.l.b16 %v484
  %v491 = vpack.c.b16 %v490, %v489
  %v494 = vunpack.c.l.b16 %v485
  %v495 = vunpack.c.l.b16 %v486
  %v496 = vpack.c.b16 %v495, %v494
  %497 = vrot.lane.b32.xlu0 %v373, 32
  %v498 = vpop.permute.xlu0 %497
  %499 = vrot.lane.b32.xlu0 %v374, 32
  %v500 = vpop.permute.xlu0 %499
  %501 = vrot.lane.b32.xlu0 %v375, 32
  %v502 = vpop.permute.xlu0 %501
  %503 = vrot.lane.b32.xlu0 %v376, 32
  %v504 = vpop.permute.xlu0 %503
  %505 = vrot.lane.b32.xlu0 %v377, 32
  %v506 = vpop.permute.xlu0 %505
  %507 = vrot.lane.b32.xlu0 %v378, 32
  %v508 = vpop.permute.xlu0 %507
  %509 = vrot.lane.b32.xlu0 %v379, 32
  %v510 = vpop.permute.xlu0 %509
  %511 = vrot.lane.b32.xlu0 %v380, 32
  %v512 = vpop.permute.xlu0 %511
  %513 = vrot.lane.b32.xlu0 %v381, 32
  %v514 = vpop.permute.xlu0 %513
  %515 = vrot.lane.b32.xlu0 %v382, 32
  %v516 = vpop.permute.xlu0 %515
  %517 = vrot.lane.b32.xlu0 %v383, 32
  %v518 = vpop.permute.xlu0 %517
  %519 = vrot.lane.b32.xlu0 %v384, 32
  %v520 = vpop.permute.xlu0 %519
  %521 = vrot.lane.b32.xlu0 %v385, 32
  %v522 = vpop.permute.xlu0 %521
  %523 = vrot.lane.b32.xlu0 %v386, 32
  %v524 = vpop.permute.xlu0 %523
  %525 = vrot.lane.b32.xlu0 %v387, 32
  %v526 = vpop.permute.xlu0 %525
  %527 = vrot.lane.b32.xlu0 %v388, 32
  %v528 = vpop.permute.xlu0 %527
  %529 = vrot.lane.b32.xlu0 %v453, 32
  %v530 = vpop.permute.xlu0 %529
  %531 = vrot.lane.b32.xlu0 %v454, 32
  %v532 = vpop.permute.xlu0 %531
  %533 = vrot.lane.b32.xlu0 %v455, 32
  %v534 = vpop.permute.xlu0 %533
  %535 = vrot.lane.b32.xlu0 %v456, 32
  %v536 = vpop.permute.xlu0 %535
  %537 = vrot.lane.b32.xlu0 %v457, 32
  %v538 = vpop.permute.xlu0 %537
  %539 = vrot.lane.b32.xlu0 %v458, 32
  %v540 = vpop.permute.xlu0 %539
  %541 = vrot.lane.b32.xlu0 %v459, 32
  %v542 = vpop.permute.xlu0 %541
  %543 = vrot.lane.b32.xlu0 %v460, 32
  %v544 = vpop.permute.xlu0 %543
  %545 = vrot.lane.b32.xlu0 %v461, 32
  %v546 = vpop.permute.xlu0 %545
  %547 = vrot.lane.b32.xlu0 %v462, 32
  %v548 = vpop.permute.xlu0 %547
  %549 = vrot.lane.b32.xlu0 %v463, 32
  %v550 = vpop.permute.xlu0 %549
  %551 = vrot.lane.b32.xlu0 %v464, 32
  %v552 = vpop.permute.xlu0 %551
  %553 = vrot.lane.b32.xlu0 %v465, 32
  %v554 = vpop.permute.xlu0 %553
  %555 = vrot.lane.b32.xlu0 %v466, 32
  %v556 = vpop.permute.xlu0 %555
  %557 = vrot.lane.b32.xlu0 %v467, 32
  %v558 = vpop.permute.xlu0 %557
  %559 = vrot.lane.b32.xlu0 %v468, 32
  %v560 = vpop.permute.xlu0 %559
  %561 = vrot.lane.b32.xlu0 %v148, 64
  %v562 = vpop.permute.xlu0 %561
  %563 = vrot.lane.b32.xlu0 %v149, 64
  %v564 = vpop.permute.xlu0 %563
  %565 = vrot.lane.b32.xlu0 %v150, 64
  %v566 = vpop.permute.xlu0 %565
  %567 = vrot.lane.b32.xlu0 %v151, 64
  %v568 = vpop.permute.xlu0 %567
  %569 = vrot.lane.b32.xlu0 %v152, 64
  %v570 = vpop.permute.xlu0 %569
  %571 = vrot.lane.b32.xlu0 %v153, 64
  %v572 = vpop.permute.xlu0 %571
  %573 = vrot.lane.b32.xlu0 %v154, 64
  %v574 = vpop.permute.xlu0 %573
  %575 = vrot.lane.b32.xlu0 %v155, 64
  %v576 = vpop.permute.xlu0 %575
  %577 = vrot.lane.b32.xlu0 %v156, 64
  %v578 = vpop.permute.xlu0 %577
  %579 = vrot.lane.b32.xlu0 %v157, 64
  %v580 = vpop.permute.xlu0 %579
  %581 = vrot.lane.b32.xlu0 %v158, 64
  %v582 = vpop.permute.xlu0 %581
  %583 = vrot.lane.b32.xlu0 %v159, 64
  %v584 = vpop.permute.xlu0 %583
  %585 = vrot.lane.b32.xlu0 %v160, 64
  %v586 = vpop.permute.xlu0 %585
  %587 = vrot.lane.b32.xlu0 %v161, 64
  %v588 = vpop.permute.xlu0 %587
  %589 = vrot.lane.b32.xlu0 %v162, 64
  %v590 = vpop.permute.xlu0 %589
  %591 = vrot.lane.b32.xlu0 %v477, 64
  %v592 = vpop.permute.xlu0 %591
  %593 = vrot.lane.b32.xlu0 %v228, 64
  %v594 = vpop.permute.xlu0 %593
  %595 = vrot.lane.b32.xlu0 %v229, 64
  %v596 = vpop.permute.xlu0 %595
  %597 = vrot.lane.b32.xlu0 %v230, 64
  %v598 = vpop.permute.xlu0 %597
  %599 = vrot.lane.b32.xlu0 %v231, 64
  %v600 = vpop.permute.xlu0 %599
  %601 = vrot.lane.b32.xlu0 %v232, 64
  %v602 = vpop.permute.xlu0 %601
  %603 = vrot.lane.b32.xlu0 %v233, 64
  %v604 = vpop.permute.xlu0 %603
  %605 = vrot.lane.b32.xlu0 %v234, 64
  %v606 = vpop.permute.xlu0 %605
  %607 = vrot.lane.b32.xlu0 %v235, 64
  %v608 = vpop.permute.xlu0 %607
  %609 = vrot.lane.b32.xlu0 %v236, 64
  %v610 = vpop.permute.xlu0 %609
  %611 = vrot.lane.b32.xlu0 %v237, 64
  %v612 = vpop.permute.xlu0 %611
  %613 = vrot.lane.b32.xlu0 %v238, 64
  %v614 = vpop.permute.xlu0 %613
  %615 = vrot.lane.b32.xlu0 %v239, 64
  %v616 = vpop.permute.xlu0 %615
  %617 = vrot.lane.b32.xlu0 %v240, 64
  %v618 = vpop.permute.xlu0 %617
  %619 = vrot.lane.b32.xlu0 %v241, 64
  %v620 = vpop.permute.xlu0 %619
  %621 = vrot.lane.b32.xlu0 %v242, 64
  %v622 = vpop.permute.xlu0 %621
  %623 = vrot.lane.b32.xlu0 %v482, 64
  %v624 = vpop.permute.xlu0 %623
  %625 = vrot.lane.b32.xlu0 %v374, 96
  %v626 = vpop.permute.xlu0 %625
  %627 = vrot.lane.b32.xlu0 %v375, 96
  %v628 = vpop.permute.xlu0 %627
  %629 = vrot.lane.b32.xlu0 %v376, 96
  %v630 = vpop.permute.xlu0 %629
  %631 = vrot.lane.b32.xlu0 %v377, 96
  %v632 = vpop.permute.xlu0 %631
  %633 = vrot.lane.b32.xlu0 %v378, 96
  %v634 = vpop.permute.xlu0 %633
  %635 = vrot.lane.b32.xlu0 %v379, 96
  %v636 = vpop.permute.xlu0 %635
  %637 = vrot.lane.b32.xlu0 %v380, 96
  %v638 = vpop.permute.xlu0 %637
  %639 = vrot.lane.b32.xlu0 %v381, 96
  %v640 = vpop.permute.xlu0 %639
  %641 = vrot.lane.b32.xlu0 %v382, 96
  %v642 = vpop.permute.xlu0 %641
  %643 = vrot.lane.b32.xlu0 %v383, 96
  %v644 = vpop.permute.xlu0 %643
  %645 = vrot.lane.b32.xlu0 %v384, 96
  %v646 = vpop.permute.xlu0 %645
  %647 = vrot.lane.b32.xlu0 %v385, 96
  %v648 = vpop.permute.xlu0 %647
  %649 = vrot.lane.b32.xlu0 %v386, 96
  %v650 = vpop.permute.xlu0 %649
  %651 = vrot.lane.b32.xlu0 %v387, 96
  %v652 = vpop.permute.xlu0 %651
  %653 = vrot.lane.b32.xlu0 %v388, 96
  %v654 = vpop.permute.xlu0 %653
  %655 = vrot.lane.b32.xlu0 %v491, 96
  %v656 = vpop.permute.xlu0 %655
  %657 = vrot.lane.b32.xlu0 %v454, 96
  %v658 = vpop.permute.xlu0 %657
  %659 = vrot.lane.b32.xlu0 %v455, 96
  %v660 = vpop.permute.xlu0 %659
  %661 = vrot.lane.b32.xlu0 %v456, 96
  %v662 = vpop.permute.xlu0 %661
  %663 = vrot.lane.b32.xlu0 %v457, 96
  %v664 = vpop.permute.xlu0 %663
  %665 = vrot.lane.b32.xlu0 %v458, 96
  %v666 = vpop.permute.xlu0 %665
  %667 = vrot.lane.b32.xlu0 %v459, 96
  %v668 = vpop.permute.xlu0 %667
  %669 = vrot.lane.b32.xlu0 %v460, 96
  %v670 = vpop.permute.xlu0 %669
  %671 = vrot.lane.b32.xlu0 %v461, 96
  %v672 = vpop.permute.xlu0 %671
  %673 = vrot.lane.b32.xlu0 %v462, 96
  %v674 = vpop.permute.xlu0 %673
  %675 = vrot.lane.b32.xlu0 %v463, 96
  %v676 = vpop.permute.xlu0 %675
  %677 = vrot.lane.b32.xlu0 %v464, 96
  %v678 = vpop.permute.xlu0 %677
  %679 = vrot.lane.b32.xlu0 %v465, 96
  %v680 = vpop.permute.xlu0 %679
  %681 = vrot.lane.b32.xlu0 %v466, 96
  %v682 = vpop.permute.xlu0 %681
  %683 = vrot.lane.b32.xlu0 %v467, 96
  %v684 = vpop.permute.xlu0 %683
  %685 = vrot.lane.b32.xlu0 %v468, 96
  %v686 = vpop.permute.xlu0 %685
  %687 = vrot.lane.b32.xlu0 %v496, 96
  %v688 = vpop.permute.xlu0 %687
  %vm689 = vcmask 261120
  %v692 = vsel %vm689, %v147, %v498
  %v695 = vsel %vm689, %v148, %v500
  %v698 = vsel %vm689, %v149, %v502
  %v701 = vsel %vm689, %v150, %v504
  %v704 = vsel %vm689, %v151, %v506
  %v707 = vsel %vm689, %v152, %v508
  %v710 = vsel %vm689, %v153, %v510
  %v713 = vsel %vm689, %v154, %v512
  %v716 = vsel %vm689, %v155, %v514
  %v719 = vsel %vm689, %v156, %v516
  %v722 = vsel %vm689, %v157, %v518
  %v725 = vsel %vm689, %v158, %v520
  %v728 = vsel %vm689, %v159, %v522
  %v731 = vsel %vm689, %v160, %v524
  %v734 = vsel %vm689, %v161, %v526
  %v737 = vsel %vm689, %v162, %v528
  %v740 = vsel %vm689, %v227, %v530
  %v743 = vsel %vm689, %v228, %v532
  %v746 = vsel %vm689, %v229, %v534
  %v749 = vsel %vm689, %v230, %v536
  %v752 = vsel %vm689, %v231, %v538
  %v755 = vsel %vm689, %v232, %v540
  %v758 = vsel %vm689, %v233, %v542
  %v761 = vsel %vm689, %v234, %v544
  %v764 = vsel %vm689, %v235, %v546
  %v767 = vsel %vm689, %v236, %v548
  %v770 = vsel %vm689, %v237, %v550
  %v773 = vsel %vm689, %v238, %v552
  %v776 = vsel %vm689, %v239, %v554
  %v779 = vsel %vm689, %v240, %v556
  %v782 = vsel %vm689, %v241, %v558
  %v785 = vsel %vm689, %v242, %v560
  %vm786 = vcmask 523264
  %v788 = vsel %vm786, %v692, %v562
  %v790 = vsel %vm786, %v695, %v564
  %v792 = vsel %vm786, %v698, %v566
  %v794 = vsel %vm786, %v701, %v568
  %v796 = vsel %vm786, %v704, %v570
  %v798 = vsel %vm786, %v707, %v572
  %v800 = vsel %vm786, %v710, %v574
  %v802 = vsel %vm786, %v713, %v576
  %v804 = vsel %vm786, %v716, %v578
  %v806 = vsel %vm786, %v719, %v580
  %v808 = vsel %vm786, %v722, %v582
  %v810 = vsel %vm786, %v725, %v584
  %v812 = vsel %vm786, %v728, %v586
  %v814 = vsel %vm786, %v731, %v588
  %v816 = vsel %vm786, %v734, %v590
  %v818 = vsel %vm786, %v737, %v592
  %v820 = vsel %vm786, %v740, %v594
  %v822 = vsel %vm786, %v743, %v596
  %v824 = vsel %vm786, %v746, %v598
  %v826 = vsel %vm786, %v749, %v600
  %v828 = vsel %vm786, %v752, %v602
  %v830 = vsel %vm786, %v755, %v604
  %v832 = vsel %vm786, %v758, %v606
  %v834 = vsel %vm786, %v761, %v608
  %v836 = vsel %vm786, %v764, %v610
  %v838 = vsel %vm786, %v767, %v612
  %v840 = vsel %vm786, %v770, %v614
  %v842 = vsel %vm786, %v773, %v616
  %v844 = vsel %vm786, %v776, %v618
  %v846 = vsel %vm786, %v779, %v620
  %v848 = vsel %vm786, %v782, %v622
  %v850 = vsel %vm786, %v785, %v624
  %vm851 = vcmask 785408
  %v853 = vsel %vm851, %v788, %v626
  %v856 = vsel %vm851, %v790, %v628
  %v859 = vsel %vm851, %v792, %v630
  %v862 = vsel %vm851, %v794, %v632
  %v865 = vsel %vm851, %v796, %v634
  %v868 = vsel %vm851, %v798, %v636
  %v871 = vsel %vm851, %v800, %v638
  %v874 = vsel %vm851, %v802, %v640
  %v877 = vsel %vm851, %v804, %v642
  %v880 = vsel %vm851, %v806, %v644
  %v883 = vsel %vm851, %v808, %v646
  %v886 = vsel %vm851, %v810, %v648
  %v889 = vsel %vm851, %v812, %v650
  %v892 = vsel %vm851, %v814, %v652
  %v895 = vsel %vm851, %v816, %v654
  %v898 = vsel %vm851, %v818, %v656
  %v901 = vsel %vm851, %v820, %v658
  %v904 = vsel %vm851, %v822, %v660
  %v907 = vsel %vm851, %v824, %v662
  %v910 = vsel %vm851, %v826, %v664
  %v913 = vsel %vm851, %v828, %v666
  %v916 = vsel %vm851, %v830, %v668
  %v919 = vsel %vm851, %v832, %v670
  %v922 = vsel %vm851, %v834, %v672
  %v925 = vsel %vm851, %v836, %v674
  %v928 = vsel %vm851, %v838, %v676
  %v931 = vsel %vm851, %v840, %v678
  %v934 = vsel %vm851, %v842, %v680
  %v937 = vsel %vm851, %v844, %v682
  %v940 = vsel %vm851, %v846, %v684
  %v943 = vsel %vm851, %v848, %v686
  %v946 = vsel %vm851, %v850, %v688
  %v948 = vld [vmem:[%s1] sm:$0xf]
  %v949 = vld [vmem:[%s1 + $0x4] sm:$0xf]
  %v952 = vunpack.c.l.b16 %v948
  %v953 = vunpack.c.l.b16 %v949
  %v954 = vpack.c.b16 %v953, %v952
  %956 = vmatprep.subr.bf16.mxu0 0
  %957 = vmatpush1.bf16.xpose.msra.mxu0 %v853
  %958 = vmatprep.subr.bf16.mxu0 0
  %959 = vmatpush1.bf16.xpose.msra.mxu0 %v856
  %960 = vmatprep.subr.bf16.mxu0 0
  %961 = vmatpush1.bf16.xpose.msra.mxu0 %v859
  %962 = vmatprep.subr.bf16.mxu0 0
  %963 = vmatpush1.bf16.xpose.msra.mxu0 %v862
  %964 = vmatprep.subr.bf16.mxu0 0
  %965 = vmatpush1.bf16.xpose.msra.mxu0 %v865
  %966 = vmatprep.subr.bf16.mxu0 0
  %967 = vmatpush1.bf16.xpose.msra.mxu0 %v868
  %968 = vmatprep.subr.bf16.mxu0 0
  %969 = vmatpush1.bf16.xpose.msra.mxu0 %v871
  %970 = vmatprep.subr.bf16.mxu0 0
  %971 = vmatpush1.bf16.xpose.msra.mxu0 %v874
  %972 = vmatprep.subr.bf16.mxu0 0
  %973 = vmatpush1.bf16.xpose.msra.mxu0 %v877
  %974 = vmatprep.subr.bf16.mxu0 0
  %975 = vmatpush1.bf16.xpose.msra.mxu0 %v880
  %976 = vmatprep.subr.bf16.mxu0 0
  %977 = vmatpush1.bf16.xpose.msra.mxu0 %v883
  %978 = vmatprep.subr.bf16.mxu0 0
  %979 = vmatpush1.bf16.xpose.msra.mxu0 %v886
  %980 = vmatprep.subr.bf16.mxu0 0
  %981 = vmatpush1.bf16.xpose.msra.mxu0 %v889
  %982 = vmatprep.subr.bf16.mxu0 0
  %983 = vmatpush1.bf16.xpose.msra.mxu0 %v892
  %984 = vmatprep.subr.bf16.mxu0 0
  %985 = vmatpush1.bf16.xpose.msra.mxu0 %v895
  %986 = vmatprep.subr.bf16.mxu0 0
  %987 = vmatpush1.bf16.xpose.msra.mxu0 %v898
  %988 = vmatprep.mubr.bf16.mxu0 0
  %989 = vmatmul.mubr.bf16.gmra.mrb[0].mxu0 %v954
  %v990 = vpop.f32.mrb[0].mxu0
  %v991 = vadd.f32 0.0, %v990
  %v992 = vpop.f32.mrb[0].mxu0
  %v993 = vadd.f32 0.0, %v992
  %v994 = vpop.f32.mrb[0].mxu0
  %v995 = vadd.f32 0.0, %v994
  %v996 = vpop.f32.mrb[0].mxu0
  %v997 = vadd.f32 0.0, %v996
  %998 = vdwg.mxu0
  %999 = vmatprep.subr.bf16.mxu0 0
  %1000 = vmatpush1.bf16.xpose.msra.mxu0 %v901
  %1001 = vmatprep.subr.bf16.mxu0 0
  %1002 = vmatpush1.bf16.xpose.msra.mxu0 %v904
  %1003 = vmatprep.subr.bf16.mxu0 0
  %1004 = vmatpush1.bf16.xpose.msra.mxu0 %v907
  %1005 = vmatprep.subr.bf16.mxu0 0
  %1006 = vmatpush1.bf16.xpose.msra.mxu0 %v910
  %1007 = vmatprep.subr.bf16.mxu0 0
  %1008 = vmatpush1.bf16.xpose.msra.mxu0 %v913
  %1009 = vmatprep.subr.bf16.mxu0 0
  %1010 = vmatpush1.bf16.xpose.msra.mxu0 %v916
  %1011 = vmatprep.subr.bf16.mxu0 0
  %1012 = vmatpush1.bf16.xpose.msra.mxu0 %v919
  %1013 = vmatprep.subr.bf16.mxu0 0
  %1014 = vmatpush1.bf16.xpose.msra.mxu0 %v922
  %1015 = vmatprep.subr.bf16.mxu0 0
  %1016 = vmatpush1.bf16.xpose.msra.mxu0 %v925
  %1017 = vmatprep.subr.bf16.mxu0 0
  %1018 = vmatpush1.bf16.xpose.msra.mxu0 %v928
  %1019 = vmatprep.subr.bf16.mxu0 0
  %1020 = vmatpush1.bf16.xpose.msra.mxu0 %v931
  %1021 = vmatprep.subr.bf16.mxu0 0
  %1022 = vmatpush1.bf16.xpose.msra.mxu0 %v934
  %1023 = vmatprep.subr.bf16.mxu0 0
  %1024 = vmatpush1.bf16.xpose.msra.mxu0 %v937
  %1025 = vmatprep.subr.bf16.mxu0 0
  %1026 = vmatpush1.bf16.xpose.msra.mxu0 %v940
  %1027 = vmatprep.subr.bf16.mxu0 0
  %1028 = vmatpush1.bf16.xpose.msra.mxu0 %v943
  %1029 = vmatprep.subr.bf16.mxu0 0
  %1030 = vmatpush1.bf16.xpose.msra.mxu0 %v946
  %1031 = vmatprep.mubr.bf16.mxu0 0
  %1032 = vmatmul.mubr.bf16.gmra.mrb[0].mxu0 %v954
  %v1033 = vpop.f32.mrb[0].mxu0
  %v1034 = vadd.f32 0.0, %v1033
  %v1035 = vpop.f32.mrb[0].mxu0
  %v1036 = vadd.f32 0.0, %v1035
  %v1037 = vpop.f32.mrb[0].mxu0
  %v1038 = vadd.f32 0.0, %v1037
  %v1039 = vpop.f32.mrb[0].mxu0
  %v1040 = vadd.f32 0.0, %v1039
  %1041 = vdwg.mxu0
  %v1042 = vadd.f32 %v991, %v993
  %v1043 = vadd.f32 %v1042, %v1034
  %v1044 = vadd.f32 %v1043, %v1036
  %1045 = vadd.xlane.f32.xlu0 %v1044
  %v1046 = vpop.xlane.xlu0 %1045
  %v1047 = vadd.f32 %v995, %v997
  %v1048 = vadd.f32 %v1047, %v1038
  %v1049 = vadd.f32 %v1048, %v1040
  %1050 = vadd.xlane.f32.xlu0 %v1049
  %v1051 = vpop.xlane.xlu0 %1050
  %v1052 = vrcp.pop 512.0
  %v1053 = vmul.f32 %v1046, %v1052
  %v1054 = vmul.f32 %v1051, %v1052
  %v1055 = vsub.f32 %v991, %v1053
  %v1056 = vsub.f32 %v993, %v1053
  %v1057 = vsub.f32 %v1034, %v1053
  %v1058 = vsub.f32 %v1036, %v1053
  %v1059 = vsub.f32 %v995, %v1054
  %v1060 = vsub.f32 %v997, %v1054
  %v1061 = vsub.f32 %v1038, %v1054
  %v1062 = vsub.f32 %v1040, %v1054
  %v1063 = vmul.f32 %v1055, %v1055
  %v1064 = vmul.f32 %v1056, %v1056
  %v1065 = vmul.f32 %v1057, %v1057
  %v1066 = vmul.f32 %v1058, %v1058
  %v1067 = vmul.f32 %v1059, %v1059
  %v1068 = vmul.f32 %v1060, %v1060
  %v1069 = vmul.f32 %v1061, %v1061
  %v1070 = vmul.f32 %v1062, %v1062
  %v1071 = vadd.f32 %v1063, %v1064
  %v1072 = vadd.f32 %v1071, %v1065
  %v1073 = vadd.f32 %v1072, %v1066
  %1074 = vadd.xlane.f32.xlu0 %v1073
  %v1075 = vpop.xlane.xlu0 %1074
  %v1076 = vadd.f32 %v1067, %v1068
  %v1077 = vadd.f32 %v1076, %v1069
  %v1078 = vadd.f32 %v1077, %v1070
  %1079 = vadd.xlane.f32.xlu0 %v1078
  %v1080 = vpop.xlane.xlu0 %1079
  %v1081 = vmul.f32 %v1075, %v1052
  %v1082 = vmul.f32 %v1080, %v1052
  %v1083 = vadd.f32 %v1081, 1e-05
  %v1084 = vadd.f32 %v1082, 1e-05
  %v1085 = vrsqrt.pop %v1083
  %v1086 = vrsqrt.pop %v1084
  %v1087 = vmul.f32 %v1055, %v1085
  %v1088 = vmul.f32 %v1056, %v1085
  %v1089 = vmul.f32 %v1057, %v1085
  %v1090 = vmul.f32 %v1058, %v1085
  %v1091 = vmul.f32 %v1059, %v1086
  %v1092 = vmul.f32 %v1060, %v1086
  %v1093 = vmul.f32 %v1061, %v1086
  %v1094 = vmul.f32 %v1062, %v1086
  %v1095 = vld [vmem:[%s2] sm:$0xff]
  %v1096 = vld [vmem:[%s2 + $0x8] sm:$0xff]
  %1098 = vset.pattern.permute.xlu0 0
  %1099 = vperm.xlu0 %1098, %v1095
  %v1100 = vpop.permute.xlu0 %1099
  %1103 = vset.pattern.permute.xlu0 0
  %1104 = vperm.xlu0 %1103, %v1096
  %v1105 = vpop.permute.xlu0 %1104
  %v1107 = vmul.f32 %v1087, %v1100
  %v1108 = vmul.f32 %v1088, %v1100
  %v1109 = vmul.f32 %v1089, %v1100
  %v1110 = vmul.f32 %v1090, %v1100
  %v1111 = vmul.f32 %v1091, %v1105
  %v1112 = vmul.f32 %v1092, %v1105
  %v1113 = vmul.f32 %v1093, %v1105
  %v1114 = vmul.f32 %v1094, %v1105
  %v1115 = vld [vmem:[%s3] sm:$0xff]
  %v1116 = vld [vmem:[%s3 + $0x8] sm:$0xff]
  %1118 = vset.pattern.permute.xlu0 0
  %1119 = vperm.xlu0 %1118, %v1115
  %v1120 = vpop.permute.xlu0 %1119
  %1123 = vset.pattern.permute.xlu0 0
  %1124 = vperm.xlu0 %1123, %v1116
  %v1125 = vpop.permute.xlu0 %1124
  %v1127 = vadd.f32 %v1107, %v1120
  %v1128 = vadd.f32 %v1108, %v1120
  %v1129 = vadd.f32 %v1109, %v1120
  %v1130 = vadd.f32 %v1110, %v1120
  %v1131 = vadd.f32 %v1111, %v1125
  %v1132 = vadd.f32 %v1112, %v1125
  %v1133 = vadd.f32 %v1113, %v1125
  %v1134 = vadd.f32 %v1114, %v1125
  %vm1135 = vcmp.ge.f32.partialorder %v1127, 0.0
  %vm1136 = vcmp.ge.f32.partialorder %v1128, 0.0
  %vm1137 = vcmp.ge.f32.partialorder %v1129, 0.0
  %vm1138 = vcmp.ge.f32.partialorder %v1130, 0.0
  %vm1139 = vcmp.ge.f32.partialorder %v1131, 0.0
  %vm1140 = vcmp.ge.f32.partialorder %v1132, 0.0
  %vm1141 = vcmp.ge.f32.partialorder %v1133, 0.0
  %vm1142 = vcmp.ge.f32.partialorder %v1134, 0.0
  %v1143 = vmul.f32 %v1127, 0.2
  %v1144 = vmul.f32 %v1128, 0.2
  %v1145 = vmul.f32 %v1129, 0.2
  %v1146 = vmul.f32 %v1130, 0.2
  %v1147 = vmul.f32 %v1131, 0.2
  %v1148 = vmul.f32 %v1132, 0.2
  %v1149 = vmul.f32 %v1133, 0.2
  %v1150 = vmul.f32 %v1134, 0.2
  %v1151 = vsel %vm1135, %v1127, %v1143
  %v1152 = vsel %vm1136, %v1128, %v1144
  %v1153 = vsel %vm1137, %v1129, %v1145
  %v1154 = vsel %vm1138, %v1130, %v1146
  %v1155 = vsel %vm1139, %v1131, %v1147
  %v1156 = vsel %vm1140, %v1132, %v1148
  %v1157 = vsel %vm1141, %v1133, %v1149
  %v1158 = vsel %vm1142, %v1134, %v1150
  %1159 = vst [vmem:[%s4] sm:$0xff] %v1151
  %1160 = vst [vmem:[%s4 + $0x8] sm:$0xff] %v1152
  %1161 = vst [vmem:[%s4 + $0x10] sm:$0xff] %v1153
  %1162 = vst [vmem:[%s4 + $0x18] sm:$0xff] %v1154
  %1163 = vst [vmem:[%s4 + $0x20] sm:$0xff] %v1155
  %1164 = vst [vmem:[%s4 + $0x28] sm:$0xff] %v1156
  %1165 = vst [vmem:[%s4 + $0x30] sm:$0xff] %v1157
  %1166 = vst [vmem:[%s4 + $0x38] sm:$0xff] %v1158
  // Predicated region
  $region18: #{_lambda_.5} parent=0 // pred_check
    _
  $region19: #{_lambda_.5} parent=0 // pred_check_branch
    %1168 = sbr.rel (0) target = $region21
  $region20: #{_lambda_.5} parent=0 // pred_region
    _
  $region21: #{_lambda_.5} parent=0 // pred_fallthru
    _
  // Predicated region
  $region22: #{_lambda_.5} parent=0 // pred_check
    _
  $region23: #{_lambda_.5} parent=0 // pred_check_branch
    %1170 = sbr.rel (0) target = $region25
  $region24: #{_lambda_.5} parent=0 // pred_region
    _
  $region25: #{_lambda_.5} parent=0 // pred_fallthru
    _

// kernel: _lambda_.6
$region0: #{_lambda_.6}
  #allocation0 [shape = 'u32[]', space=smem, size = 0x4, offset = 0x4, fixed_abs, tag = 'smem constant byte address 0x4 - core index']
  #allocation1 [shape = 'u32[144,128]{1,0:T(1,128)}', space=vmem, size = 0x12000, scoped, tag = 'internal scratch']
  %s0 = inlined_call_operand.vmem [shape: bf16[2,2,72,64], index: 0, kind: input, shape index: {}]
  %s1 = inlined_call_operand.vmem [shape: bf16[32,256], index: 1, kind: input, shape index: {}]
  %s2 = inlined_call_operand.vmem [shape: f32[32,1], index: 2, kind: input, shape index: {}]
  %s3 = inlined_call_operand.vmem [shape: f32[32,1], index: 3, kind: input, shape index: {}]
  %s4 = inlined_call_operand.vmem [shape: f32[32,128], index: 4, kind: output, shape index: {}]
  %s5 = sld [smem:[#allocation0]]
  $region26: #{_lambda_.6} parent=0
    _
  %s7 = ssub.s32 1, %s5
  %s8 = scalar_select 0, %s7, %s5
  // Predicated region
  $region2: #{_lambda_.6} parent=0 // pred_check
    _
  $region3: #{_lambda_.6} parent=0 // pred_check_branch
    %10 = sbr.rel (0) target = $region5
  $region4: #{_lambda_.6} parent=0 // pred_region
    _
  $region5: #{_lambda_.6} parent=0 // pred_fallthru
    _
  // Predicated region
  $region6: #{_lambda_.6} parent=0 // pred_check
    _
  $region7: #{_lambda_.6} parent=0 // pred_check_branch
    %12 = sbr.rel (0) target = $region9
  $region8: #{_lambda_.6} parent=0 // pred_region
    _
  $region9: #{_lambda_.6} parent=0 // pred_fallthru
    _
  // Predicated region
  $region10: #{_lambda_.6} parent=0 // pred_check
    _
  $region11: #{_lambda_.6} parent=0 // pred_check_branch
    %14 = sbr.rel (0) target = $region13
  $region12: #{_lambda_.6} parent=0 // pred_region
    _
  $region13: #{_lambda_.6} parent=0 // pred_fallthru
    _
  // Predicated region
  $region14: #{_lambda_.6} parent=0 // pred_check
    _
  $region15: #{_lambda_.6} parent=0 // pred_check_branch
    %16 = sbr.rel (0) target = $region17
  $region16: #{_lambda_.6} parent=0 // pred_region
    _
  $region17: #{_lambda_.6} parent=0 // pred_fallthru
    _
  %v18 = vld [vmem:[%s0] sm:$0xf]
  %v19 = vld [vmem:[%s0 + $0x4] sm:$0xf]
  %v20 = vld [vmem:[%s0 + $0x8] sm:$0xf]
  %v21 = vld [vmem:[%s0 + $0xc] sm:$0xf]
  %v22 = vld [vmem:[%s0 + $0x10] sm:$0xf]
  %v23 = vld [vmem:[%s0 + $0x14] sm:$0xf]
  %v24 = vld [vmem:[%s0 + $0x18] sm:$0xf]
  %v25 = vld [vmem:[%s0 + $0x1c] sm:$0xf]
  %s26 = scalar_lea.vmem %s0, 72
  %v27 = vld [vmem:[%s26] sm:$0xf]
  %v28 = vld [vmem:[%s26 + $0x4] sm:$0xf]
  %v29 = vld [vmem:[%s26 + $0x8] sm:$0xf]
  %v30 = vld [vmem:[%s26 + $0xc] sm:$0xf]
  %v31 = vld [vmem:[%s26 + $0x10] sm:$0xf]
  %v32 = vld [vmem:[%s26 + $0x14] sm:$0xf]
  %v33 = vld [vmem:[%s26 + $0x18] sm:$0xf]
  %v34 = vld [vmem:[%s26 + $0x1c] sm:$0xf]
  %v43 = vunpack.c.l.b16 %v18
  %v44 = vunpack.c.l.b16 %v19
  %v45 = vunpack.c.l.b16 %v20
  %v46 = vunpack.c.l.b16 %v21
  %v47 = vunpack.c.l.b16 %v22
  %v48 = vunpack.c.l.b16 %v23
  %v49 = vunpack.c.l.b16 %v24
  %v50 = vunpack.c.l.b16 %v25
  %v51 = vpack.c.b16 %v44, %v43
  %v52 = vpack.c.b16 %v46, %v45
  %v53 = vpack.c.b16 %v48, %v47
  %v54 = vpack.c.b16 %v50, %v49
  %v63 = vunpack.c.l.b16 %v27
  %v64 = vunpack.c.l.b16 %v28
  %v65 = vunpack.c.l.b16 %v29
  %v66 = vunpack.c.l.b16 %v30
  %v67 = vunpack.c.l.b16 %v31
  %v68 = vunpack.c.l.b16 %v32
  %v69 = vunpack.c.l.b16 %v33
  %v70 = vunpack.c.l.b16 %v34
  %v71 = vpack.c.b16 %v64, %v63
  %v72 = vpack.c.b16 %v66, %v65
  %v73 = vpack.c.b16 %v68, %v67
  %v74 = vpack.c.b16 %v70, %v69
  %s75 = scalar_lea.vmem %s0, 36
  %v76 = vld [vmem:[%s75] sm:$0xf]
  %v77 = vld [vmem:[%s75 + $0x4] sm:$0xf]
  %v78 = vld [vmem:[%s75 + $0x8] sm:$0xf]
  %v79 = vld [vmem:[%s75 + $0xc] sm:$0xf]
  %v80 = vld [vmem:[%s75 + $0x10] sm:$0xf]
  %v81 = vld [vmem:[%s75 + $0x14] sm:$0xf]
  %v82 = vld [vmem:[%s75 + $0x18] sm:$0xf]
  %v83 = vld [vmem:[%s75 + $0x1c] sm:$0xf]
  %s84 = scalar_lea.vmem %s0, 108
  %v85 = vld [vmem:[%s84] sm:$0xf]
  %v86 = vld [vmem:[%s84 + $0x4] sm:$0xf]
  %v87 = vld [vmem:[%s84 + $0x8] sm:$0xf]
  %v88 = vld [vmem:[%s84 + $0xc] sm:$0xf]
  %v89 = vld [vmem:[%s84 + $0x10] sm:$0xf]
  %v90 = vld [vmem:[%s84 + $0x14] sm:$0xf]
  %v91 = vld [vmem:[%s84 + $0x18] sm:$0xf]
  %v92 = vld [vmem:[%s84 + $0x1c] sm:$0xf]
  %v101 = vunpack.c.l.b16 %v76
  %v102 = vunpack.c.l.b16 %v77
  %v103 = vunpack.c.l.b16 %v78
  %v104 = vunpack.c.l.b16 %v79
  %v105 = vunpack.c.l.b16 %v80
  %v106 = vunpack.c.l.b16 %v81
  %v107 = vunpack.c.l.b16 %v82
  %v108 = vunpack.c.l.b16 %v83
  %v109 = vpack.c.b16 %v102, %v101
  %v110 = vpack.c.b16 %v104, %v103
  %v111 = vpack.c.b16 %v106, %v105
  %v112 = vpack.c.b16 %v108, %v107
  %v121 = vunpack.c.l.b16 %v85
  %v122 = vunpack.c.l.b16 %v86
  %v123 = vunpack.c.l.b16 %v87
  %v124 = vunpack.c.l.b16 %v88
  %v125 = vunpack.c.l.b16 %v89
  %v126 = vunpack.c.l.b16 %v90
  %v127 = vunpack.c.l.b16 %v91
  %v128 = vunpack.c.l.b16 %v92
  %v129 = vpack.c.b16 %v122, %v121
  %v130 = vpack.c.b16 %v124, %v123
  %v131 = vpack.c.b16 %v126, %v125
  %v132 = vpack.c.b16 %v128, %v127
  %v133 = vld [vmem:[%s0 + $0x20] sm:$0xf]
  %v134 = vld [vmem:[%s26 + $0x20] sm:$0xf]
  %v136 = vunpack.c.l.b16 %v133
  %v137 = vpack.c.b16 %v45, %v44
  %v138 = vpack.c.b16 %v47, %v46
  %v139 = vpack.c.b16 %v49, %v48
  %v140 = vpack.c.b16 %v136, %v50
  %v142 = vunpack.c.l.b16 %v134
  %v143 = vpack.c.b16 %v65, %v64
  %v144 = vpack.c.b16 %v67, %v66
  %v145 = vpack.c.b16 %v69, %v68
  %v146 = vpack.c.b16 %v142, %v70
  %v147 = vld [vmem:[%s75 + $0x20] sm:$0xf]
  %v148 = vld [vmem:[%s84 + $0x20] sm:$0xf]
  %v150 = vunpack.c.l.b16 %v147
  %v151 = vpack.c.b16 %v103, %v102
  %v152 = vpack.c.b16 %v105, %v104
  %v153 = vpack.c.b16 %v107, %v106
  %v154 = vpack.c.b16 %v150, %v108
  %v156 = vunpack.c.l.b16 %v148
  %v157 = vpack.c.b16 %v123, %v122
  %v158 = vpack.c.b16 %v125, %v124
  %v159 = vpack.c.b16 %v127, %v126
  %v160 = vpack.c.b16 %v156, %v128
  %161 = vrot.lane.b32.xlu0 %v109, 64
  %v162 = vpop.permute.xlu0 %161
  %163 = vrot.lane.b32.xlu0 %v110, 64
  %v164 = vpop.permute.xlu0 %163
  %165 = vrot.lane.b32.xlu0 %v111, 64
  %v166 = vpop.permute.xlu0 %165
  %167 = vrot.lane.b32.xlu0 %v112, 64
  %v168 = vpop.permute.xlu0 %167
  %169 = vrot.lane.b32.xlu0 %v129, 64
  %v170 = vpop.permute.xlu0 %169
  %171 = vrot.lane.b32.xlu0 %v130, 64
  %v172 = vpop.permute.xlu0 %171
  %173 = vrot.lane.b32.xlu0 %v131, 64
  %v174 = vpop.permute.xlu0 %173
  %175 = vrot.lane.b32.xlu0 %v132, 64
  %v176 = vpop.permute.xlu0 %175
  %177 = vrot.lane.b32.xlu0 %v151, 64
  %v178 = vpop.permute.xlu0 %177
  %179 = vrot.lane.b32.xlu0 %v152, 64
  %v180 = vpop.permute.xlu0 %179
  %181 = vrot.lane.b32.xlu0 %v153, 64
  %v182 = vpop.permute.xlu0 %181
  %183 = vrot.lane.b32.xlu0 %v154, 64
  %v184 = vpop.permute.xlu0 %183
  %185 = vrot.lane.b32.xlu0 %v157, 64
  %v186 = vpop.permute.xlu0 %185
  %187 = vrot.lane.b32.xlu0 %v158, 64
  %v188 = vpop.permute.xlu0 %187
  %189 = vrot.lane.b32.xlu0 %v159, 64
  %v190 = vpop.permute.xlu0 %189
  %191 = vrot.lane.b32.xlu0 %v160, 64
  %v192 = vpop.permute.xlu0 %191
  %vm193 = vcmask 523264
  %v196 = vsel %vm193, %v51, %v162
  %v200 = vsel %vm193, %v52, %v164
  %v204 = vsel %vm193, %v53, %v166
  %v208 = vsel %vm193, %v54, %v168
  %v212 = vsel %vm193, %v71, %v170
  %v216 = vsel %vm193, %v72, %v172
  %v220 = vsel %vm193, %v73, %v174
  %v224 = vsel %vm193, %v74, %v176
  %v228 = vsel %vm193, %v137, %v178
  %v232 = vsel %vm193, %v138, %v180
  %v236 = vsel %vm193, %v139, %v182
  %v240 = vsel %vm193, %v140, %v184
  %v244 = vsel %vm193, %v143, %v186
  %v248 = vsel %vm193, %v144, %v188
  %v252 = vsel %vm193, %v145, %v190
  %v256 = vsel %vm193, %v146, %v192
  %v258 = vld [vmem:[%s1] sm:$0xff]
  %v259 = vld [vmem:[%s1 + $0x8] sm:$0xff]
  %v260 = vld [vmem:[%s1 + $0x10] sm:$0xff]
  %v261 = vld [vmem:[%s1 + $0x18] sm:$0xff]
  %v266 = vunpack.c.l.b16 %v258
  %v267 = vunpack.c.h.b16 %v258
  %v268 = vunpack.c.l.b16 %v259
  %v269 = vunpack.c.h.b16 %v259
  %v270 = vunpack.c.l.b16 %v260
  %v271 = vunpack.c.h.b16 %v260
  %v272 = vunpack.c.l.b16 %v261
  %v273 = vunpack.c.h.b16 %v261
  %v274 = vpack.c.b16 %v268, %v266
  %v275 = vpack.c.b16 %v269, %v267
  %v276 = vpack.c.b16 %v272, %v270
  %v277 = vpack.c.b16 %v273, %v271
  %282 = vmatprep.subr.bf16.mxu0 %v228
  %283 = vmatpush1.bf16.xpose.msra.mxu0 %v196
  %284 = vmatprep.subr.bf16.mxu0 %v232
  %285 = vmatpush1.bf16.xpose.msra.mxu0 %v200
  %286 = vmatprep.subr.bf16.mxu0 %v236
  %287 = vmatpush1.bf16.xpose.msra.mxu0 %v204
  %288 = vmatprep.subr.bf16.mxu0 %v240
  %289 = vmatpush1.bf16.xpose.msra.mxu0 %v208
  %290 = vmatprep.subr.bf16.mxu0 %v244
  %291 = vmatpush1.bf16.xpose.msra.mxu0 %v212
  %292 = vmatprep.subr.bf16.mxu0 %v248
  %293 = vmatpush1.bf16.xpose.msra.mxu0 %v216
  %294 = vmatprep.subr.bf16.mxu0 %v252
  %295 = vmatpush1.bf16.xpose.msra.mxu0 %v220
  %296 = vmatprep.subr.bf16.mxu0 %v256
  %297 = vmatpush1.bf16.xpose.msra.mxu0 %v224
  %298 = vmatprep.subr.bf16.mxu0 0
  %299 = vmatpush1.bf16.xpose.msra.mxu0 0
  %300 = vmatprep.subr.bf16.mxu0 0
  %301 = vmatpush1.bf16.xpose.msra.mxu0 0
  %302 = vmatprep.subr.bf16.mxu0 0
  %303 = vmatpush1.bf16.xpose.msra.mxu0 0
  %304 = vmatprep.subr.bf16.mxu0 0
  %305 = vmatpush1.bf16.xpose.msra.mxu0 0
  %306 = vmatprep.subr.bf16.mxu0 0
  %307 = vmatpush1.bf16.xpose.msra.mxu0 0
  %308 = vmatprep.subr.bf16.mxu0 0
  %309 = vmatpush1.bf16.xpose.msra.mxu0 0
  %310 = vmatprep.subr.bf16.mxu0 0
  %311 = vmatpush1.bf16.xpose.msra.mxu0 0
  %312 = vmatprep.subr.bf16.mxu0 0
  %313 = vmatpush1.bf16.xpose.msra.mxu0 0
  %314 = vmatprep.mubr.bf16.mxu0 %v275
  %315 = vmatmul.mubr.bf16.gmra.mrb[0].mxu0 %v274
  %v316 = vpop.f32.mrb[0].mxu0
  %v317 = vadd.f32 0.0, %v316
  %v318 = vpop.f32.mrb[0].mxu0
  %v319 = vpop.f32.mrb[0].mxu0
  %v320 = vadd.f32 0.0, %v319
  %v321 = vpop.f32.mrb[0].mxu0
  %322 = vmatprep.mubr.bf16.mxu0 %v277
  %323 = vmatmul.mubr.bf16.gmra.mrb[0].mxu0 %v276
  %v324 = vpop.f32.mrb[0].mxu0
  %v325 = vadd.f32 0.0, %v324
  %v326 = vpop.f32.mrb[0].mxu0
  %v327 = vpop.f32.mrb[0].mxu0
  %v328 = vadd.f32 0.0, %v327
  %v329 = vpop.f32.mrb[0].mxu0
  %330 = vdwg.mxu0
  %331 = vadd.xlane.f32.xlu0 %v317
  %v332 = vpop.xlane.xlu0 %331
  %333 = vadd.xlane.f32.xlu0 %v320
  %v334 = vpop.xlane.xlu0 %333
  %335 = vadd.xlane.f32.xlu0 %v325
  %v336 = vpop.xlane.xlu0 %335
  %337 = vadd.xlane.f32.xlu0 %v328
  %v338 = vpop.xlane.xlu0 %337
  %v339 = vrcp.pop 128.0
  %v340 = vmul.f32 %v332, %v339
  %v341 = vmul.f32 %v334, %v339
  %v342 = vmul.f32 %v336, %v339
  %v343 = vmul.f32 %v338, %v339
  %v344 = vsub.f32 %v317, %v340
  %v345 = vsub.f32 %v320, %v341
  %v346 = vsub.f32 %v325, %v342
  %v347 = vsub.f32 %v328, %v343
  %v348 = vmul.f32 %v344, %v344
  %v349 = vmul.f32 %v345, %v345
  %v350 = vmul.f32 %v346, %v346
  %v351 = vmul.f32 %v347, %v347
  %352 = vadd.xlane.f32.xlu0 %v348
  %v353 = vpop.xlane.xlu0 %352
  %354 = vadd.xlane.f32.xlu0 %v349
  %v355 = vpop.xlane.xlu0 %354
  %356 = vadd.xlane.f32.xlu0 %v350
  %v357 = vpop.xlane.xlu0 %356
  %358 = vadd.xlane.f32.xlu0 %v351
  %v359 = vpop.xlane.xlu0 %358
  %v360 = vmul.f32 %v353, %v339
  %v361 = vmul.f32 %v355, %v339
  %v362 = vmul.f32 %v357, %v339
  %v363 = vmul.f32 %v359, %v339
  %v364 = vadd.f32 %v360, 1e-05
  %v365 = vadd.f32 %v361, 1e-05
  %v366 = vadd.f32 %v362, 1e-05
  %v367 = vadd.f32 %v363, 1e-05
  %v368 = vrsqrt.pop %v364
  %v369 = vrsqrt.pop %v365
  %v370 = vrsqrt.pop %v366
  %v371 = vrsqrt.pop %v367
  %v372 = vmul.f32 %v344, %v368
  %v373 = vmul.f32 %v345, %v369
  %v374 = vmul.f32 %v346, %v370
  %v375 = vmul.f32 %v347, %v371
  %v376 = vld [vmem:[%s2] sm:$0xff]
  %v377 = vld [vmem:[%s2 + $0x8] sm:$0xff]
  %v378 = vld [vmem:[%s2 + $0x10] sm:$0xff]
  %v379 = vld [vmem:[%s2 + $0x18] sm:$0xff]
  %381 = vset.pattern.permute.xlu0 0
  %382 = vperm.xlu0 %381, %v376
  %v383 = vpop.permute.xlu0 %382
  %386 = vset.pattern.permute.xlu0 0
  %387 = vperm.xlu0 %386, %v377
  %v388 = vpop.permute.xlu0 %387
  %391 = vset.pattern.permute.xlu0 0
  %392 = vperm.xlu0 %391, %v378
  %v393 = vpop.permute.xlu0 %392
  %396 = vset.pattern.permute.xlu0 0
  %397 = vperm.xlu0 %396, %v379
  %v398 = vpop.permute.xlu0 %397
  %v400 = vmul.f32 %v372, %v383
  %v401 = vmul.f32 %v373, %v388
  %v402 = vmul.f32 %v374, %v393
  %v403 = vmul.f32 %v375, %v398
  %v404 = vld [vmem:[%s3] sm:$0xff]
  %v405 = vld [vmem:[%s3 + $0x8] sm:$0xff]
  %v406 = vld [vmem:[%s3 + $0x10] sm:$0xff]
  %v407 = vld [vmem:[%s3 + $0x18] sm:$0xff]
  %409 = vset.pattern.permute.xlu0 0
  %410 = vperm.xlu0 %409, %v404
  %v411 = vpop.permute.xlu0 %410
  %414 = vset.pattern.permute.xlu0 0
  %415 = vperm.xlu0 %414, %v405
  %v416 = vpop.permute.xlu0 %415
  %419 = vset.pattern.permute.xlu0 0
  %420 = vperm.xlu0 %419, %v406
  %v421 = vpop.permute.xlu0 %420
  %424 = vset.pattern.permute.xlu0 0
  %425 = vperm.xlu0 %424, %v407
  %v426 = vpop.permute.xlu0 %425
  %v428 = vadd.f32 %v400, %v411
  %v429 = vadd.f32 %v401, %v416
  %v430 = vadd.f32 %v402, %v421
  %v431 = vadd.f32 %v403, %v426
  %vm432 = vcmp.ge.f32.partialorder %v428, 0.0
  %vm433 = vcmp.ge.f32.partialorder %v429, 0.0
  %vm434 = vcmp.ge.f32.partialorder %v430, 0.0
  %vm435 = vcmp.ge.f32.partialorder %v431, 0.0
  %v436 = vmul.f32 %v428, 0.2
  %v437 = vmul.f32 %v429, 0.2
  %v438 = vmul.f32 %v430, 0.2
  %v439 = vmul.f32 %v431, 0.2
  %v440 = vsel %vm432, %v428, %v436
  %v441 = vsel %vm433, %v429, %v437
  %v442 = vsel %vm434, %v430, %v438
  %v443 = vsel %vm435, %v431, %v439
  %444 = vst [vmem:[%s4] sm:$0xff] %v440
  %445 = vst [vmem:[%s4 + $0x8] sm:$0xff] %v441
  %446 = vst [vmem:[%s4 + $0x10] sm:$0xff] %v442
  %447 = vst [vmem:[%s4 + $0x18] sm:$0xff] %v443
  // Predicated region
  $region18: #{_lambda_.6} parent=0 // pred_check
    _
  $region19: #{_lambda_.6} parent=0 // pred_check_branch
    %449 = sbr.rel (0) target = $region21
  $region20: #{_lambda_.6} parent=0 // pred_region
    _
  $region21: #{_lambda_.6} parent=0 // pred_fallthru
    _
  // Predicated region
  $region22: #{_lambda_.6} parent=0 // pred_check
    _
  $region23: #{_lambda_.6} parent=0 // pred_check_branch
    %451 = sbr.rel (0) target = $region25
  $region24: #{_lambda_.6} parent=0 // pred_region
    _
  $region25: #{_lambda_.6} parent=0 // pred_fallthru
    _

// kernel: _lambda_.7
$region0: #{_lambda_.7}
  #allocation0 [shape = 'u32[]', space=smem, size = 0x4, offset = 0x4, fixed_abs, tag = 'smem constant byte address 0x4 - core index']
  #allocation1 [shape = 'u32[144,128]{1,0:T(1,128)}', space=vmem, size = 0x12000, scoped, tag = 'internal scratch']
  %s0 = inlined_call_operand.vmem [shape: bf16[2,2,20,128], index: 0, kind: input, shape index: {}]
  %s1 = inlined_call_operand.vmem [shape: bf16[64,512], index: 1, kind: input, shape index: {}]
  %s2 = inlined_call_operand.vmem [shape: f32[64,1], index: 2, kind: input, shape index: {}]
  %s3 = inlined_call_operand.vmem [shape: f32[64,1], index: 3, kind: input, shape index: {}]
  %s4 = inlined_call_operand.vmem [shape: f32[64,32], index: 4, kind: input, shape index: {}]
  %s5 = inlined_call_operand.vmem [shape: f32[32,2], index: 5, kind: input, shape index: {}]
  %s6 = inlined_call_operand.hbm [shape: f32[1,2], index: 6, kind: output, shape index: {}]
  %s7 = sld [smem:[#allocation0]]
  $region34: #{_lambda_.7} parent=0
    _
  %s9 = ssub.s32 1, %s7
  %s10 = scalar_select 0, %s9, %s7
  $region1: #{_lambda_.7} parent=0
    #allocation2 [shape = 'u8[512]{0}', space=vmem, size = 0x400, scoped, tag = 'output window, operand 0, single buffered']
    #allocation3 [shape = 's32[1]{0}', space=sflag, size = 0x4, scoped, tag = 'scoped memory for _lambda_.7']
    %11 = vsyncpa [#allocation3], 0
    // Predicated region
    $region2: #{_lambda_.7} parent=1 // pred_check
      _
    $region3: #{_lambda_.7} parent=1 // pred_check_branch
      %13 = sbr.rel (0) target = $region5
    $region4: #{_lambda_.7} parent=1 // pred_region
      _
    $region5: #{_lambda_.7} parent=1 // pred_fallthru
      _
    // Predicated region
    $region6: #{_lambda_.7} parent=1 // pred_check
      _
    $region7: #{_lambda_.7} parent=1 // pred_check_branch
      %15 = sbr.rel (0) target = $region9
    $region8: #{_lambda_.7} parent=1 // pred_region
      _
    $region9: #{_lambda_.7} parent=1 // pred_fallthru
      _
    // Predicated region
    $region10: #{_lambda_.7} parent=1 // pred_check
      _
    $region11: #{_lambda_.7} parent=1 // pred_check_branch
      %17 = sbr.rel (0) target = $region13
    $region12: #{_lambda_.7} parent=1 // pred_region
      _
    $region13: #{_lambda_.7} parent=1 // pred_fallthru
      _
    // Predicated region
    $region14: #{_lambda_.7} parent=1 // pred_check
      _
    $region15: #{_lambda_.7} parent=1 // pred_check_branch
      %19 = sbr.rel (0) target = $region17
    $region16: #{_lambda_.7} parent=1 // pred_region
      _
    $region17: #{_lambda_.7} parent=1 // pred_fallthru
      _
    // Predicated region
    $region18: #{_lambda_.7} parent=1 // pred_check
      _
    $region19: #{_lambda_.7} parent=1 // pred_check_branch
      %21 = sbr.rel (0) target = $region21
    $region20: #{_lambda_.7} parent=1 // pred_region
      _
    $region21: #{_lambda_.7} parent=1 // pred_fallthru
      _
    // Predicated region
    $region22: #{_lambda_.7} parent=1 // pred_check
      _
    $region23: #{_lambda_.7} parent=1 // pred_check_branch
      %23 = sbr.rel (0) target = $region25
    $region24: #{_lambda_.7} parent=1 // pred_region
      _
    $region25: #{_lambda_.7} parent=1 // pred_fallthru
      _
    %v25 = vld [vmem:[%s0] sm:$0xf]
    %v26 = vld [vmem:[%s0 + $0x4] sm:$0xf]
    %s27 = scalar_lea.vmem %s0, 24
    %v28 = vld [vmem:[%s27] sm:$0xf]
    %v29 = vld [vmem:[%s27 + $0x4] sm:$0xf]
    %v32 = vunpack.c.l.b16 %v25
    %v33 = vunpack.c.l.b16 %v26
    %v34 = vpack.c.b16 %v33, %v32
    %v38 = vunpack.c.l.b16 %v28
    %v39 = vunpack.c.l.b16 %v29
    %v40 = vpack.c.b16 %v39, %v38
    %s42 = scalar_lea.vmem %s0, 12
    %v43 = vld [vmem:[%s42] sm:$0xf]
    %v44 = vld [vmem:[%s42 + $0x4] sm:$0xf]
    %s45 = scalar_lea.vmem %s0, 36
    %v46 = vld [vmem:[%s45] sm:$0xf]
    %v47 = vld [vmem:[%s45 + $0x4] sm:$0xf]
    %v50 = vunpack.c.l.b16 %v43
    %v51 = vunpack.c.l.b16 %v44
    %v52 = vpack.c.b16 %v51, %v50
    %v56 = vunpack.c.l.b16 %v46
    %v57 = vunpack.c.l.b16 %v47
    %v58 = vpack.c.b16 %v57, %v56
    %v60 = vld [vmem:[%s0] sm:$0xc]
    %v61 = vld [vmem:[%s0 + $0x8] sm:$0x3]
    %v62 = vld [vmem:[%s27] sm:$0xc]
    %v63 = vld [vmem:[%s27 + $0x8] sm:$0x3]
    %v66 = vunpack.c.l.b16 %v60
    %v67 = vunpack.c.l.b16 %v61
    %v68 = vpack.c.b16 %v33, %v66
    %v69 = vpack.c.b16 %v67, %v67
    %vm70 = vcmask 1045504
    %v71 = vrot.slane %v68, 2
    %v72 = vrot.slane %v69, 2
    %v73 = vsel %vm70, %v71, %v72
    %v77 = vunpack.c.l.b16 %v62
    %v78 = vunpack.c.l.b16 %v63
    %v79 = vpack.c.b16 %v39, %v77
    %v80 = vpack.c.b16 %v78, %v78
    %v81 = vrot.slane %v79, 2
    %v82 = vrot.slane %v80, 2
    %v83 = vsel %vm70, %v81, %v82
    %v85 = vld [vmem:[%s42] sm:$0xc]
    %v86 = vld [vmem:[%s42 + $0x8] sm:$0x3]
    %v87 = vld [vmem:[%s45] sm:$0xc]
    %v88 = vld [vmem:[%s45 + $0x8] sm:$0x3]
    %v91 = vunpack.c.l.b16 %v85
    %v92 = vunpack.c.l.b16 %v86
    %v93 = vpack.c.b16 %v51, %v91
    %v94 = vpack.c.b16 %v92, %v92
    %v95 = vrot.slane %v93, 2
    %v96 = vrot.slane %v94, 2
    %v97 = vsel %vm70, %v95, %v96
    %v101 = vunpack.c.l.b16 %v87
    %v102 = vunpack.c.l.b16 %v88
    %v103 = vpack.c.b16 %v57, %v101
    %v104 = vpack.c.b16 %v102, %v102
    %v105 = vrot.slane %v103, 2
    %v106 = vrot.slane %v104, 2
    %v107 = vsel %vm70, %v105, %v106
    %v109 = vld [vmem:[%s1] sm:$0xff]
    %v110 = vld [vmem:[%s1 + $0x8] sm:$0xff]
    %v111 = vld [vmem:[%s1 + $0x10] sm:$0xff]
    %v112 = vld [vmem:[%s1 + $0x18] sm:$0xff]
    %v113 = vld [vmem:[%s1 + $0x20] sm:$0xff]
    %v114 = vld [vmem:[%s1 + $0x28] sm:$0xff]
    %v115 = vld [vmem:[%s1 + $0x30] sm:$0xff]
    %v116 = vld [vmem:[%s1 + $0x38] sm:$0xff]
    %v117 = vld [vmem:[%s1 + $0x40] sm:$0xff]
    %v118 = vld [vmem:[%s1 + $0x48] sm:$0xff]
    %v119 = vld [vmem:[%s1 + $0x50] sm:$0xff]
    %v120 = vld [vmem:[%s1 + $0x58] sm:$0xff]
    %v121 = vld [vmem:[%s1 + $0x60] sm:$0xff]
    %v122 = vld [vmem:[%s1 + $0x68] sm:$0xff]
    %v123 = vld [vmem:[%s1 + $0x70] sm:$0xff]
    %v124 = vld [vmem:[%s1 + $0x78] sm:$0xff]
    %v141 = vunpack.c.l.b16 %v109
    %v142 = vunpack.c.h.b16 %v109
    %v143 = vunpack.c.l.b16 %v110
    %v144 = vunpack.c.h.b16 %v110
    %v145 = vunpack.c.l.b16 %v111
    %v146 = vunpack.c.h.b16 %v111
    %v147 = vunpack.c.l.b16 %v112
    %v148 = vunpack.c.h.b16 %v112
    %v149 = vunpack.c.l.b16 %v113
    %v150 = vunpack.c.h.b16 %v113
    %v151 = vunpack.c.l.b16 %v114
    %v152 = vunpack.c.h.b16 %v114
    %v153 = vunpack.c.l.b16 %v115
    %v154 = vunpack.c.h.b16 %v115
    %v155 = vunpack.c.l.b16 %v116
    %v156 = vunpack.c.h.b16 %v116
    %v157 = vunpack.c.l.b16 %v117
    %v158 = vunpack.c.h.b16 %v117
    %v159 = vunpack.c.l.b16 %v118
    %v160 = vunpack.c.h.b16 %v118
    %v161 = vunpack.c.l.b16 %v119
    %v162 = vunpack.c.h.b16 %v119
    %v163 = vunpack.c.l.b16 %v120
    %v164 = vunpack.c.h.b16 %v120
    %v165 = vunpack.c.l.b16 %v121
    %v166 = vunpack.c.h.b16 %v121
    %v167 = vunpack.c.l.b16 %v122
    %v168 = vunpack.c.h.b16 %v122
    %v169 = vunpack.c.l.b16 %v123
    %v170 = vunpack.c.h.b16 %v123
    %v171 = vunpack.c.l.b16 %v124
    %v172 = vunpack.c.h.b16 %v124
    %v173 = vpack.c.b16 %v145, %v141
    %v174 = vpack.c.b16 %v146, %v142
    %v175 = vpack.c.b16 %v147, %v143
    %v176 = vpack.c.b16 %v148, %v144
    %v177 = vpack.c.b16 %v153, %v149
    %v178 = vpack.c.b16 %v154, %v150
    %v179 = vpack.c.b16 %v155, %v151
    %v180 = vpack.c.b16 %v156, %v152
    %v181 = vpack.c.b16 %v161, %v157
    %v182 = vpack.c.b16 %v162, %v158
    %v183 = vpack.c.b16 %v163, %v159
    %v184 = vpack.c.b16 %v164, %v160
    %v185 = vpack.c.b16 %v169, %v165
    %v186 = vpack.c.b16 %v170, %v166
    %v187 = vpack.c.b16 %v171, %v167
    %v188 = vpack.c.b16 %v172, %v168
    %205 = vmatprep.subr.bf16.mxu0 %v52
    %206 = vmatpush1.bf16.xpose.msra.mxu0 %v34
    %207 = vmatprep.subr.bf16.mxu0 %v58
    %208 = vmatpush1.bf16.xpose.msra.mxu0 %v40
    %209 = vmatprep.subr.bf16.mxu0 0
    %210 = vmatpush1.bf16.xpose.msra.mxu0 0
    %211 = vmatprep.subr.bf16.mxu0 0
    %212 = vmatpush1.bf16.xpose.msra.mxu0 0
    %213 = vmatprep.subr.bf16.mxu0 0
    %214 = vmatpush1.bf16.xpose.msra.mxu0 0
    %215 = vmatprep.subr.bf16.mxu0 0
    %216 = vmatpush1.bf16.xpose.msra.mxu0 0
    %217 = vmatprep.subr.bf16.mxu0 0
    %218 = vmatpush1.bf16.xpose.msra.mxu0 0
    %219 = vmatprep.subr.bf16.mxu0 0
    %220 = vmatpush1.bf16.xpose.msra.mxu0 0
    %221 = vmatprep.subr.bf16.mxu0 0
    %222 = vmatpush1.bf16.xpose.msra.mxu0 0
    %223 = vmatprep.subr.bf16.mxu0 0
    %224 = vmatpush1.bf16.xpose.msra.mxu0 0
    %225 = vmatprep.subr.bf16.mxu0 0
    %226 = vmatpush1.bf16.xpose.msra.mxu0 0
    %227 = vmatprep.subr.bf16.mxu0 0
    %228 = vmatpush1.bf16.xpose.msra.mxu0 0
    %229 = vmatprep.subr.bf16.mxu0 0
    %230 = vmatpush1.bf16.xpose.msra.mxu0 0
    %231 = vmatprep.subr.bf16.mxu0 0
    %232 = vmatpush1.bf16.xpose.msra.mxu0 0
    %233 = vmatprep.subr.bf16.mxu0 0
    %234 = vmatpush1.bf16.xpose.msra.mxu0 0
    %235 = vmatprep.subr.bf16.mxu0 0
    %236 = vmatpush1.bf16.xpose.msra.mxu0 0
    %237 = vmatprep.mubr.bf16.mxu0 %v174
    %238 = vmatmul.mubr.bf16.gmra.mrb[0].mxu0 %v173
    %v239 = vpop.f32.mrb[0].mxu0
    %v240 = vadd.f32 0.0, %v239
    %v241 = vpop.f32.mrb[0].mxu0
    %v242 = vpop.f32.mrb[0].mxu0
    %v243 = vadd.f32 0.0, %v242
    %v244 = vpop.f32.mrb[0].mxu0
    %245 = vmatprep.mubr.bf16.mxu0 %v178
    %246 = vmatmul.mubr.bf16.gmra.mrb[0].mxu0 %v177
    %v247 = vpop.f32.mrb[0].mxu0
    %v248 = vadd.f32 0.0, %v247
    %v249 = vpop.f32.mrb[0].mxu0
    %v250 = vpop.f32.mrb[0].mxu0
    %v251 = vadd.f32 0.0, %v250
    %v252 = vpop.f32.mrb[0].mxu0
    %253 = vmatprep.mubr.bf16.mxu0 %v182
    %254 = vmatmul.mubr.bf16.gmra.mrb[0].mxu0 %v181
    %v255 = vpop.f32.mrb[0].mxu0
    %v256 = vadd.f32 0.0, %v255
    %v257 = vpop.f32.mrb[0].mxu0
    %v258 = vpop.f32.mrb[0].mxu0
    %v259 = vadd.f32 0.0, %v258
    %v260 = vpop.f32.mrb[0].mxu0
    %261 = vmatprep.mubr.bf16.mxu0 %v186
    %262 = vmatmul.mubr.bf16.gmra.mrb[0].mxu0 %v185
    %v263 = vpop.f32.mrb[0].mxu0
    %v264 = vadd.f32 0.0, %v263
    %v265 = vpop.f32.mrb[0].mxu0
    %v266 = vpop.f32.mrb[0].mxu0
    %v267 = vadd.f32 0.0, %v266
    %v268 = vpop.f32.mrb[0].mxu0
    %269 = vdwg.mxu0
    %270 = vmatprep.subr.bf16.mxu0 %v97
    %271 = vmatpush1.bf16.xpose.msra.mxu0 %v73
    %272 = vmatprep.subr.bf16.mxu0 %v107
    %273 = vmatpush1.bf16.xpose.msra.mxu0 %v83
    %274 = vmatprep.subr.bf16.mxu0 0
    %275 = vmatpush1.bf16.xpose.msra.mxu0 0
    %276 = vmatprep.subr.bf16.mxu0 0
    %277 = vmatpush1.bf16.xpose.msra.mxu0 0
    %278 = vmatprep.subr.bf16.mxu0 0
    %279 = vmatpush1.bf16.xpose.msra.mxu0 0
    %280 = vmatprep.subr.bf16.mxu0 0
    %281 = vmatpush1.bf16.xpose.msra.mxu0 0
    %282 = vmatprep.subr.bf16.mxu0 0
    %283 = vmatpush1.bf16.xpose.msra.mxu0 0
    %284 = vmatprep.subr.bf16.mxu0 0
    %285 = vmatpush1.bf16.xpose.msra.mxu0 0
    %286 = vmatprep.subr.bf16.mxu0 0
    %287 = vmatpush1.bf16.xpose.msra.mxu0 0
    %288 = vmatprep.subr.bf16.mxu0 0
    %289 = vmatpush1.bf16.xpose.msra.mxu0 0
    %290 = vmatprep.subr.bf16.mxu0 0
    %291 = vmatpush1.bf16.xpose.msra.mxu0 0
    %292 = vmatprep.subr.bf16.mxu0 0
    %293 = vmatpush1.bf16.xpose.msra.mxu0 0
    %294 = vmatprep.subr.bf16.mxu0 0
    %295 = vmatpush1.bf16.xpose.msra.mxu0 0
    %296 = vmatprep.subr.bf16.mxu0 0
    %297 = vmatpush1.bf16.xpose.msra.mxu0 0
    %298 = vmatprep.subr.bf16.mxu0 0
    %299 = vmatpush1.bf16.xpose.msra.mxu0 0
    %300 = vmatprep.subr.bf16.mxu0 0
    %301 = vmatpush1.bf16.xpose.msra.mxu0 0
    %302 = vmatprep.mubr.bf16.mxu0 %v176
    %303 = vmatmul.mubr.bf16.gmra.mrb[0].mxu0 %v175
    %v304 = vpop.f32.mrb[0].mxu0
    %v305 = vadd.f32 %v240, %v304
    %v306 = vpop.f32.mrb[0].mxu0
    %v307 = vpop.f32.mrb[0].mxu0
    %v308 = vadd.f32 %v243, %v307
    %v309 = vpop.f32.mrb[0].mxu0
    %310 = vmatprep.mubr.bf16.mxu0 %v180
    %311 = vmatmul.mubr.bf16.gmra.mrb[0].mxu0 %v179
    %v312 = vpop.f32.mrb[0].mxu0
    %v313 = vadd.f32 %v248, %v312
    %v314 = vpop.f32.mrb[0].mxu0
    %v315 = vpop.f32.mrb[0].mxu0
    %v316 = vadd.f32 %v251, %v315
    %v317 = vpop.f32.mrb[0].mxu0
    %318 = vmatprep.mubr.bf16.mxu0 %v184
    %319 = vmatmul.mubr.bf16.gmra.mrb[0].mxu0 %v183
    %v320 = vpop.f32.mrb[0].mxu0
    %v321 = vadd.f32 %v256, %v320
    %v322 = vpop.f32.mrb[0].mxu0
    %v323 = vpop.f32.mrb[0].mxu0
    %v324 = vadd.f32 %v259, %v323
    %v325 = vpop.f32.mrb[0].mxu0
    %326 = vmatprep.mubr.bf16.mxu0 %v188
    %327 = vmatmul.mubr.bf16.gmra.mrb[0].mxu0 %v187
    %v328 = vpop.f32.mrb[0].mxu0
    %v329 = vadd.f32 %v264, %v328
    %v330 = vpop.f32.mrb[0].mxu0
    %v331 = vpop.f32.mrb[0].mxu0
    %v332 = vadd.f32 %v267, %v331
    %v333 = vpop.f32.mrb[0].mxu0
    %334 = vdwg.mxu0
    %vm335 = vcmask 261120
    %v336 = vsel %vm335, %v305, 0.0
    %337 = vadd.xlane.f32.xlu0 %v336
    %v338 = vpop.xlane.xlu0 %337
    %v339 = vsel %vm335, %v308, 0.0
    %340 = vadd.xlane.f32.xlu0 %v339
    %v341 = vpop.xlane.xlu0 %340
    %v342 = vsel %vm335, %v313, 0.0
    %343 = vadd.xlane.f32.xlu0 %v342
    %v344 = vpop.xlane.xlu0 %343
    %v345 = vsel %vm335, %v316, 0.0
    %346 = vadd.xlane.f32.xlu0 %v345
    %v347 = vpop.xlane.xlu0 %346
    %v348 = vsel %vm335, %v321, 0.0
    %349 = vadd.xlane.f32.xlu0 %v348
    %v350 = vpop.xlane.xlu0 %349
    %v351 = vsel %vm335, %v324, 0.0
    %352 = vadd.xlane.f32.xlu0 %v351
    %v353 = vpop.xlane.xlu0 %352
    %v354 = vsel %vm335, %v329, 0.0
    %355 = vadd.xlane.f32.xlu0 %v354
    %v356 = vpop.xlane.xlu0 %355
    %v357 = vsel %vm335, %v332, 0.0
    %358 = vadd.xlane.f32.xlu0 %v357
    %v359 = vpop.xlane.xlu0 %358
    %v360 = vrcp.pop 32.0
    %v361 = vmul.f32 %v338, %v360
    %v362 = vmul.f32 %v341, %v360
    %v363 = vmul.f32 %v344, %v360
    %v364 = vmul.f32 %v347, %v360
    %v365 = vmul.f32 %v350, %v360
    %v366 = vmul.f32 %v353, %v360
    %v367 = vmul.f32 %v356, %v360
    %v368 = vmul.f32 %v359, %v360
    %v369 = vsub.f32 %v305, %v361
    %v370 = vsub.f32 %v308, %v362
    %v371 = vsub.f32 %v313, %v363
    %v372 = vsub.f32 %v316, %v364
    %v373 = vsub.f32 %v321, %v365
    %v374 = vsub.f32 %v324, %v366
    %v375 = vsub.f32 %v329, %v367
    %v376 = vsub.f32 %v332, %v368
    %v377 = vmul.f32 %v369, %v369
    %v378 = vmul.f32 %v370, %v370
    %v379 = vmul.f32 %v371, %v371
    %v380 = vmul.f32 %v372, %v372
    %v381 = vmul.f32 %v373, %v373
    %v382 = vmul.f32 %v374, %v374
    %v383 = vmul.f32 %v375, %v375
    %v384 = vmul.f32 %v376, %v376
    %v385 = vsel %vm335, %v377, 0.0
    %386 = vadd.xlane.f32.xlu0 %v385
    %v387 = vpop.xlane.xlu0 %386
    %v388 = vsel %vm335, %v378, 0.0
    %389 = vadd.xlane.f32.xlu0 %v388
    %v390 = vpop.xlane.xlu0 %389
    %v391 = vsel %vm335, %v379, 0.0
    %392 = vadd.xlane.f32.xlu0 %v391
    %v393 = vpop.xlane.xlu0 %392
    %v394 = vsel %vm335, %v380, 0.0
    %395 = vadd.xlane.f32.xlu0 %v394
    %v396 = vpop.xlane.xlu0 %395
    %v397 = vsel %vm335, %v381, 0.0
    %398 = vadd.xlane.f32.xlu0 %v397
    %v399 = vpop.xlane.xlu0 %398
    %v400 = vsel %vm335, %v382, 0.0
    %401 = vadd.xlane.f32.xlu0 %v400
    %v402 = vpop.xlane.xlu0 %401
    %v403 = vsel %vm335, %v383, 0.0
    %404 = vadd.xlane.f32.xlu0 %v403
    %v405 = vpop.xlane.xlu0 %404
    %v406 = vsel %vm335, %v384, 0.0
    %407 = vadd.xlane.f32.xlu0 %v406
    %v408 = vpop.xlane.xlu0 %407
    %v409 = vmul.f32 %v387, %v360
    %v410 = vmul.f32 %v390, %v360
    %v411 = vmul.f32 %v393, %v360
    %v412 = vmul.f32 %v396, %v360
    %v413 = vmul.f32 %v399, %v360
    %v414 = vmul.f32 %v402, %v360
    %v415 = vmul.f32 %v405, %v360
    %v416 = vmul.f32 %v408, %v360
    %v417 = vadd.f32 %v409, 1e-05
    %v418 = vadd.f32 %v410, 1e-05
    %v419 = vadd.f32 %v411, 1e-05
    %v420 = vadd.f32 %v412, 1e-05
    %v421 = vadd.f32 %v413, 1e-05
    %v422 = vadd.f32 %v414, 1e-05
    %v423 = vadd.f32 %v415, 1e-05
    %v424 = vadd.f32 %v416, 1e-05
    %v425 = vrsqrt.pop %v417
    %v426 = vrsqrt.pop %v418
    %v427 = vrsqrt.pop %v419
    %v428 = vrsqrt.pop %v420
    %v429 = vrsqrt.pop %v421
    %v430 = vrsqrt.pop %v422
    %v431 = vrsqrt.pop %v423
    %v432 = vrsqrt.pop %v424
    %v433 = vmul.f32 %v369, %v425
    %v434 = vmul.f32 %v370, %v426
    %v435 = vmul.f32 %v371, %v427
    %v436 = vmul.f32 %v372, %v428
    %v437 = vmul.f32 %v373, %v429
    %v438 = vmul.f32 %v374, %v430
    %v439 = vmul.f32 %v375, %v431
    %v440 = vmul.f32 %v376, %v432
    %v441 = vld [vmem:[%s2] sm:$0xff]
    %v442 = vld [vmem:[%s2 + $0x8] sm:$0xff]
    %v443 = vld [vmem:[%s2 + $0x10] sm:$0xff]
    %v444 = vld [vmem:[%s2 + $0x18] sm:$0xff]
    %v445 = vld [vmem:[%s2 + $0x20] sm:$0xff]
    %v446 = vld [vmem:[%s2 + $0x28] sm:$0xff]
    %v447 = vld [vmem:[%s2 + $0x30] sm:$0xff]
    %v448 = vld [vmem:[%s2 + $0x38] sm:$0xff]
    %450 = vset.pattern.permute.xlu0 0
    %451 = vperm.xlu0 %450, %v441
    %v452 = vpop.permute.xlu0 %451
    %455 = vset.pattern.permute.xlu0 0
    %456 = vperm.xlu0 %455, %v442
    %v457 = vpop.permute.xlu0 %456
    %460 = vset.pattern.permute.xlu0 0
    %461 = vperm.xlu0 %460, %v443
    %v462 = vpop.permute.xlu0 %461
    %465 = vset.pattern.permute.xlu0 0
    %466 = vperm.xlu0 %465, %v444
    %v467 = vpop.permute.xlu0 %466
    %470 = vset.pattern.permute.xlu0 0
    %471 = vperm.xlu0 %470, %v445
    %v472 = vpop.permute.xlu0 %471
    %475 = vset.pattern.permute.xlu0 0
    %476 = vperm.xlu0 %475, %v446
    %v477 = vpop.permute.xlu0 %476
    %480 = vset.pattern.permute.xlu0 0
    %481 = vperm.xlu0 %480, %v447
    %v482 = vpop.permute.xlu0 %481
    %485 = vset.pattern.permute.xlu0 0
    %486 = vperm.xlu0 %485, %v448
    %v487 = vpop.permute.xlu0 %486
    %v489 = vmul.f32 %v433, %v452
    %v490 = vmul.f32 %v434, %v457
    %v491 = vmul.f32 %v435, %v462
    %v492 = vmul.f32 %v436, %v467
    %v493 = vmul.f32 %v437, %v472
    %v494 = vmul.f32 %v438, %v477
    %v495 = vmul.f32 %v439, %v482
    %v496 = vmul.f32 %v440, %v487
    %v497 = vld [vmem:[%s3] sm:$0xff]
    %v498 = vld [vmem:[%s3 + $0x8] sm:$0xff]
    %v499 = vld [vmem:[%s3 + $0x10] sm:$0xff]
    %v500 = vld [vmem:[%s3 + $0x18] sm:$0xff]
    %v501 = vld [vmem:[%s3 + $0x20] sm:$0xff]
    %v502 = vld [vmem:[%s3 + $0x28] sm:$0xff]
    %v503 = vld [vmem:[%s3 + $0x30] sm:$0xff]
    %v504 = vld [vmem:[%s3 + $0x38] sm:$0xff]
    %506 = vset.pattern.permute.xlu0 0
    %507 = vperm.xlu0 %506, %v497
    %v508 = vpop.permute.xlu0 %507
    %511 = vset.pattern.permute.xlu0 0
    %512 = vperm.xlu0 %511, %v498
    %v513 = vpop.permute.xlu0 %512
    %516 = vset.pattern.permute.xlu0 0
    %517 = vperm.xlu0 %516, %v499
    %v518 = vpop.permute.xlu0 %517
    %521 = vset.pattern.permute.xlu0 0
    %522 = vperm.xlu0 %521, %v500
    %v523 = vpop.permute.xlu0 %522
    %526 = vset.pattern.permute.xlu0 0
    %527 = vperm.xlu0 %526, %v501
    %v528 = vpop.permute.xlu0 %527
    %531 = vset.pattern.permute.xlu0 0
    %532 = vperm.xlu0 %531, %v502
    %v533 = vpop.permute.xlu0 %532
    %536 = vset.pattern.permute.xlu0 0
    %537 = vperm.xlu0 %536, %v503
    %v538 = vpop.permute.xlu0 %537
    %541 = vset.pattern.permute.xlu0 0
    %542 = vperm.xlu0 %541, %v504
    %v543 = vpop.permute.xlu0 %542
    %v545 = vadd.f32 %v489, %v508
    %v546 = vadd.f32 %v490, %v513
    %v547 = vadd.f32 %v491, %v518
    %v548 = vadd.f32 %v492, %v523
    %v549 = vadd.f32 %v493, %v528
    %v550 = vadd.f32 %v494, %v533
    %v551 = vadd.f32 %v495, %v538
    %v552 = vadd.f32 %v496, %v543
    %vm553 = vcmp.ge.f32.partialorder %v545, 0.0
    %vm554 = vcmp.ge.f32.partialorder %v546, 0.0
    %vm555 = vcmp.ge.f32.partialorder %v547, 0.0
    %vm556 = vcmp.ge.f32.partialorder %v548, 0.0
    %vm557 = vcmp.ge.f32.partialorder %v549, 0.0
    %vm558 = vcmp.ge.f32.partialorder %v550, 0.0
    %vm559 = vcmp.ge.f32.partialorder %v551, 0.0
    %vm560 = vcmp.ge.f32.partialorder %v552, 0.0
    %v561 = vmul.f32 %v545, 0.2
    %v562 = vmul.f32 %v546, 0.2
    %v563 = vmul.f32 %v547, 0.2
    %v564 = vmul.f32 %v548, 0.2
    %v565 = vmul.f32 %v549, 0.2
    %v566 = vmul.f32 %v550, 0.2
    %v567 = vmul.f32 %v551, 0.2
    %v568 = vmul.f32 %v552, 0.2
    %v569 = vsel %vm553, %v545, %v561
    %v570 = vsel %vm554, %v546, %v562
    %v571 = vsel %vm555, %v547, %v563
    %v572 = vsel %vm556, %v548, %v564
    %v573 = vsel %vm557, %v549, %v565
    %v574 = vsel %vm558, %v550, %v566
    %v575 = vsel %vm559, %v551, %v567
    %v576 = vsel %vm560, %v552, %v568
    %v577 = vld [vmem:[%s4] sm:$0xff]
    %v578 = vld [vmem:[%s4 + $0x8] sm:$0xff]
    %v579 = vld [vmem:[%s4 + $0x10] sm:$0xff]
    %v580 = vld [vmem:[%s4 + $0x18] sm:$0xff]
    %v581 = vld [vmem:[%s4 + $0x20] sm:$0xff]
    %v582 = vld [vmem:[%s4 + $0x28] sm:$0xff]
    %v583 = vld [vmem:[%s4 + $0x30] sm:$0xff]
    %v584 = vld [vmem:[%s4 + $0x38] sm:$0xff]
    %v585 = vmul.f32 %v577, %v569
    %v586 = vmul.f32 %v578, %v570
    %v587 = vmul.f32 %v579, %v571
    %v588 = vmul.f32 %v580, %v572
    %v589 = vmul.f32 %v581, %v573
    %v590 = vmul.f32 %v582, %v574
    %v591 = vmul.f32 %v583, %v575
    %v592 = vmul.f32 %v584, %v576
    %v593 = vsel %vm335, %v585, 0.0
    %v594 = vsel %vm335, %v586, 0.0
    %v595 = vadd.f32 %v593, %v594
    %v596 = vsel %vm335, %v587, 0.0
    %v597 = vadd.f32 %v595, %v596
    %v598 = vsel %vm335, %v588, 0.0
    %v599 = vadd.f32 %v597, %v598
    %v600 = vsel %vm335, %v589, 0.0
    %v601 = vadd.f32 %v599, %v600
    %v602 = vsel %vm335, %v590, 0.0
    %v603 = vadd.f32 %v601, %v602
    %v604 = vsel %vm335, %v591, 0.0
    %v605 = vadd.f32 %v603, %v604
    %v606 = vsel %vm335, %v592, 0.0
    %v607 = vadd.f32 %v605, %v606
    %v608 = vrot.slane %v607, 4
    %v609 = vadd.f32 %v607, %v608
    %v610 = vrot.slane %v609, 2
    %v611 = vadd.f32 %v609, %v610
    %v612 = vrot.slane %v611, 1
    %v613 = vadd.f32 %v611, %v612
    %v614 = vld [vmem:[%s5] sm:$0xff]
    %v615 = vld [vmem:[%s5 + $0x8] sm:$0xff]
    %v616 = vld [vmem:[%s5 + $0x10] sm:$0xff]
    %v617 = vld [vmem:[%s5 + $0x18] sm:$0xff]
    %v619 = vsel %vm335, %v613, 0
    %621 = vmatprep.subr.mxu0 0.0
    %622 = vmatpush1.msra.mxu0 %v614
    %623 = vmatprep.subr.mxu0 0.0
    %624 = vmatpush1.msra.mxu0 %v615
    %625 = vmatprep.subr.mxu0 0.0
    %626 = vmatpush1.msra.mxu0 %v616
    %627 = vmatprep.subr.mxu0 0.0
    %628 = vmatpush1.msra.mxu0 %v617
    %629 = vmatprep.subr.mxu0 0.0
    %630 = vmatpush1.msra.mxu0 0.0
    %631 = vmatprep.subr.mxu0 0.0
    %632 = vmatpush1.msra.mxu0 0.0
    %633 = vmatprep.subr.mxu0 0.0
    %634 = vmatpush1.msra.mxu0 0.0
    %635 = vmatprep.subr.mxu0 0.0
    %636 = vmatpush1.msra.mxu0 0.0
    %637 = vmatprep.subr.mxu0 0.0
    %638 = vmatpush1.msra.mxu0 0.0
    %639 = vmatprep.subr.mxu0 0.0
    %640 = vmatpush1.msra.mxu0 0.0
    %641 = vmatprep.subr.mxu0 0.0
    %642 = vmatpush1.msra.mxu0 0.0
    %643 = vmatprep.subr.mxu0 0.0
    %644 = vmatpush1.msra.mxu0 0.0
    %645 = vmatprep.subr.mxu0 0.0
    %646 = vmatpush1.msra.mxu0 0.0
    %647 = vmatprep.subr.mxu0 0.0
    %648 = vmatpush1.msra.mxu0 0.0
    %649 = vmatprep.subr.mxu0 0.0
    %650 = vmatpush1.msra.mxu0 0.0
    %651 = vmatprep.subr.mxu0 0.0
    %652 = vmatpush1.msra.mxu0 0.0
    %653 = vmatprep.subr.mxu0 0.0
    %654 = vmatpush1.msra.mxu0 0.0
    %655 = vmatprep.subr.mxu0 0.0
    %656 = vmatpush1.msra.mxu0 0.0
    %657 = vmatprep.subr.mxu0 0.0
    %658 = vmatpush1.msra.mxu0 0.0
    %659 = vmatprep.subr.mxu0 0.0
    %660 = vmatpush1.msra.mxu0 0.0
    %661 = vmatprep.subr.mxu0 0.0
    %662 = vmatpush1.msra.mxu0 0.0
    %663 = vmatprep.subr.mxu0 0.0
    %664 = vmatpush1.msra.mxu0 0.0
    %665 = vmatprep.subr.mxu0 0.0
    %666 = vmatpush1.msra.mxu0 0.0
    %667 = vmatprep.subr.mxu0 0.0
    %668 = vmatpush1.msra.mxu0 0.0
    %669 = vmatprep.subr.mxu0 0.0
    %670 = vmatpush1.msra.mxu0 0.0
    %671 = vmatprep.subr.mxu0 0.0
    %672 = vmatpush1.msra.mxu0 0.0
    %673 = vmatprep.subr.mxu0 0.0
    %674 = vmatpush1.msra.mxu0 0.0
    %675 = vmatprep.subr.mxu0 0.0
    %676 = vmatpush1.msra.mxu0 0.0
    %677 = vmatprep.subr.mxu0 0.0
    %678 = vmatpush1.msra.mxu0 0.0
    %679 = vmatprep.subr.mxu0 0.0
    %680 = vmatpush1.msra.mxu0 0.0
    %681 = vmatprep.subr.mxu0 0.0
    %682 = vmatpush1.msra.mxu0 0.0
    %683 = vmatprep.subr.mxu0 0.0
    %684 = vmatpush1.msra.mxu0 0.0
    %685 = vmatprep.mubr.f32.mxu0 0.0
    %686 = vmatmul.mubr.f32.gmra.mrb[0].mxu0 %v619
    %v687 = vpop.f32.mrb[0].mxu0
    %v688 = vadd.f32 0.0, %v687
    %v689 = vpop.f32.mrb[0].mxu0
    %690 = vdwg.mxu0
    %v691 = vsub.f32 0.0, %v688
    %v692 = vmul.f32 %v691, 1.442695
    %v693 = vpow.pop %v692
    %v694 = vadd.f32 %v693, 1.0
    %v695 = vrcp.pop %v694
    %vm696 = vcmask 8192
    %697 = vst.msk [vmem:[#allocation2] sm:$0x1] %vm696, %v695
    // Predicated region
    $region26: #{_lambda_.7} parent=1 // pred_check
      _
    $region27: #{_lambda_.7} parent=1 // pred_check_branch
      %699 = sbr.rel (0) target = $region29
    $region28: #{_lambda_.7} parent=1 // pred_region
      %s701 = ssub.s32 16, 16
      %702 = vsyncadd [#allocation3], %s701
      %s704 = sshll.u32 [#allocation2], 4
      %s705 = int_to_ptr.vmem [resolvable:$true] %s704
      %707 = dma.vmem_to_hbm [thread:$0]  %s705, 16, %s6, [#allocation3]
    $region29: #{_lambda_.7} parent=1 // pred_fallthru
      _
    // Predicated region
    $region30: #{_lambda_.7} parent=1 // pred_check
      _
    $region31: #{_lambda_.7} parent=1 // pred_check_branch
      %709 = sbr.rel (0) target = $region33
    $region32: #{_lambda_.7} parent=1 // pred_region
      %710 = dma.done [#allocation3], 16
    $region33: #{_lambda_.7} parent=1 // pred_fallthru
      _
    %711 = vsyncpa [#allocation3], 1

</llo_original>
